<compile_context>
chip_gen: v7x
topology: tpu7x:2x2x1
jax: 0.10.0
libtpu: 0.0.40
codegen_flags: <defaults>
</compile_context>

<pallas_src>
import jax
import jax.numpy as jnp
from jax.experimental import pallas as pl
from jax.experimental.pallas import tpu as pltpu


# ----------------------------------------------------------------------------
# Kernel
# ----------------------------------------------------------------------------
def bigru_kernel(emb_ref, mask_ref, feat_ref, invlen_ref,
                 wih_ref, gib_ref,
                 whh_f_ref, bhn_f_ref, whh_b_ref, bhn_b_ref,
                 wl_h_ref, wl_m_ref, wl_a_ref, wl_f_ref, bl_ref,
                 out_ref):
    # emb_ref:  (T*B, E) time-major rows (row = t*B + b)
    # mask_ref: (T, B, 1)  1.0 if t < length else 0.0
    # feat_ref: (B, F)   invlen_ref: (B, 1)   out_ref: (B, O)
    T, B, _ = mask_ref.shape
    H = whh_f_ref.shape[0]
    H3 = 3 * H

    # (1) Hoisted input projection for BOTH directions: one MXU-friendly matmul.
    #     Columns: [fwd r|z|n | bwd r|z|n].  gib = b_ih (+ b_hh for r/z gates).
    gi_all = jnp.dot(emb_ref[...], wih_ref[...],
                     preferred_element_type=jnp.float32) + gib_ref[...]

    whh_f = whh_f_ref[...]        # (H, 3H) gate-stacked [r|z|n]
    whh_b = whh_b_ref[...]
    bhn_f = bhn_f_ref[...]        # (1, 3H), zero except n-gate columns (= b_hn)
    bhn_b = bhn_b_ref[...]

    h_f = jnp.zeros((B, H), jnp.float32)
    h_b = jnp.zeros((B, H), jnp.float32)
    out_f = [None] * T
    out_b = [None] * T

    # (2) Fully unrolled, direction-fused recurrence (T is small and static).
    for t in range(T):
        tb = T - 1 - t
        gi_f = gi_all[t * B:(t + 1) * B, 0:H3]          # (B, 3H) fwd gates @ t
        gi_b = gi_all[tb * B:(tb + 1) * B, H3:2 * H3]   # (B, 3H) bwd gates @ tb
        m_f = mask_ref[t]                               # (B, 1)
        m_b = mask_ref[tb]

        gh_f = jnp.dot(h_f, whh_f, preferred_element_type=jnp.float32) + bhn_f
        gh_b = jnp.dot(h_b, whh_b, preferred_element_type=jnp.float32) + bhn_b

        # PyTorch GRU gate math (gate order r, z, n):
        #   r = sig(Wi_r x + bi_r + Wh_r h + bh_r)      [bh_r folded into gi]
        #   z = sig(Wi_z x + bi_z + Wh_z h + bh_z)      [bh_z folded into gi]
        #   n = tanh(Wi_n x + bi_n + r * (Wh_n h + bh_n))
        r_f = jax.nn.sigmoid(gi_f[:, 0:H] + gh_f[:, 0:H])
        z_f = jax.nn.sigmoid(gi_f[:, H:2 * H] + gh_f[:, H:2 * H])
        n_f = jnp.tanh(gi_f[:, 2 * H:H3] + r_f * gh_f[:, 2 * H:H3])
        hf_new = (1.0 - z_f) * n_f + z_f * h_f

        r_b = jax.nn.sigmoid(gi_b[:, 0:H] + gh_b[:, 0:H])
        z_b = jax.nn.sigmoid(gi_b[:, H:2 * H] + gh_b[:, H:2 * H])
        n_b = jnp.tanh(gi_b[:, 2 * H:H3] + r_b * gh_b[:, 2 * H:H3])
        hb_new = (1.0 - z_b) * n_b + z_b * h_b

        # packed-sequence semantics: outputs zero at padded steps, hidden frozen
        out_f[t] = m_f * hf_new
        out_b[tb] = m_b * hb_new
        h_f = m_f * hf_new + (1.0 - m_f) * h_f
        h_b = m_b * hb_new + (1.0 - m_b) * h_b

    # (3) Pooling over register-resident per-step outputs (no (T,B,H) scratch).
    last_hidden = h_f + h_b
    c0 = out_f[0] + out_b[0]
    max_pool = c0
    sum_pool = c0
    for t in range(1, T):
        c = out_f[t] + out_b[t]
        max_pool = jnp.maximum(max_pool, c)
        sum_pool = sum_pool + c
    avg_pool = sum_pool * invlen_ref[...]

    # (4) concat([last_hidden, max_pool, avg_pool, feat]) @ W + b, expressed as
    #     a sum of per-chunk dots (identical math, avoids in-kernel lane concat).
    logits = (jnp.dot(last_hidden, wl_h_ref[...], preferred_element_type=jnp.float32)
              + jnp.dot(max_pool, wl_m_ref[...], preferred_element_type=jnp.float32)
              + jnp.dot(avg_pool, wl_a_ref[...], preferred_element_type=jnp.float32)
              + jnp.dot(feat_ref[...], wl_f_ref[...], preferred_element_type=jnp.float32)
              + bl_ref[...])

    # log_softmax along the class dim
    m = jnp.max(logits, axis=-1, keepdims=True)
    s = logits - m
    lse = jnp.log(jnp.sum(jnp.exp(s), axis=-1, keepdims=True))
    out_ref[...] = s - lse


# ----------------------------------------------------------------------------
# Parameter layout conversion (PyTorch nn.GRU / nn.Linear layout -> kernel layout)
# ----------------------------------------------------------------------------
def prepare_kernel_params(params):
    H = params['whh_f'].shape[1]

    def gi_bias(bih, bhh):
        # fold b_hh into the input-side bias for the r and z gates only
        return jnp.concatenate([bih[:2 * H] + bhh[:2 * H], bih[2 * H:]])[None, :]

    def hid_n_bias(bhh):
        # b_hn must stay inside r * (Wh_n h + b_hn)
        return jnp.concatenate([jnp.zeros((2 * H,), jnp.float32), bhh[2 * H:]])[None, :]

    wih = jnp.concatenate([params['wih_f'].T, params['wih_b'].T], axis=1)   # (E, 6H)
    gib = jnp.concatenate([gi_bias(params['bih_f'], params['bhh_f']),
                           gi_bias(params['bih_b'], params['bhh_b'])], axis=1)  # (1, 6H)
    W = params['w_lin']                                                     # (O, 3H+F)
    return dict(
        wih=wih.astype(jnp.float32),
        gib=gib.astype(jnp.float32),
        whh_f=params['whh_f'].T.astype(jnp.float32),    # (H, 3H)
        whh_b=params['whh_b'].T.astype(jnp.float32),
        bhn_f=hid_n_bias(params['bhh_f']),
        bhn_b=hid_n_bias(params['bhh_b']),
        wl_h=W[:, 0:H].T.astype(jnp.float32),
        wl_m=W[:, H:2 * H].T.astype(jnp.float32),
        wl_a=W[:, 2 * H:3 * H].T.astype(jnp.float32),
        wl_f=W[:, 3 * H:].T.astype(jnp.float32),
        bl=params['b_lin'][None, :].astype(jnp.float32),
    )


# ----------------------------------------------------------------------------
# Wrapper
# ----------------------------------------------------------------------------
def bigru_forward(params, input_seq, input_feat, input_lengths):
    """Embedding gather + layout in XLA; recurrence/pooling/classifier in Pallas."""
    # TODO(synk): dropout / spatial dropout are identity in eval mode; not applied.
    emb = params['embedding'][input_seq].astype(jnp.float32)          # (B, T, E)
    B, T, E = emb.shape
    O = params['b_lin'].shape[-1]

    emb_flat = jnp.transpose(emb, (1, 0, 2)).reshape(T * B, E)        # time-major rows
    mask = (jnp.arange(T)[:, None] < input_lengths[None, :]).astype(jnp.float32)[:, :, None]
    invlen = (1.0 / jnp.maximum(input_lengths, 1).astype(jnp.float32))[:, None]

    kp = prepare_kernel_params(params)

    vmem = pl.BlockSpec(memory_space=pltpu.MemorySpace.VMEM)
    # TODO(synk): for production batch sizes / long reviews, tile the batch with a
    # grid + dimension_semantics=("parallel",) (2 TCs on v7x), keep emb in pl.ANY
    # with per-block DMA to respect v7x's 64 MiB VMEM, and cast emb/weights to
    # bf16 (f32 accumulation) on v6e/v7x.
    return pl.pallas_call(
        bigru_kernel,
        out_shape=jax.ShapeDtypeStruct((B, O), jnp.float32),
        in_specs=[vmem] * 15,
        out_specs=vmem,
    )(emb_flat, mask, input_feat.astype(jnp.float32), invlen,
      kp['wih'], kp['gib'],
      kp['whh_f'], kp['bhn_f'], kp['whh_b'], kp['bhn_b'],
      kp['wl_h'], kp['wl_m'], kp['wl_a'], kp['wl_f'], kp['bl'])


# ----------------------------------------------------------------------------
# Pure-JAX reference (PyTorch layout / semantics) for a correctness sanity check
# ----------------------------------------------------------------------------
def bigru_reference(params, input_seq, input_feat, input_lengths):
    HP = jax.lax.Precision.HIGHEST
    emb = params['embedding'][input_seq].astype(jnp.float32)          # (B, T, E)
    B, T, E = emb.shape
    H = params['whh_f'].shape[1]
    mask = (jnp.arange(T)[None, :] < input_lengths[:, None]).astype(jnp.float32)  # (B,T)

    def cell(x, h, wih, whh, bih, bhh):
        gi = jnp.dot(x, wih.T, precision=HP) + bih
        gh = jnp.dot(h, whh.T, precision=HP) + bhh
        r = jax.nn.sigmoid(gi[:, :H] + gh[:, :H])
        z = jax.nn.sigmoid(gi[:, H:2 * H] + gh[:, H:2 * H])
        n = jnp.tanh(gi[:, 2 * H:] + r * gh[:, 2 * H:])
        return (1.0 - z) * n + z * h

    h_f = jnp.zeros((B, H), jnp.float32)
    h_b = jnp.zeros((B, H), jnp.float32)
    outs_f, outs_b = [], [None] * T
    for t in range(T):
        m = mask[:, t][:, None]
        hn = cell(emb[:, t], h_f, params['wih_f'], params['whh_f'],
                  params['bih_f'], params['bhh_f'])
        outs_f.append(m * hn)
        h_f = m * hn + (1.0 - m) * h_f
    for i in range(T):
        t = T - 1 - i
        m = mask[:, t][:, None]
        hn = cell(emb[:, t], h_b, params['wih_b'], params['whh_b'],
                  params['bih_b'], params['bhh_b'])
        outs_b[t] = m * hn
        h_b = m * hn + (1.0 - m) * h_b

    gru_out = jnp.stack([outs_f[t] + outs_b[t] for t in range(T)], axis=1)   # (B,T,H)
    last_hidden = h_f + h_b
    max_pool = jnp.max(gru_out, axis=1)
    avg_pool = jnp.sum(gru_out, axis=1) / jnp.maximum(input_lengths, 1).astype(jnp.float32)[:, None]
    concat = jnp.concatenate([last_hidden, max_pool, avg_pool,
                              input_feat.astype(jnp.float32)], axis=1)
    logits = jnp.dot(concat, params['w_lin'].T, precision=HP) + params['b_lin']
    return jax.nn.log_softmax(logits, axis=-1)


# ----------------------------------------------------------------------------
# Parameter init (PyTorch layouts: weight_ih (3H,E), weight_hh (3H,H), biases (3H,))
# ----------------------------------------------------------------------------
def init_params(key, vocab_size, embedding_dim, hidden_size, n_extra_feat, output_size):
    ks = jax.random.split(key, 11)
    H, E = hidden_size, embedding_dim
    kg = 1.0 / (H ** 0.5)
    kl = 1.0 / ((3 * H + n_extra_feat) ** 0.5)
    u = lambda k, shape, lim: jax.random.uniform(k, shape, jnp.float32, -lim, lim)
    return {
        'embedding': jax.random.normal(ks[0], (vocab_size, E), jnp.float32),
        'wih_f': u(ks[1], (3 * H, E), kg), 'whh_f': u(ks[2], (3 * H, H), kg),
        'bih_f': u(ks[3], (3 * H,), kg),   'bhh_f': u(ks[4], (3 * H,), kg),
        'wih_b': u(ks[5], (3 * H, E), kg), 'whh_b': u(ks[6], (3 * H, H), kg),
        'bih_b': u(ks[7], (3 * H,), kg),   'bhh_b': u(ks[8], (3 * H,), kg),
        'w_lin': u(ks[9], (output_size, 3 * H + n_extra_feat), kl),
        'b_lin': u(ks[10], (output_size,), kl),
    }


if __name__ == "__main__":
    # Small shapes consistent with the module: hidden_size=8, n_extra_feat=10,
    # output_size=2, n_layers=1, bidirectional=True.  Embedding dim kept small.
    B, T, V, E, H, F, O = 4, 8, 50, 128, 8, 10, 2

    key = jax.random.PRNGKey(0)
    kpar, kseq, kfeat = jax.random.split(key, 3)

    params = init_params(kpar, V, E, H, F, O)
    input_seq = jax.random.randint(kseq, (B, T), 0, V)                # (B, T) token ids
    input_feat = jax.random.normal(kfeat, (B, F), jnp.float32)        # (B, 10) extra feats
    input_lengths = jnp.array([T, T - 2, T - 1, T - 3], dtype=jnp.int32)  # max == T

    out = bigru_forward(params, input_seq, input_feat, input_lengths)
    jax.block_until_ready(out)
    assert out.shape == (B, O)

    # Sanity check against the pure-JAX reference (loose tol: MXU precision modes).
    ref = jax.jit(bigru_reference)(params, input_seq, input_feat, input_lengths)
    jax.block_until_ready(ref)
    assert jnp.allclose(out, ref, atol=2e-2, rtol=1e-2), (out, ref)

    print("KERNEL_OK")
</pallas_src>

<mosaic_0001>
module attributes {stable_mosaic.version = 11 : i64} {
  func.func @bigru_kernel(%arg0: memref<32x128xf32, #tpu.memory_space<vmem>>, %arg1: memref<8x4x1xf32, #tpu.memory_space<vmem>>, %arg2: memref<4x10xf32, #tpu.memory_space<vmem>>, %arg3: memref<4x1xf32, #tpu.memory_space<vmem>>, %arg4: memref<128x48xf32, #tpu.memory_space<vmem>>, %arg5: memref<1x48xf32, #tpu.memory_space<vmem>>, %arg6: memref<8x24xf32, #tpu.memory_space<vmem>>, %arg7: memref<1x24xf32, #tpu.memory_space<vmem>>, %arg8: memref<8x24xf32, #tpu.memory_space<vmem>>, %arg9: memref<1x24xf32, #tpu.memory_space<vmem>>, %arg10: memref<8x2xf32, #tpu.memory_space<vmem>>, %arg11: memref<8x2xf32, #tpu.memory_space<vmem>>, %arg12: memref<8x2xf32, #tpu.memory_space<vmem>>, %arg13: memref<10x2xf32, #tpu.memory_space<vmem>>, %arg14: memref<1x2xf32, #tpu.memory_space<vmem>>, %arg15: memref<4x2xf32, #tpu.memory_space<vmem>>) attributes {dimension_semantics = [], scalar_prefetch = 0 : i64, scratch_operands = 0 : i64, tpu.core_type = #tpu.core_type<tc>} {
    %c0 = arith.constant 0 : index
    %c0_0 = arith.constant 0 : index
    %0 = vector.load %arg0[%c0, %c0_0] : memref<32x128xf32, #tpu.memory_space<vmem>>, vector<32x128xf32>
    %c0_1 = arith.constant 0 : index
    %c0_2 = arith.constant 0 : index
    %1 = vector.load %arg4[%c0_1, %c0_2] : memref<128x48xf32, #tpu.memory_space<vmem>>, vector<128x48xf32>
    %cst = arith.constant dense<0.000000e+00> : vector<32x48xf32>
    %2 = tpu.matmul %0, %1, %cst {dimension_numbers = #tpu.dot_dimension_numbers<[1], [0], [0], [1], [0, 0, 1, 1], [], []>} : vector<32x128xf32>, vector<128x48xf32>, vector<32x48xf32> -> vector<32x48xf32>
    %c0_3 = arith.constant 0 : index
    %c0_4 = arith.constant 0 : index
    %3 = vector.load %arg5[%c0_3, %c0_4] : memref<1x48xf32, #tpu.memory_space<vmem>>, vector<1x48xf32>
    %4 = vector.broadcast %3 : vector<1x48xf32> to vector<32x48xf32>
    %5 = arith.addf %2, %4 : vector<32x48xf32>
    %c0_5 = arith.constant 0 : index
    %c0_6 = arith.constant 0 : index
    %6 = vector.load %arg6[%c0_5, %c0_6] : memref<8x24xf32, #tpu.memory_space<vmem>>, vector<8x24xf32>
    %c0_7 = arith.constant 0 : index
    %c0_8 = arith.constant 0 : index
    %7 = vector.load %arg8[%c0_7, %c0_8] : memref<8x24xf32, #tpu.memory_space<vmem>>, vector<8x24xf32>
    %c0_9 = arith.constant 0 : index
    %c0_10 = arith.constant 0 : index
    %8 = vector.load %arg7[%c0_9, %c0_10] : memref<1x24xf32, #tpu.memory_space<vmem>>, vector<1x24xf32>
    %c0_11 = arith.constant 0 : index
    %c0_12 = arith.constant 0 : index
    %9 = vector.load %arg9[%c0_11, %c0_12] : memref<1x24xf32, #tpu.memory_space<vmem>>, vector<1x24xf32>
    %cst_13 = arith.constant 0.000000e+00 : f32
    %10 = vector.broadcast %cst_13 : f32 to vector<4x8xf32>
    %cst_14 = arith.constant 0.000000e+00 : f32
    %11 = vector.broadcast %cst_14 : f32 to vector<4x8xf32>
    %12 = vector.extract_strided_slice %5 {offsets = [0, 0], sizes = [4, 24], strides = [1, 1]} : vector<32x48xf32> to vector<4x24xf32>
    %13 = vector.extract_strided_slice %5 {offsets = [28, 24], sizes = [4, 24], strides = [1, 1]} : vector<32x48xf32> to vector<4x24xf32>
    %c0_15 = arith.constant 0 : index
    %c0_16 = arith.constant 0 : index
    %c0_17 = arith.constant 0 : index
    %14 = vector.load %arg1[%c0_15, %c0_16, %c0_17] : memref<8x4x1xf32, #tpu.memory_space<vmem>>, vector<1x4x1xf32>
    %15 = vector.shape_cast %14 : vector<1x4x1xf32> to vector<4x1xf32>
    %c7 = arith.constant 7 : index
    %c0_18 = arith.constant 0 : index
    %c0_19 = arith.constant 0 : index
    %16 = vector.load %arg1[%c7, %c0_18, %c0_19] : memref<8x4x1xf32, #tpu.memory_space<vmem>>, vector<1x4x1xf32>
    %17 = vector.shape_cast %16 : vector<1x4x1xf32> to vector<4x1xf32>
    %cst_20 = arith.constant dense<0.000000e+00> : vector<4x24xf32>
    %18 = tpu.matmul %10, %6, %cst_20 {dimension_numbers = #tpu.dot_dimension_numbers<[1], [0], [0], [1], [0, 0, 1, 1], [], []>} : vector<4x8xf32>, vector<8x24xf32>, vector<4x24xf32> -> vector<4x24xf32>
    %19 = vector.broadcast %8 : vector<1x24xf32> to vector<4x24xf32>
    %20 = arith.addf %18, %19 : vector<4x24xf32>
    %cst_21 = arith.constant dense<0.000000e+00> : vector<4x24xf32>
    %21 = tpu.matmul %11, %7, %cst_21 {dimension_numbers = #tpu.dot_dimension_numbers<[1], [0], [0], [1], [0, 0, 1, 1], [], []>} : vector<4x8xf32>, vector<8x24xf32>, vector<4x24xf32> -> vector<4x24xf32>
    %22 = vector.broadcast %9 : vector<1x24xf32> to vector<4x24xf32>
    %23 = arith.addf %21, %22 : vector<4x24xf32>
    %24 = vector.extract_strided_slice %12 {offsets = [0, 0], sizes = [4, 8], strides = [1, 1]} : vector<4x24xf32> to vector<4x8xf32>
    %25 = vector.extract_strided_slice %20 {offsets = [0, 0], sizes = [4, 8], strides = [1, 1]} : vector<4x24xf32> to vector<4x8xf32>
    %26 = arith.addf %24, %25 : vector<4x8xf32>
    %27 = arith.negf %26 : vector<4x8xf32>
    %28 = math.exp %27 : vector<4x8xf32>
    %cst_22 = arith.constant 1.000000e+00 : f32
    %29 = vector.broadcast %cst_22 : f32 to vector<4x8xf32>
    %30 = arith.addf %29, %28 : vector<4x8xf32>
    %31 = arith.divf %29, %30 : vector<4x8xf32>
    %32 = vector.extract_strided_slice %12 {offsets = [0, 8], sizes = [4, 8], strides = [1, 1]} : vector<4x24xf32> to vector<4x8xf32>
    %33 = vector.extract_strided_slice %20 {offsets = [0, 8], sizes = [4, 8], strides = [1, 1]} : vector<4x24xf32> to vector<4x8xf32>
    %34 = arith.addf %32, %33 : vector<4x8xf32>
    %35 = arith.negf %34 : vector<4x8xf32>
    %36 = math.exp %35 : vector<4x8xf32>
    %cst_23 = arith.constant 1.000000e+00 : f32
    %37 = vector.broadcast %cst_23 : f32 to vector<4x8xf32>
    %38 = arith.addf %37, %36 : vector<4x8xf32>
    %39 = arith.divf %37, %38 : vector<4x8xf32>
    %40 = vector.extract_strided_slice %12 {offsets = [0, 16], sizes = [4, 8], strides = [1, 1]} : vector<4x24xf32> to vector<4x8xf32>
    %41 = vector.extract_strided_slice %20 {offsets = [0, 16], sizes = [4, 8], strides = [1, 1]} : vector<4x24xf32> to vector<4x8xf32>
    %42 = arith.mulf %31, %41 : vector<4x8xf32>
    %43 = arith.addf %40, %42 : vector<4x8xf32>
    %44 = math.tanh %43 : vector<4x8xf32>
    %cst_24 = arith.constant 1.000000e+00 : f32
    %45 = vector.broadcast %cst_24 : f32 to vector<4x8xf32>
    %46 = arith.subf %45, %39 : vector<4x8xf32>
    %47 = arith.mulf %46, %44 : vector<4x8xf32>
    %48 = arith.mulf %39, %10 : vector<4x8xf32>
    %49 = arith.addf %47, %48 : vector<4x8xf32>
    %50 = vector.extract_strided_slice %13 {offsets = [0, 0], sizes = [4, 8], strides = [1, 1]} : vector<4x24xf32> to vector<4x8xf32>
    %51 = vector.extract_strided_slice %23 {offsets = [0, 0], sizes = [4, 8], strides = [1, 1]} : vector<4x24xf32> to vector<4x8xf32>
    %52 = arith.addf %50, %51 : vector<4x8xf32>
    %53 = arith.negf %52 : vector<4x8xf32>
    %54 = math.exp %53 : vector<4x8xf32>
    %cst_25 = arith.constant 1.000000e+00 : f32
    %55 = vector.broadcast %cst_25 : f32 to vector<4x8xf32>
    %56 = arith.addf %55, %54 : vector<4x8xf32>
    %57 = arith.divf %55, %56 : vector<4x8xf32>
    %58 = vector.extract_strided_slice %13 {offsets = [0, 8], sizes = [4, 8], strides = [1, 1]} : vector<4x24xf32> to vector<4x8xf32>
    %59 = vector.extract_strided_slice %23 {offsets = [0, 8], sizes = [4, 8], strides = [1, 1]} : vector<4x24xf32> to vector<4x8xf32>
    %60 = arith.addf %58, %59 : vector<4x8xf32>
    %61 = arith.negf %60 : vector<4x8xf32>
    %62 = math.exp %61 : vector<4x8xf32>
    %cst_26 = arith.constant 1.000000e+00 : f32
    %63 = vector.broadcast %cst_26 : f32 to vector<4x8xf32>
    %64 = arith.addf %63, %62 : vector<4x8xf32>
    %65 = arith.divf %63, %64 : vector<4x8xf32>
    %66 = vector.extract_strided_slice %13 {offsets = [0, 16], sizes = [4, 8], strides = [1, 1]} : vector<4x24xf32> to vector<4x8xf32>
    %67 = vector.extract_strided_slice %23 {offsets = [0, 16], sizes = [4, 8], strides = [1, 1]} : vector<4x24xf32> to vector<4x8xf32>
    %68 = arith.mulf %57, %67 : vector<4x8xf32>
    %69 = arith.addf %66, %68 : vector<4x8xf32>
    %70 = math.tanh %69 : vector<4x8xf32>
    %cst_27 = arith.constant 1.000000e+00 : f32
    %71 = vector.broadcast %cst_27 : f32 to vector<4x8xf32>
    %72 = arith.subf %71, %65 : vector<4x8xf32>
    %73 = arith.mulf %72, %70 : vector<4x8xf32>
    %74 = arith.mulf %65, %11 : vector<4x8xf32>
    %75 = arith.addf %73, %74 : vector<4x8xf32>
    %76 = vector.broadcast %15 : vector<4x1xf32> to vector<4x8xf32>
    %77 = arith.mulf %76, %49 : vector<4x8xf32>
    %78 = vector.broadcast %17 : vector<4x1xf32> to vector<4x8xf32>
    %79 = arith.mulf %78, %75 : vector<4x8xf32>
    %80 = vector.broadcast %15 : vector<4x1xf32> to vector<4x8xf32>
    %81 = arith.mulf %80, %49 : vector<4x8xf32>
    %cst_28 = arith.constant 1.000000e+00 : f32
    %82 = vector.broadcast %cst_28 : f32 to vector<4x1xf32>
    %83 = arith.subf %82, %15 : vector<4x1xf32>
    %84 = vector.broadcast %83 : vector<4x1xf32> to vector<4x8xf32>
    %85 = arith.mulf %84, %10 : vector<4x8xf32>
    %86 = arith.addf %81, %85 : vector<4x8xf32>
    %87 = vector.broadcast %17 : vector<4x1xf32> to vector<4x8xf32>
    %88 = arith.mulf %87, %75 : vector<4x8xf32>
    %cst_29 = arith.constant 1.000000e+00 : f32
    %89 = vector.broadcast %cst_29 : f32 to vector<4x1xf32>
    %90 = arith.subf %89, %17 : vector<4x1xf32>
    %91 = vector.broadcast %90 : vector<4x1xf32> to vector<4x8xf32>
    %92 = arith.mulf %91, %11 : vector<4x8xf32>
    %93 = arith.addf %88, %92 : vector<4x8xf32>
    %94 = vector.extract_strided_slice %5 {offsets = [4, 0], sizes = [4, 24], strides = [1, 1]} : vector<32x48xf32> to vector<4x24xf32>
    %95 = vector.extract_strided_slice %5 {offsets = [24, 24], sizes = [4, 24], strides = [1, 1]} : vector<32x48xf32> to vector<4x24xf32>
    %c1 = arith.constant 1 : index
    %c0_30 = arith.constant 0 : index
    %c0_31 = arith.constant 0 : index
    %96 = vector.load %arg1[%c1, %c0_30, %c0_31] : memref<8x4x1xf32, #tpu.memory_space<vmem>>, vector<1x4x1xf32>
    %97 = vector.shape_cast %96 : vector<1x4x1xf32> to vector<4x1xf32>
    %c6 = arith.constant 6 : index
    %c0_32 = arith.constant 0 : index
    %c0_33 = arith.constant 0 : index
    %98 = vector.load %arg1[%c6, %c0_32, %c0_33] : memref<8x4x1xf32, #tpu.memory_space<vmem>>, vector<1x4x1xf32>
    %99 = vector.shape_cast %98 : vector<1x4x1xf32> to vector<4x1xf32>
    %cst_34 = arith.constant dense<0.000000e+00> : vector<4x24xf32>
    %100 = tpu.matmul %86, %6, %cst_34 {dimension_numbers = #tpu.dot_dimension_numbers<[1], [0], [0], [1], [0, 0, 1, 1], [], []>} : vector<4x8xf32>, vector<8x24xf32>, vector<4x24xf32> -> vector<4x24xf32>
    %101 = vector.broadcast %8 : vector<1x24xf32> to vector<4x24xf32>
    %102 = arith.addf %100, %101 : vector<4x24xf32>
    %cst_35 = arith.constant dense<0.000000e+00> : vector<4x24xf32>
    %103 = tpu.matmul %93, %7, %cst_35 {dimension_numbers = #tpu.dot_dimension_numbers<[1], [0], [0], [1], [0, 0, 1, 1], [], []>} : vector<4x8xf32>, vector<8x24xf32>, vector<4x24xf32> -> vector<4x24xf32>
    %104 = vector.broadcast %9 : vector<1x24xf32> to vector<4x24xf32>
    %105 = arith.addf %103, %104 : vector<4x24xf32>
    %106 = vector.extract_strided_slice %94 {offsets = [0, 0], sizes = [4, 8], strides = [1, 1]} : vector<4x24xf32> to vector<4x8xf32>
    %107 = vector.extract_strided_slice %102 {offsets = [0, 0], sizes = [4, 8], strides = [1, 1]} : vector<4x24xf32> to vector<4x8xf32>
    %108 = arith.addf %106, %107 : vector<4x8xf32>
    %109 = arith.negf %108 : vector<4x8xf32>
    %110 = math.exp %109 : vector<4x8xf32>
    %cst_36 = arith.constant 1.000000e+00 : f32
    %111 = vector.broadcast %cst_36 : f32 to vector<4x8xf32>
    %112 = arith.addf %111, %110 : vector<4x8xf32>
    %113 = arith.divf %111, %112 : vector<4x8xf32>
    %114 = vector.extract_strided_slice %94 {offsets = [0, 8], sizes = [4, 8], strides = [1, 1]} : vector<4x24xf32> to vector<4x8xf32>
    %115 = vector.extract_strided_slice %102 {offsets = [0, 8], sizes = [4, 8], strides = [1, 1]} : vector<4x24xf32> to vector<4x8xf32>
    %116 = arith.addf %114, %115 : vector<4x8xf32>
    %117 = arith.negf %116 : vector<4x8xf32>
    %118 = math.exp %117 : vector<4x8xf32>
    %cst_37 = arith.constant 1.000000e+00 : f32
    %119 = vector.broadcast %cst_37 : f32 to vector<4x8xf32>
    %120 = arith.addf %119, %118 : vector<4x8xf32>
    %121 = arith.divf %119, %120 : vector<4x8xf32>
    %122 = vector.extract_strided_slice %94 {offsets = [0, 16], sizes = [4, 8], strides = [1, 1]} : vector<4x24xf32> to vector<4x8xf32>
    %123 = vector.extract_strided_slice %102 {offsets = [0, 16], sizes = [4, 8], strides = [1, 1]} : vector<4x24xf32> to vector<4x8xf32>
    %124 = arith.mulf %113, %123 : vector<4x8xf32>
    %125 = arith.addf %122, %124 : vector<4x8xf32>
    %126 = math.tanh %125 : vector<4x8xf32>
    %cst_38 = arith.constant 1.000000e+00 : f32
    %127 = vector.broadcast %cst_38 : f32 to vector<4x8xf32>
    %128 = arith.subf %127, %121 : vector<4x8xf32>
    %129 = arith.mulf %128, %126 : vector<4x8xf32>
    %130 = arith.mulf %121, %86 : vector<4x8xf32>
    %131 = arith.addf %129, %130 : vector<4x8xf32>
    %132 = vector.extract_strided_slice %95 {offsets = [0, 0], sizes = [4, 8], strides = [1, 1]} : vector<4x24xf32> to vector<4x8xf32>
    %133 = vector.extract_strided_slice %105 {offsets = [0, 0], sizes = [4, 8], strides = [1, 1]} : vector<4x24xf32> to vector<4x8xf32>
    %134 = arith.addf %132, %133 : vector<4x8xf32>
    %135 = arith.negf %134 : vector<4x8xf32>
    %136 = math.exp %135 : vector<4x8xf32>
    %cst_39 = arith.constant 1.000000e+00 : f32
    %137 = vector.broadcast %cst_39 : f32 to vector<4x8xf32>
    %138 = arith.addf %137, %136 : vector<4x8xf32>
    %139 = arith.divf %137, %138 : vector<4x8xf32>
    %140 = vector.extract_strided_slice %95 {offsets = [0, 8], sizes = [4, 8], strides = [1, 1]} : vector<4x24xf32> to vector<4x8xf32>
    %141 = vector.extract_strided_slice %105 {offsets = [0, 8], sizes = [4, 8], strides = [1, 1]} : vector<4x24xf32> to vector<4x8xf32>
    %142 = arith.addf %140, %141 : vector<4x8xf32>
    %143 = arith.negf %142 : vector<4x8xf32>
    %144 = math.exp %143 : vector<4x8xf32>
    %cst_40 = arith.constant 1.000000e+00 : f32
    %145 = vector.broadcast %cst_40 : f32 to vector<4x8xf32>
    %146 = arith.addf %145, %144 : vector<4x8xf32>
    %147 = arith.divf %145, %146 : vector<4x8xf32>
    %148 = vector.extract_strided_slice %95 {offsets = [0, 16], sizes = [4, 8], strides = [1, 1]} : vector<4x24xf32> to vector<4x8xf32>
    %149 = vector.extract_strided_slice %105 {offsets = [0, 16], sizes = [4, 8], strides = [1, 1]} : vector<4x24xf32> to vector<4x8xf32>
    %150 = arith.mulf %139, %149 : vector<4x8xf32>
    %151 = arith.addf %148, %150 : vector<4x8xf32>
    %152 = math.tanh %151 : vector<4x8xf32>
    %cst_41 = arith.constant 1.000000e+00 : f32
    %153 = vector.broadcast %cst_41 : f32 to vector<4x8xf32>
    %154 = arith.subf %153, %147 : vector<4x8xf32>
    %155 = arith.mulf %154, %152 : vector<4x8xf32>
    %156 = arith.mulf %147, %93 : vector<4x8xf32>
    %157 = arith.addf %155, %156 : vector<4x8xf32>
    %158 = vector.broadcast %97 : vector<4x1xf32> to vector<4x8xf32>
    %159 = arith.mulf %158, %131 : vector<4x8xf32>
    %160 = vector.broadcast %99 : vector<4x1xf32> to vector<4x8xf32>
    %161 = arith.mulf %160, %157 : vector<4x8xf32>
    %162 = vector.broadcast %97 : vector<4x1xf32> to vector<4x8xf32>
    %163 = arith.mulf %162, %131 : vector<4x8xf32>
    %cst_42 = arith.constant 1.000000e+00 : f32
    %164 = vector.broadcast %cst_42 : f32 to vector<4x1xf32>
    %165 = arith.subf %164, %97 : vector<4x1xf32>
    %166 = vector.broadcast %165 : vector<4x1xf32> to vector<4x8xf32>
    %167 = arith.mulf %166, %86 : vector<4x8xf32>
    %168 = arith.addf %163, %167 : vector<4x8xf32>
    %169 = vector.broadcast %99 : vector<4x1xf32> to vector<4x8xf32>
    %170 = arith.mulf %169, %157 : vector<4x8xf32>
    %cst_43 = arith.constant 1.000000e+00 : f32
    %171 = vector.broadcast %cst_43 : f32 to vector<4x1xf32>
    %172 = arith.subf %171, %99 : vector<4x1xf32>
    %173 = vector.broadcast %172 : vector<4x1xf32> to vector<4x8xf32>
    %174 = arith.mulf %173, %93 : vector<4x8xf32>
    %175 = arith.addf %170, %174 : vector<4x8xf32>
    %176 = vector.extract_strided_slice %5 {offsets = [8, 0], sizes = [4, 24], strides = [1, 1]} : vector<32x48xf32> to vector<4x24xf32>
    %177 = vector.extract_strided_slice %5 {offsets = [20, 24], sizes = [4, 24], strides = [1, 1]} : vector<32x48xf32> to vector<4x24xf32>
    %c2 = arith.constant 2 : index
    %c0_44 = arith.constant 0 : index
    %c0_45 = arith.constant 0 : index
    %178 = vector.load %arg1[%c2, %c0_44, %c0_45] : memref<8x4x1xf32, #tpu.memory_space<vmem>>, vector<1x4x1xf32>
    %179 = vector.shape_cast %178 : vector<1x4x1xf32> to vector<4x1xf32>
    %c5 = arith.constant 5 : index
    %c0_46 = arith.constant 0 : index
    %c0_47 = arith.constant 0 : index
    %180 = vector.load %arg1[%c5, %c0_46, %c0_47] : memref<8x4x1xf32, #tpu.memory_space<vmem>>, vector<1x4x1xf32>
    %181 = vector.shape_cast %180 : vector<1x4x1xf32> to vector<4x1xf32>
    %cst_48 = arith.constant dense<0.000000e+00> : vector<4x24xf32>
    %182 = tpu.matmul %168, %6, %cst_48 {dimension_numbers = #tpu.dot_dimension_numbers<[1], [0], [0], [1], [0, 0, 1, 1], [], []>} : vector<4x8xf32>, vector<8x24xf32>, vector<4x24xf32> -> vector<4x24xf32>
    %183 = vector.broadcast %8 : vector<1x24xf32> to vector<4x24xf32>
    %184 = arith.addf %182, %183 : vector<4x24xf32>
    %cst_49 = arith.constant dense<0.000000e+00> : vector<4x24xf32>
    %185 = tpu.matmul %175, %7, %cst_49 {dimension_numbers = #tpu.dot_dimension_numbers<[1], [0], [0], [1], [0, 0, 1, 1], [], []>} : vector<4x8xf32>, vector<8x24xf32>, vector<4x24xf32> -> vector<4x24xf32>
    %186 = vector.broadcast %9 : vector<1x24xf32> to vector<4x24xf32>
    %187 = arith.addf %185, %186 : vector<4x24xf32>
    %188 = vector.extract_strided_slice %176 {offsets = [0, 0], sizes = [4, 8], strides = [1, 1]} : vector<4x24xf32> to vector<4x8xf32>
    %189 = vector.extract_strided_slice %184 {offsets = [0, 0], sizes = [4, 8], strides = [1, 1]} : vector<4x24xf32> to vector<4x8xf32>
    %190 = arith.addf %188, %189 : vector<4x8xf32>
    %191 = arith.negf %190 : vector<4x8xf32>
    %192 = math.exp %191 : vector<4x8xf32>
    %cst_50 = arith.constant 1.000000e+00 : f32
    %193 = vector.broadcast %cst_50 : f32 to vector<4x8xf32>
    %194 = arith.addf %193, %192 : vector<4x8xf32>
    %195 = arith.divf %193, %194 : vector<4x8xf32>
    %196 = vector.extract_strided_slice %176 {offsets = [0, 8], sizes = [4, 8], strides = [1, 1]} : vector<4x24xf32> to vector<4x8xf32>
    %197 = vector.extract_strided_slice %184 {offsets = [0, 8], sizes = [4, 8], strides = [1, 1]} : vector<4x24xf32> to vector<4x8xf32>
    %198 = arith.addf %196, %197 : vector<4x8xf32>
    %199 = arith.negf %198 : vector<4x8xf32>
    %200 = math.exp %199 : vector<4x8xf32>
    %cst_51 = arith.constant 1.000000e+00 : f32
    %201 = vector.broadcast %cst_51 : f32 to vector<4x8xf32>
    %202 = arith.addf %201, %200 : vector<4x8xf32>
    %203 = arith.divf %201, %202 : vector<4x8xf32>
    %204 = vector.extract_strided_slice %176 {offsets = [0, 16], sizes = [4, 8], strides = [1, 1]} : vector<4x24xf32> to vector<4x8xf32>
    %205 = vector.extract_strided_slice %184 {offsets = [0, 16], sizes = [4, 8], strides = [1, 1]} : vector<4x24xf32> to vector<4x8xf32>
    %206 = arith.mulf %195, %205 : vector<4x8xf32>
    %207 = arith.addf %204, %206 : vector<4x8xf32>
    %208 = math.tanh %207 : vector<4x8xf32>
    %cst_52 = arith.constant 1.000000e+00 : f32
    %209 = vector.broadcast %cst_52 : f32 to vector<4x8xf32>
    %210 = arith.subf %209, %203 : vector<4x8xf32>
    %211 = arith.mulf %210, %208 : vector<4x8xf32>
    %212 = arith.mulf %203, %168 : vector<4x8xf32>
    %213 = arith.addf %211, %212 : vector<4x8xf32>
    %214 = vector.extract_strided_slice %177 {offsets = [0, 0], sizes = [4, 8], strides = [1, 1]} : vector<4x24xf32> to vector<4x8xf32>
    %215 = vector.extract_strided_slice %187 {offsets = [0, 0], sizes = [4, 8], strides = [1, 1]} : vector<4x24xf32> to vector<4x8xf32>
    %216 = arith.addf %214, %215 : vector<4x8xf32>
    %217 = arith.negf %216 : vector<4x8xf32>
    %218 = math.exp %217 : vector<4x8xf32>
    %cst_53 = arith.constant 1.000000e+00 : f32
    %219 = vector.broadcast %cst_53 : f32 to vector<4x8xf32>
    %220 = arith.addf %219, %218 : vector<4x8xf32>
    %221 = arith.divf %219, %220 : vector<4x8xf32>
    %222 = vector.extract_strided_slice %177 {offsets = [0, 8], sizes = [4, 8], strides = [1, 1]} : vector<4x24xf32> to vector<4x8xf32>
    %223 = vector.extract_strided_slice %187 {offsets = [0, 8], sizes = [4, 8], strides = [1, 1]} : vector<4x24xf32> to vector<4x8xf32>
    %224 = arith.addf %222, %223 : vector<4x8xf32>
    %225 = arith.negf %224 : vector<4x8xf32>
    %226 = math.exp %225 : vector<4x8xf32>
    %cst_54 = arith.constant 1.000000e+00 : f32
    %227 = vector.broadcast %cst_54 : f32 to vector<4x8xf32>
    %228 = arith.addf %227, %226 : vector<4x8xf32>
    %229 = arith.divf %227, %228 : vector<4x8xf32>
    %230 = vector.extract_strided_slice %177 {offsets = [0, 16], sizes = [4, 8], strides = [1, 1]} : vector<4x24xf32> to vector<4x8xf32>
    %231 = vector.extract_strided_slice %187 {offsets = [0, 16], sizes = [4, 8], strides = [1, 1]} : vector<4x24xf32> to vector<4x8xf32>
    %232 = arith.mulf %221, %231 : vector<4x8xf32>
    %233 = arith.addf %230, %232 : vector<4x8xf32>
    %234 = math.tanh %233 : vector<4x8xf32>
    %cst_55 = arith.constant 1.000000e+00 : f32
    %235 = vector.broadcast %cst_55 : f32 to vector<4x8xf32>
    %236 = arith.subf %235, %229 : vector<4x8xf32>
    %237 = arith.mulf %236, %234 : vector<4x8xf32>
    %238 = arith.mulf %229, %175 : vector<4x8xf32>
    %239 = arith.addf %237, %238 : vector<4x8xf32>
    %240 = vector.broadcast %179 : vector<4x1xf32> to vector<4x8xf32>
    %241 = arith.mulf %240, %213 : vector<4x8xf32>
    %242 = vector.broadcast %181 : vector<4x1xf32> to vector<4x8xf32>
    %243 = arith.mulf %242, %239 : vector<4x8xf32>
    %244 = vector.broadcast %179 : vector<4x1xf32> to vector<4x8xf32>
    %245 = arith.mulf %244, %213 : vector<4x8xf32>
    %cst_56 = arith.constant 1.000000e+00 : f32
    %246 = vector.broadcast %cst_56 : f32 to vector<4x1xf32>
    %247 = arith.subf %246, %179 : vector<4x1xf32>
    %248 = vector.broadcast %247 : vector<4x1xf32> to vector<4x8xf32>
    %249 = arith.mulf %248, %168 : vector<4x8xf32>
    %250 = arith.addf %245, %249 : vector<4x8xf32>
    %251 = vector.broadcast %181 : vector<4x1xf32> to vector<4x8xf32>
    %252 = arith.mulf %251, %239 : vector<4x8xf32>
    %cst_57 = arith.constant 1.000000e+00 : f32
    %253 = vector.broadcast %cst_57 : f32 to vector<4x1xf32>
    %254 = arith.subf %253, %181 : vector<4x1xf32>
    %255 = vector.broadcast %254 : vector<4x1xf32> to vector<4x8xf32>
    %256 = arith.mulf %255, %175 : vector<4x8xf32>
    %257 = arith.addf %252, %256 : vector<4x8xf32>
    %258 = vector.extract_strided_slice %5 {offsets = [12, 0], sizes = [4, 24], strides = [1, 1]} : vector<32x48xf32> to vector<4x24xf32>
    %259 = vector.extract_strided_slice %5 {offsets = [16, 24], sizes = [4, 24], strides = [1, 1]} : vector<32x48xf32> to vector<4x24xf32>
    %c3 = arith.constant 3 : index
    %c0_58 = arith.constant 0 : index
    %c0_59 = arith.constant 0 : index
    %260 = vector.load %arg1[%c3, %c0_58, %c0_59] : memref<8x4x1xf32, #tpu.memory_space<vmem>>, vector<1x4x1xf32>
    %261 = vector.shape_cast %260 : vector<1x4x1xf32> to vector<4x1xf32>
    %c4 = arith.constant 4 : index
    %c0_60 = arith.constant 0 : index
    %c0_61 = arith.constant 0 : index
    %262 = vector.load %arg1[%c4, %c0_60, %c0_61] : memref<8x4x1xf32, #tpu.memory_space<vmem>>, vector<1x4x1xf32>
    %263 = vector.shape_cast %262 : vector<1x4x1xf32> to vector<4x1xf32>
    %cst_62 = arith.constant dense<0.000000e+00> : vector<4x24xf32>
    %264 = tpu.matmul %250, %6, %cst_62 {dimension_numbers = #tpu.dot_dimension_numbers<[1], [0], [0], [1], [0, 0, 1, 1], [], []>} : vector<4x8xf32>, vector<8x24xf32>, vector<4x24xf32> -> vector<4x24xf32>
    %265 = vector.broadcast %8 : vector<1x24xf32> to vector<4x24xf32>
    %266 = arith.addf %264, %265 : vector<4x24xf32>
    %cst_63 = arith.constant dense<0.000000e+00> : vector<4x24xf32>
    %267 = tpu.matmul %257, %7, %cst_63 {dimension_numbers = #tpu.dot_dimension_numbers<[1], [0], [0], [1], [0, 0, 1, 1], [], []>} : vector<4x8xf32>, vector<8x24xf32>, vector<4x24xf32> -> vector<4x24xf32>
    %268 = vector.broadcast %9 : vector<1x24xf32> to vector<4x24xf32>
    %269 = arith.addf %267, %268 : vector<4x24xf32>
    %270 = vector.extract_strided_slice %258 {offsets = [0, 0], sizes = [4, 8], strides = [1, 1]} : vector<4x24xf32> to vector<4x8xf32>
    %271 = vector.extract_strided_slice %266 {offsets = [0, 0], sizes = [4, 8], strides = [1, 1]} : vector<4x24xf32> to vector<4x8xf32>
    %272 = arith.addf %270, %271 : vector<4x8xf32>
    %273 = arith.negf %272 : vector<4x8xf32>
    %274 = math.exp %273 : vector<4x8xf32>
    %cst_64 = arith.constant 1.000000e+00 : f32
    %275 = vector.broadcast %cst_64 : f32 to vector<4x8xf32>
    %276 = arith.addf %275, %274 : vector<4x8xf32>
    %277 = arith.divf %275, %276 : vector<4x8xf32>
    %278 = vector.extract_strided_slice %258 {offsets = [0, 8], sizes = [4, 8], strides = [1, 1]} : vector<4x24xf32> to vector<4x8xf32>
    %279 = vector.extract_strided_slice %266 {offsets = [0, 8], sizes = [4, 8], strides = [1, 1]} : vector<4x24xf32> to vector<4x8xf32>
    %280 = arith.addf %278, %279 : vector<4x8xf32>
    %281 = arith.negf %280 : vector<4x8xf32>
    %282 = math.exp %281 : vector<4x8xf32>
    %cst_65 = arith.constant 1.000000e+00 : f32
    %283 = vector.broadcast %cst_65 : f32 to vector<4x8xf32>
    %284 = arith.addf %283, %282 : vector<4x8xf32>
    %285 = arith.divf %283, %284 : vector<4x8xf32>
    %286 = vector.extract_strided_slice %258 {offsets = [0, 16], sizes = [4, 8], strides = [1, 1]} : vector<4x24xf32> to vector<4x8xf32>
    %287 = vector.extract_strided_slice %266 {offsets = [0, 16], sizes = [4, 8], strides = [1, 1]} : vector<4x24xf32> to vector<4x8xf32>
    %288 = arith.mulf %277, %287 : vector<4x8xf32>
    %289 = arith.addf %286, %288 : vector<4x8xf32>
    %290 = math.tanh %289 : vector<4x8xf32>
    %cst_66 = arith.constant 1.000000e+00 : f32
    %291 = vector.broadcast %cst_66 : f32 to vector<4x8xf32>
    %292 = arith.subf %291, %285 : vector<4x8xf32>
    %293 = arith.mulf %292, %290 : vector<4x8xf32>
    %294 = arith.mulf %285, %250 : vector<4x8xf32>
    %295 = arith.addf %293, %294 : vector<4x8xf32>
    %296 = vector.extract_strided_slice %259 {offsets = [0, 0], sizes = [4, 8], strides = [1, 1]} : vector<4x24xf32> to vector<4x8xf32>
    %297 = vector.extract_strided_slice %269 {offsets = [0, 0], sizes = [4, 8], strides = [1, 1]} : vector<4x24xf32> to vector<4x8xf32>
    %298 = arith.addf %296, %297 : vector<4x8xf32>
    %299 = arith.negf %298 : vector<4x8xf32>
    %300 = math.exp %299 : vector<4x8xf32>
    %cst_67 = arith.constant 1.000000e+00 : f32
    %301 = vector.broadcast %cst_67 : f32 to vector<4x8xf32>
    %302 = arith.addf %301, %300 : vector<4x8xf32>
    %303 = arith.divf %301, %302 : vector<4x8xf32>
    %304 = vector.extract_strided_slice %259 {offsets = [0, 8], sizes = [4, 8], strides = [1, 1]} : vector<4x24xf32> to vector<4x8xf32>
    %305 = vector.extract_strided_slice %269 {offsets = [0, 8], sizes = [4, 8], strides = [1, 1]} : vector<4x24xf32> to vector<4x8xf32>
    %306 = arith.addf %304, %305 : vector<4x8xf32>
    %307 = arith.negf %306 : vector<4x8xf32>
    %308 = math.exp %307 : vector<4x8xf32>
    %cst_68 = arith.constant 1.000000e+00 : f32
    %309 = vector.broadcast %cst_68 : f32 to vector<4x8xf32>
    %310 = arith.addf %309, %308 : vector<4x8xf32>
    %311 = arith.divf %309, %310 : vector<4x8xf32>
    %312 = vector.extract_strided_slice %259 {offsets = [0, 16], sizes = [4, 8], strides = [1, 1]} : vector<4x24xf32> to vector<4x8xf32>
    %313 = vector.extract_strided_slice %269 {offsets = [0, 16], sizes = [4, 8], strides = [1, 1]} : vector<4x24xf32> to vector<4x8xf32>
    %314 = arith.mulf %303, %313 : vector<4x8xf32>
    %315 = arith.addf %312, %314 : vector<4x8xf32>
    %316 = math.tanh %315 : vector<4x8xf32>
    %cst_69 = arith.constant 1.000000e+00 : f32
    %317 = vector.broadcast %cst_69 : f32 to vector<4x8xf32>
    %318 = arith.subf %317, %311 : vector<4x8xf32>
    %319 = arith.mulf %318, %316 : vector<4x8xf32>
    %320 = arith.mulf %311, %257 : vector<4x8xf32>
    %321 = arith.addf %319, %320 : vector<4x8xf32>
    %322 = vector.broadcast %261 : vector<4x1xf32> to vector<4x8xf32>
    %323 = arith.mulf %322, %295 : vector<4x8xf32>
    %324 = vector.broadcast %263 : vector<4x1xf32> to vector<4x8xf32>
    %325 = arith.mulf %324, %321 : vector<4x8xf32>
    %326 = vector.broadcast %261 : vector<4x1xf32> to vector<4x8xf32>
    %327 = arith.mulf %326, %295 : vector<4x8xf32>
    %cst_70 = arith.constant 1.000000e+00 : f32
    %328 = vector.broadcast %cst_70 : f32 to vector<4x1xf32>
    %329 = arith.subf %328, %261 : vector<4x1xf32>
    %330 = vector.broadcast %329 : vector<4x1xf32> to vector<4x8xf32>
    %331 = arith.mulf %330, %250 : vector<4x8xf32>
    %332 = arith.addf %327, %331 : vector<4x8xf32>
    %333 = vector.broadcast %263 : vector<4x1xf32> to vector<4x8xf32>
    %334 = arith.mulf %333, %321 : vector<4x8xf32>
    %cst_71 = arith.constant 1.000000e+00 : f32
    %335 = vector.broadcast %cst_71 : f32 to vector<4x1xf32>
    %336 = arith.subf %335, %263 : vector<4x1xf32>
    %337 = vector.broadcast %336 : vector<4x1xf32> to vector<4x8xf32>
    %338 = arith.mulf %337, %257 : vector<4x8xf32>
    %339 = arith.addf %334, %338 : vector<4x8xf32>
    %340 = vector.extract_strided_slice %5 {offsets = [16, 0], sizes = [4, 24], strides = [1, 1]} : vector<32x48xf32> to vector<4x24xf32>
    %341 = vector.extract_strided_slice %5 {offsets = [12, 24], sizes = [4, 24], strides = [1, 1]} : vector<32x48xf32> to vector<4x24xf32>
    %c4_72 = arith.constant 4 : index
    %c0_73 = arith.constant 0 : index
    %c0_74 = arith.constant 0 : index
    %342 = vector.load %arg1[%c4_72, %c0_73, %c0_74] : memref<8x4x1xf32, #tpu.memory_space<vmem>>, vector<1x4x1xf32>
    %343 = vector.shape_cast %342 : vector<1x4x1xf32> to vector<4x1xf32>
    %c3_75 = arith.constant 3 : index
    %c0_76 = arith.constant 0 : index
    %c0_77 = arith.constant 0 : index
    %344 = vector.load %arg1[%c3_75, %c0_76, %c0_77] : memref<8x4x1xf32, #tpu.memory_space<vmem>>, vector<1x4x1xf32>
    %345 = vector.shape_cast %344 : vector<1x4x1xf32> to vector<4x1xf32>
    %cst_78 = arith.constant dense<0.000000e+00> : vector<4x24xf32>
    %346 = tpu.matmul %332, %6, %cst_78 {dimension_numbers = #tpu.dot_dimension_numbers<[1], [0], [0], [1], [0, 0, 1, 1], [], []>} : vector<4x8xf32>, vector<8x24xf32>, vector<4x24xf32> -> vector<4x24xf32>
    %347 = vector.broadcast %8 : vector<1x24xf32> to vector<4x24xf32>
    %348 = arith.addf %346, %347 : vector<4x24xf32>
    %cst_79 = arith.constant dense<0.000000e+00> : vector<4x24xf32>
    %349 = tpu.matmul %339, %7, %cst_79 {dimension_numbers = #tpu.dot_dimension_numbers<[1], [0], [0], [1], [0, 0, 1, 1], [], []>} : vector<4x8xf32>, vector<8x24xf32>, vector<4x24xf32> -> vector<4x24xf32>
    %350 = vector.broadcast %9 : vector<1x24xf32> to vector<4x24xf32>
    %351 = arith.addf %349, %350 : vector<4x24xf32>
    %352 = vector.extract_strided_slice %340 {offsets = [0, 0], sizes = [4, 8], strides = [1, 1]} : vector<4x24xf32> to vector<4x8xf32>
    %353 = vector.extract_strided_slice %348 {offsets = [0, 0], sizes = [4, 8], strides = [1, 1]} : vector<4x24xf32> to vector<4x8xf32>
    %354 = arith.addf %352, %353 : vector<4x8xf32>
    %355 = arith.negf %354 : vector<4x8xf32>
    %356 = math.exp %355 : vector<4x8xf32>
    %cst_80 = arith.constant 1.000000e+00 : f32
    %357 = vector.broadcast %cst_80 : f32 to vector<4x8xf32>
    %358 = arith.addf %357, %356 : vector<4x8xf32>
    %359 = arith.divf %357, %358 : vector<4x8xf32>
    %360 = vector.extract_strided_slice %340 {offsets = [0, 8], sizes = [4, 8], strides = [1, 1]} : vector<4x24xf32> to vector<4x8xf32>
    %361 = vector.extract_strided_slice %348 {offsets = [0, 8], sizes = [4, 8], strides = [1, 1]} : vector<4x24xf32> to vector<4x8xf32>
    %362 = arith.addf %360, %361 : vector<4x8xf32>
    %363 = arith.negf %362 : vector<4x8xf32>
    %364 = math.exp %363 : vector<4x8xf32>
    %cst_81 = arith.constant 1.000000e+00 : f32
    %365 = vector.broadcast %cst_81 : f32 to vector<4x8xf32>
    %366 = arith.addf %365, %364 : vector<4x8xf32>
    %367 = arith.divf %365, %366 : vector<4x8xf32>
    %368 = vector.extract_strided_slice %340 {offsets = [0, 16], sizes = [4, 8], strides = [1, 1]} : vector<4x24xf32> to vector<4x8xf32>
    %369 = vector.extract_strided_slice %348 {offsets = [0, 16], sizes = [4, 8], strides = [1, 1]} : vector<4x24xf32> to vector<4x8xf32>
    %370 = arith.mulf %359, %369 : vector<4x8xf32>
    %371 = arith.addf %368, %370 : vector<4x8xf32>
    %372 = math.tanh %371 : vector<4x8xf32>
    %cst_82 = arith.constant 1.000000e+00 : f32
    %373 = vector.broadcast %cst_82 : f32 to vector<4x8xf32>
    %374 = arith.subf %373, %367 : vector<4x8xf32>
    %375 = arith.mulf %374, %372 : vector<4x8xf32>
    %376 = arith.mulf %367, %332 : vector<4x8xf32>
    %377 = arith.addf %375, %376 : vector<4x8xf32>
    %378 = vector.extract_strided_slice %341 {offsets = [0, 0], sizes = [4, 8], strides = [1, 1]} : vector<4x24xf32> to vector<4x8xf32>
    %379 = vector.extract_strided_slice %351 {offsets = [0, 0], sizes = [4, 8], strides = [1, 1]} : vector<4x24xf32> to vector<4x8xf32>
    %380 = arith.addf %378, %379 : vector<4x8xf32>
    %381 = arith.negf %380 : vector<4x8xf32>
    %382 = math.exp %381 : vector<4x8xf32>
    %cst_83 = arith.constant 1.000000e+00 : f32
    %383 = vector.broadcast %cst_83 : f32 to vector<4x8xf32>
    %384 = arith.addf %383, %382 : vector<4x8xf32>
    %385 = arith.divf %383, %384 : vector<4x8xf32>
    %386 = vector.extract_strided_slice %341 {offsets = [0, 8], sizes = [4, 8], strides = [1, 1]} : vector<4x24xf32> to vector<4x8xf32>
    %387 = vector.extract_strided_slice %351 {offsets = [0, 8], sizes = [4, 8], strides = [1, 1]} : vector<4x24xf32> to vector<4x8xf32>
    %388 = arith.addf %386, %387 : vector<4x8xf32>
    %389 = arith.negf %388 : vector<4x8xf32>
    %390 = math.exp %389 : vector<4x8xf32>
    %cst_84 = arith.constant 1.000000e+00 : f32
    %391 = vector.broadcast %cst_84 : f32 to vector<4x8xf32>
    %392 = arith.addf %391, %390 : vector<4x8xf32>
    %393 = arith.divf %391, %392 : vector<4x8xf32>
    %394 = vector.extract_strided_slice %341 {offsets = [0, 16], sizes = [4, 8], strides = [1, 1]} : vector<4x24xf32> to vector<4x8xf32>
    %395 = vector.extract_strided_slice %351 {offsets = [0, 16], sizes = [4, 8], strides = [1, 1]} : vector<4x24xf32> to vector<4x8xf32>
    %396 = arith.mulf %385, %395 : vector<4x8xf32>
    %397 = arith.addf %394, %396 : vector<4x8xf32>
    %398 = math.tanh %397 : vector<4x8xf32>
    %cst_85 = arith.constant 1.000000e+00 : f32
    %399 = vector.broadcast %cst_85 : f32 to vector<4x8xf32>
    %400 = arith.subf %399, %393 : vector<4x8xf32>
    %401 = arith.mulf %400, %398 : vector<4x8xf32>
    %402 = arith.mulf %393, %339 : vector<4x8xf32>
    %403 = arith.addf %401, %402 : vector<4x8xf32>
    %404 = vector.broadcast %343 : vector<4x1xf32> to vector<4x8xf32>
    %405 = arith.mulf %404, %377 : vector<4x8xf32>
    %406 = vector.broadcast %345 : vector<4x1xf32> to vector<4x8xf32>
    %407 = arith.mulf %406, %403 : vector<4x8xf32>
    %408 = vector.broadcast %343 : vector<4x1xf32> to vector<4x8xf32>
    %409 = arith.mulf %408, %377 : vector<4x8xf32>
    %cst_86 = arith.constant 1.000000e+00 : f32
    %410 = vector.broadcast %cst_86 : f32 to vector<4x1xf32>
    %411 = arith.subf %410, %343 : vector<4x1xf32>
    %412 = vector.broadcast %411 : vector<4x1xf32> to vector<4x8xf32>
    %413 = arith.mulf %412, %332 : vector<4x8xf32>
    %414 = arith.addf %409, %413 : vector<4x8xf32>
    %415 = vector.broadcast %345 : vector<4x1xf32> to vector<4x8xf32>
    %416 = arith.mulf %415, %403 : vector<4x8xf32>
    %cst_87 = arith.constant 1.000000e+00 : f32
    %417 = vector.broadcast %cst_87 : f32 to vector<4x1xf32>
    %418 = arith.subf %417, %345 : vector<4x1xf32>
    %419 = vector.broadcast %418 : vector<4x1xf32> to vector<4x8xf32>
    %420 = arith.mulf %419, %339 : vector<4x8xf32>
    %421 = arith.addf %416, %420 : vector<4x8xf32>
    %422 = vector.extract_strided_slice %5 {offsets = [20, 0], sizes = [4, 24], strides = [1, 1]} : vector<32x48xf32> to vector<4x24xf32>
    %423 = vector.extract_strided_slice %5 {offsets = [8, 24], sizes = [4, 24], strides = [1, 1]} : vector<32x48xf32> to vector<4x24xf32>
    %c5_88 = arith.constant 5 : index
    %c0_89 = arith.constant 0 : index
    %c0_90 = arith.constant 0 : index
    %424 = vector.load %arg1[%c5_88, %c0_89, %c0_90] : memref<8x4x1xf32, #tpu.memory_space<vmem>>, vector<1x4x1xf32>
    %425 = vector.shape_cast %424 : vector<1x4x1xf32> to vector<4x1xf32>
    %c2_91 = arith.constant 2 : index
    %c0_92 = arith.constant 0 : index
    %c0_93 = arith.constant 0 : index
    %426 = vector.load %arg1[%c2_91, %c0_92, %c0_93] : memref<8x4x1xf32, #tpu.memory_space<vmem>>, vector<1x4x1xf32>
    %427 = vector.shape_cast %426 : vector<1x4x1xf32> to vector<4x1xf32>
    %cst_94 = arith.constant dense<0.000000e+00> : vector<4x24xf32>
    %428 = tpu.matmul %414, %6, %cst_94 {dimension_numbers = #tpu.dot_dimension_numbers<[1], [0], [0], [1], [0, 0, 1, 1], [], []>} : vector<4x8xf32>, vector<8x24xf32>, vector<4x24xf32> -> vector<4x24xf32>
    %429 = vector.broadcast %8 : vector<1x24xf32> to vector<4x24xf32>
    %430 = arith.addf %428, %429 : vector<4x24xf32>
    %cst_95 = arith.constant dense<0.000000e+00> : vector<4x24xf32>
    %431 = tpu.matmul %421, %7, %cst_95 {dimension_numbers = #tpu.dot_dimension_numbers<[1], [0], [0], [1], [0, 0, 1, 1], [], []>} : vector<4x8xf32>, vector<8x24xf32>, vector<4x24xf32> -> vector<4x24xf32>
    %432 = vector.broadcast %9 : vector<1x24xf32> to vector<4x24xf32>
    %433 = arith.addf %431, %432 : vector<4x24xf32>
    %434 = vector.extract_strided_slice %422 {offsets = [0, 0], sizes = [4, 8], strides = [1, 1]} : vector<4x24xf32> to vector<4x8xf32>
    %435 = vector.extract_strided_slice %430 {offsets = [0, 0], sizes = [4, 8], strides = [1, 1]} : vector<4x24xf32> to vector<4x8xf32>
    %436 = arith.addf %434, %435 : vector<4x8xf32>
    %437 = arith.negf %436 : vector<4x8xf32>
    %438 = math.exp %437 : vector<4x8xf32>
    %cst_96 = arith.constant 1.000000e+00 : f32
    %439 = vector.broadcast %cst_96 : f32 to vector<4x8xf32>
    %440 = arith.addf %439, %438 : vector<4x8xf32>
    %441 = arith.divf %439, %440 : vector<4x8xf32>
    %442 = vector.extract_strided_slice %422 {offsets = [0, 8], sizes = [4, 8], strides = [1, 1]} : vector<4x24xf32> to vector<4x8xf32>
    %443 = vector.extract_strided_slice %430 {offsets = [0, 8], sizes = [4, 8], strides = [1, 1]} : vector<4x24xf32> to vector<4x8xf32>
    %444 = arith.addf %442, %443 : vector<4x8xf32>
    %445 = arith.negf %444 : vector<4x8xf32>
    %446 = math.exp %445 : vector<4x8xf32>
    %cst_97 = arith.constant 1.000000e+00 : f32
    %447 = vector.broadcast %cst_97 : f32 to vector<4x8xf32>
    %448 = arith.addf %447, %446 : vector<4x8xf32>
    %449 = arith.divf %447, %448 : vector<4x8xf32>
    %450 = vector.extract_strided_slice %422 {offsets = [0, 16], sizes = [4, 8], strides = [1, 1]} : vector<4x24xf32> to vector<4x8xf32>
    %451 = vector.extract_strided_slice %430 {offsets = [0, 16], sizes = [4, 8], strides = [1, 1]} : vector<4x24xf32> to vector<4x8xf32>
    %452 = arith.mulf %441, %451 : vector<4x8xf32>
    %453 = arith.addf %450, %452 : vector<4x8xf32>
    %454 = math.tanh %453 : vector<4x8xf32>
    %cst_98 = arith.constant 1.000000e+00 : f32
    %455 = vector.broadcast %cst_98 : f32 to vector<4x8xf32>
    %456 = arith.subf %455, %449 : vector<4x8xf32>
    %457 = arith.mulf %456, %454 : vector<4x8xf32>
    %458 = arith.mulf %449, %414 : vector<4x8xf32>
    %459 = arith.addf %457, %458 : vector<4x8xf32>
    %460 = vector.extract_strided_slice %423 {offsets = [0, 0], sizes = [4, 8], strides = [1, 1]} : vector<4x24xf32> to vector<4x8xf32>
    %461 = vector.extract_strided_slice %433 {offsets = [0, 0], sizes = [4, 8], strides = [1, 1]} : vector<4x24xf32> to vector<4x8xf32>
    %462 = arith.addf %460, %461 : vector<4x8xf32>
    %463 = arith.negf %462 : vector<4x8xf32>
    %464 = math.exp %463 : vector<4x8xf32>
    %cst_99 = arith.constant 1.000000e+00 : f32
    %465 = vector.broadcast %cst_99 : f32 to vector<4x8xf32>
    %466 = arith.addf %465, %464 : vector<4x8xf32>
    %467 = arith.divf %465, %466 : vector<4x8xf32>
    %468 = vector.extract_strided_slice %423 {offsets = [0, 8], sizes = [4, 8], strides = [1, 1]} : vector<4x24xf32> to vector<4x8xf32>
    %469 = vector.extract_strided_slice %433 {offsets = [0, 8], sizes = [4, 8], strides = [1, 1]} : vector<4x24xf32> to vector<4x8xf32>
    %470 = arith.addf %468, %469 : vector<4x8xf32>
    %471 = arith.negf %470 : vector<4x8xf32>
    %472 = math.exp %471 : vector<4x8xf32>
    %cst_100 = arith.constant 1.000000e+00 : f32
    %473 = vector.broadcast %cst_100 : f32 to vector<4x8xf32>
    %474 = arith.addf %473, %472 : vector<4x8xf32>
    %475 = arith.divf %473, %474 : vector<4x8xf32>
    %476 = vector.extract_strided_slice %423 {offsets = [0, 16], sizes = [4, 8], strides = [1, 1]} : vector<4x24xf32> to vector<4x8xf32>
    %477 = vector.extract_strided_slice %433 {offsets = [0, 16], sizes = [4, 8], strides = [1, 1]} : vector<4x24xf32> to vector<4x8xf32>
    %478 = arith.mulf %467, %477 : vector<4x8xf32>
    %479 = arith.addf %476, %478 : vector<4x8xf32>
    %480 = math.tanh %479 : vector<4x8xf32>
    %cst_101 = arith.constant 1.000000e+00 : f32
    %481 = vector.broadcast %cst_101 : f32 to vector<4x8xf32>
    %482 = arith.subf %481, %475 : vector<4x8xf32>
    %483 = arith.mulf %482, %480 : vector<4x8xf32>
    %484 = arith.mulf %475, %421 : vector<4x8xf32>
    %485 = arith.addf %483, %484 : vector<4x8xf32>
    %486 = vector.broadcast %425 : vector<4x1xf32> to vector<4x8xf32>
    %487 = arith.mulf %486, %459 : vector<4x8xf32>
    %488 = vector.broadcast %427 : vector<4x1xf32> to vector<4x8xf32>
    %489 = arith.mulf %488, %485 : vector<4x8xf32>
    %490 = vector.broadcast %425 : vector<4x1xf32> to vector<4x8xf32>
    %491 = arith.mulf %490, %459 : vector<4x8xf32>
    %cst_102 = arith.constant 1.000000e+00 : f32
    %492 = vector.broadcast %cst_102 : f32 to vector<4x1xf32>
    %493 = arith.subf %492, %425 : vector<4x1xf32>
    %494 = vector.broadcast %493 : vector<4x1xf32> to vector<4x8xf32>
    %495 = arith.mulf %494, %414 : vector<4x8xf32>
    %496 = arith.addf %491, %495 : vector<4x8xf32>
    %497 = vector.broadcast %427 : vector<4x1xf32> to vector<4x8xf32>
    %498 = arith.mulf %497, %485 : vector<4x8xf32>
    %cst_103 = arith.constant 1.000000e+00 : f32
    %499 = vector.broadcast %cst_103 : f32 to vector<4x1xf32>
    %500 = arith.subf %499, %427 : vector<4x1xf32>
    %501 = vector.broadcast %500 : vector<4x1xf32> to vector<4x8xf32>
    %502 = arith.mulf %501, %421 : vector<4x8xf32>
    %503 = arith.addf %498, %502 : vector<4x8xf32>
    %504 = vector.extract_strided_slice %5 {offsets = [24, 0], sizes = [4, 24], strides = [1, 1]} : vector<32x48xf32> to vector<4x24xf32>
    %505 = vector.extract_strided_slice %5 {offsets = [4, 24], sizes = [4, 24], strides = [1, 1]} : vector<32x48xf32> to vector<4x24xf32>
    %c6_104 = arith.constant 6 : index
    %c0_105 = arith.constant 0 : index
    %c0_106 = arith.constant 0 : index
    %506 = vector.load %arg1[%c6_104, %c0_105, %c0_106] : memref<8x4x1xf32, #tpu.memory_space<vmem>>, vector<1x4x1xf32>
    %507 = vector.shape_cast %506 : vector<1x4x1xf32> to vector<4x1xf32>
    %c1_107 = arith.constant 1 : index
    %c0_108 = arith.constant 0 : index
    %c0_109 = arith.constant 0 : index
    %508 = vector.load %arg1[%c1_107, %c0_108, %c0_109] : memref<8x4x1xf32, #tpu.memory_space<vmem>>, vector<1x4x1xf32>
    %509 = vector.shape_cast %508 : vector<1x4x1xf32> to vector<4x1xf32>
    %cst_110 = arith.constant dense<0.000000e+00> : vector<4x24xf32>
    %510 = tpu.matmul %496, %6, %cst_110 {dimension_numbers = #tpu.dot_dimension_numbers<[1], [0], [0], [1], [0, 0, 1, 1], [], []>} : vector<4x8xf32>, vector<8x24xf32>, vector<4x24xf32> -> vector<4x24xf32>
    %511 = vector.broadcast %8 : vector<1x24xf32> to vector<4x24xf32>
    %512 = arith.addf %510, %511 : vector<4x24xf32>
    %cst_111 = arith.constant dense<0.000000e+00> : vector<4x24xf32>
    %513 = tpu.matmul %503, %7, %cst_111 {dimension_numbers = #tpu.dot_dimension_numbers<[1], [0], [0], [1], [0, 0, 1, 1], [], []>} : vector<4x8xf32>, vector<8x24xf32>, vector<4x24xf32> -> vector<4x24xf32>
    %514 = vector.broadcast %9 : vector<1x24xf32> to vector<4x24xf32>
    %515 = arith.addf %513, %514 : vector<4x24xf32>
    %516 = vector.extract_strided_slice %504 {offsets = [0, 0], sizes = [4, 8], strides = [1, 1]} : vector<4x24xf32> to vector<4x8xf32>
    %517 = vector.extract_strided_slice %512 {offsets = [0, 0], sizes = [4, 8], strides = [1, 1]} : vector<4x24xf32> to vector<4x8xf32>
    %518 = arith.addf %516, %517 : vector<4x8xf32>
    %519 = arith.negf %518 : vector<4x8xf32>
    %520 = math.exp %519 : vector<4x8xf32>
    %cst_112 = arith.constant 1.000000e+00 : f32
    %521 = vector.broadcast %cst_112 : f32 to vector<4x8xf32>
    %522 = arith.addf %521, %520 : vector<4x8xf32>
    %523 = arith.divf %521, %522 : vector<4x8xf32>
    %524 = vector.extract_strided_slice %504 {offsets = [0, 8], sizes = [4, 8], strides = [1, 1]} : vector<4x24xf32> to vector<4x8xf32>
    %525 = vector.extract_strided_slice %512 {offsets = [0, 8], sizes = [4, 8], strides = [1, 1]} : vector<4x24xf32> to vector<4x8xf32>
    %526 = arith.addf %524, %525 : vector<4x8xf32>
    %527 = arith.negf %526 : vector<4x8xf32>
    %528 = math.exp %527 : vector<4x8xf32>
    %cst_113 = arith.constant 1.000000e+00 : f32
    %529 = vector.broadcast %cst_113 : f32 to vector<4x8xf32>
    %530 = arith.addf %529, %528 : vector<4x8xf32>
    %531 = arith.divf %529, %530 : vector<4x8xf32>
    %532 = vector.extract_strided_slice %504 {offsets = [0, 16], sizes = [4, 8], strides = [1, 1]} : vector<4x24xf32> to vector<4x8xf32>
    %533 = vector.extract_strided_slice %512 {offsets = [0, 16], sizes = [4, 8], strides = [1, 1]} : vector<4x24xf32> to vector<4x8xf32>
    %534 = arith.mulf %523, %533 : vector<4x8xf32>
    %535 = arith.addf %532, %534 : vector<4x8xf32>
    %536 = math.tanh %535 : vector<4x8xf32>
    %cst_114 = arith.constant 1.000000e+00 : f32
    %537 = vector.broadcast %cst_114 : f32 to vector<4x8xf32>
    %538 = arith.subf %537, %531 : vector<4x8xf32>
    %539 = arith.mulf %538, %536 : vector<4x8xf32>
    %540 = arith.mulf %531, %496 : vector<4x8xf32>
    %541 = arith.addf %539, %540 : vector<4x8xf32>
    %542 = vector.extract_strided_slice %505 {offsets = [0, 0], sizes = [4, 8], strides = [1, 1]} : vector<4x24xf32> to vector<4x8xf32>
    %543 = vector.extract_strided_slice %515 {offsets = [0, 0], sizes = [4, 8], strides = [1, 1]} : vector<4x24xf32> to vector<4x8xf32>
    %544 = arith.addf %542, %543 : vector<4x8xf32>
    %545 = arith.negf %544 : vector<4x8xf32>
    %546 = math.exp %545 : vector<4x8xf32>
    %cst_115 = arith.constant 1.000000e+00 : f32
    %547 = vector.broadcast %cst_115 : f32 to vector<4x8xf32>
    %548 = arith.addf %547, %546 : vector<4x8xf32>
    %549 = arith.divf %547, %548 : vector<4x8xf32>
    %550 = vector.extract_strided_slice %505 {offsets = [0, 8], sizes = [4, 8], strides = [1, 1]} : vector<4x24xf32> to vector<4x8xf32>
    %551 = vector.extract_strided_slice %515 {offsets = [0, 8], sizes = [4, 8], strides = [1, 1]} : vector<4x24xf32> to vector<4x8xf32>
    %552 = arith.addf %550, %551 : vector<4x8xf32>
    %553 = arith.negf %552 : vector<4x8xf32>
    %554 = math.exp %553 : vector<4x8xf32>
    %cst_116 = arith.constant 1.000000e+00 : f32
    %555 = vector.broadcast %cst_116 : f32 to vector<4x8xf32>
    %556 = arith.addf %555, %554 : vector<4x8xf32>
    %557 = arith.divf %555, %556 : vector<4x8xf32>
    %558 = vector.extract_strided_slice %505 {offsets = [0, 16], sizes = [4, 8], strides = [1, 1]} : vector<4x24xf32> to vector<4x8xf32>
    %559 = vector.extract_strided_slice %515 {offsets = [0, 16], sizes = [4, 8], strides = [1, 1]} : vector<4x24xf32> to vector<4x8xf32>
    %560 = arith.mulf %549, %559 : vector<4x8xf32>
    %561 = arith.addf %558, %560 : vector<4x8xf32>
    %562 = math.tanh %561 : vector<4x8xf32>
    %cst_117 = arith.constant 1.000000e+00 : f32
    %563 = vector.broadcast %cst_117 : f32 to vector<4x8xf32>
    %564 = arith.subf %563, %557 : vector<4x8xf32>
    %565 = arith.mulf %564, %562 : vector<4x8xf32>
    %566 = arith.mulf %557, %503 : vector<4x8xf32>
    %567 = arith.addf %565, %566 : vector<4x8xf32>
    %568 = vector.broadcast %507 : vector<4x1xf32> to vector<4x8xf32>
    %569 = arith.mulf %568, %541 : vector<4x8xf32>
    %570 = vector.broadcast %509 : vector<4x1xf32> to vector<4x8xf32>
    %571 = arith.mulf %570, %567 : vector<4x8xf32>
    %572 = vector.broadcast %507 : vector<4x1xf32> to vector<4x8xf32>
    %573 = arith.mulf %572, %541 : vector<4x8xf32>
    %cst_118 = arith.constant 1.000000e+00 : f32
    %574 = vector.broadcast %cst_118 : f32 to vector<4x1xf32>
    %575 = arith.subf %574, %507 : vector<4x1xf32>
    %576 = vector.broadcast %575 : vector<4x1xf32> to vector<4x8xf32>
    %577 = arith.mulf %576, %496 : vector<4x8xf32>
    %578 = arith.addf %573, %577 : vector<4x8xf32>
    %579 = vector.broadcast %509 : vector<4x1xf32> to vector<4x8xf32>
    %580 = arith.mulf %579, %567 : vector<4x8xf32>
    %cst_119 = arith.constant 1.000000e+00 : f32
    %581 = vector.broadcast %cst_119 : f32 to vector<4x1xf32>
    %582 = arith.subf %581, %509 : vector<4x1xf32>
    %583 = vector.broadcast %582 : vector<4x1xf32> to vector<4x8xf32>
    %584 = arith.mulf %583, %503 : vector<4x8xf32>
    %585 = arith.addf %580, %584 : vector<4x8xf32>
    %586 = vector.extract_strided_slice %5 {offsets = [28, 0], sizes = [4, 24], strides = [1, 1]} : vector<32x48xf32> to vector<4x24xf32>
    %587 = vector.extract_strided_slice %5 {offsets = [0, 24], sizes = [4, 24], strides = [1, 1]} : vector<32x48xf32> to vector<4x24xf32>
    %c7_120 = arith.constant 7 : index
    %c0_121 = arith.constant 0 : index
    %c0_122 = arith.constant 0 : index
    %588 = vector.load %arg1[%c7_120, %c0_121, %c0_122] : memref<8x4x1xf32, #tpu.memory_space<vmem>>, vector<1x4x1xf32>
    %589 = vector.shape_cast %588 : vector<1x4x1xf32> to vector<4x1xf32>
    %c0_123 = arith.constant 0 : index
    %c0_124 = arith.constant 0 : index
    %c0_125 = arith.constant 0 : index
    %590 = vector.load %arg1[%c0_123, %c0_124, %c0_125] : memref<8x4x1xf32, #tpu.memory_space<vmem>>, vector<1x4x1xf32>
    %591 = vector.shape_cast %590 : vector<1x4x1xf32> to vector<4x1xf32>
    %cst_126 = arith.constant dense<0.000000e+00> : vector<4x24xf32>
    %592 = tpu.matmul %578, %6, %cst_126 {dimension_numbers = #tpu.dot_dimension_numbers<[1], [0], [0], [1], [0, 0, 1, 1], [], []>} : vector<4x8xf32>, vector<8x24xf32>, vector<4x24xf32> -> vector<4x24xf32>
    %593 = vector.broadcast %8 : vector<1x24xf32> to vector<4x24xf32>
    %594 = arith.addf %592, %593 : vector<4x24xf32>
    %cst_127 = arith.constant dense<0.000000e+00> : vector<4x24xf32>
    %595 = tpu.matmul %585, %7, %cst_127 {dimension_numbers = #tpu.dot_dimension_numbers<[1], [0], [0], [1], [0, 0, 1, 1], [], []>} : vector<4x8xf32>, vector<8x24xf32>, vector<4x24xf32> -> vector<4x24xf32>
    %596 = vector.broadcast %9 : vector<1x24xf32> to vector<4x24xf32>
    %597 = arith.addf %595, %596 : vector<4x24xf32>
    %598 = vector.extract_strided_slice %586 {offsets = [0, 0], sizes = [4, 8], strides = [1, 1]} : vector<4x24xf32> to vector<4x8xf32>
    %599 = vector.extract_strided_slice %594 {offsets = [0, 0], sizes = [4, 8], strides = [1, 1]} : vector<4x24xf32> to vector<4x8xf32>
    %600 = arith.addf %598, %599 : vector<4x8xf32>
    %601 = arith.negf %600 : vector<4x8xf32>
    %602 = math.exp %601 : vector<4x8xf32>
    %cst_128 = arith.constant 1.000000e+00 : f32
    %603 = vector.broadcast %cst_128 : f32 to vector<4x8xf32>
    %604 = arith.addf %603, %602 : vector<4x8xf32>
    %605 = arith.divf %603, %604 : vector<4x8xf32>
    %606 = vector.extract_strided_slice %586 {offsets = [0, 8], sizes = [4, 8], strides = [1, 1]} : vector<4x24xf32> to vector<4x8xf32>
    %607 = vector.extract_strided_slice %594 {offsets = [0, 8], sizes = [4, 8], strides = [1, 1]} : vector<4x24xf32> to vector<4x8xf32>
    %608 = arith.addf %606, %607 : vector<4x8xf32>
    %609 = arith.negf %608 : vector<4x8xf32>
    %610 = math.exp %609 : vector<4x8xf32>
    %cst_129 = arith.constant 1.000000e+00 : f32
    %611 = vector.broadcast %cst_129 : f32 to vector<4x8xf32>
    %612 = arith.addf %611, %610 : vector<4x8xf32>
    %613 = arith.divf %611, %612 : vector<4x8xf32>
    %614 = vector.extract_strided_slice %586 {offsets = [0, 16], sizes = [4, 8], strides = [1, 1]} : vector<4x24xf32> to vector<4x8xf32>
    %615 = vector.extract_strided_slice %594 {offsets = [0, 16], sizes = [4, 8], strides = [1, 1]} : vector<4x24xf32> to vector<4x8xf32>
    %616 = arith.mulf %605, %615 : vector<4x8xf32>
    %617 = arith.addf %614, %616 : vector<4x8xf32>
    %618 = math.tanh %617 : vector<4x8xf32>
    %cst_130 = arith.constant 1.000000e+00 : f32
    %619 = vector.broadcast %cst_130 : f32 to vector<4x8xf32>
    %620 = arith.subf %619, %613 : vector<4x8xf32>
    %621 = arith.mulf %620, %618 : vector<4x8xf32>
    %622 = arith.mulf %613, %578 : vector<4x8xf32>
    %623 = arith.addf %621, %622 : vector<4x8xf32>
    %624 = vector.extract_strided_slice %587 {offsets = [0, 0], sizes = [4, 8], strides = [1, 1]} : vector<4x24xf32> to vector<4x8xf32>
    %625 = vector.extract_strided_slice %597 {offsets = [0, 0], sizes = [4, 8], strides = [1, 1]} : vector<4x24xf32> to vector<4x8xf32>
    %626 = arith.addf %624, %625 : vector<4x8xf32>
    %627 = arith.negf %626 : vector<4x8xf32>
    %628 = math.exp %627 : vector<4x8xf32>
    %cst_131 = arith.constant 1.000000e+00 : f32
    %629 = vector.broadcast %cst_131 : f32 to vector<4x8xf32>
    %630 = arith.addf %629, %628 : vector<4x8xf32>
    %631 = arith.divf %629, %630 : vector<4x8xf32>
    %632 = vector.extract_strided_slice %587 {offsets = [0, 8], sizes = [4, 8], strides = [1, 1]} : vector<4x24xf32> to vector<4x8xf32>
    %633 = vector.extract_strided_slice %597 {offsets = [0, 8], sizes = [4, 8], strides = [1, 1]} : vector<4x24xf32> to vector<4x8xf32>
    %634 = arith.addf %632, %633 : vector<4x8xf32>
    %635 = arith.negf %634 : vector<4x8xf32>
    %636 = math.exp %635 : vector<4x8xf32>
    %cst_132 = arith.constant 1.000000e+00 : f32
    %637 = vector.broadcast %cst_132 : f32 to vector<4x8xf32>
    %638 = arith.addf %637, %636 : vector<4x8xf32>
    %639 = arith.divf %637, %638 : vector<4x8xf32>
    %640 = vector.extract_strided_slice %587 {offsets = [0, 16], sizes = [4, 8], strides = [1, 1]} : vector<4x24xf32> to vector<4x8xf32>
    %641 = vector.extract_strided_slice %597 {offsets = [0, 16], sizes = [4, 8], strides = [1, 1]} : vector<4x24xf32> to vector<4x8xf32>
    %642 = arith.mulf %631, %641 : vector<4x8xf32>
    %643 = arith.addf %640, %642 : vector<4x8xf32>
    %644 = math.tanh %643 : vector<4x8xf32>
    %cst_133 = arith.constant 1.000000e+00 : f32
    %645 = vector.broadcast %cst_133 : f32 to vector<4x8xf32>
    %646 = arith.subf %645, %639 : vector<4x8xf32>
    %647 = arith.mulf %646, %644 : vector<4x8xf32>
    %648 = arith.mulf %639, %585 : vector<4x8xf32>
    %649 = arith.addf %647, %648 : vector<4x8xf32>
    %650 = vector.broadcast %589 : vector<4x1xf32> to vector<4x8xf32>
    %651 = arith.mulf %650, %623 : vector<4x8xf32>
    %652 = vector.broadcast %591 : vector<4x1xf32> to vector<4x8xf32>
    %653 = arith.mulf %652, %649 : vector<4x8xf32>
    %654 = vector.broadcast %589 : vector<4x1xf32> to vector<4x8xf32>
    %655 = arith.mulf %654, %623 : vector<4x8xf32>
    %cst_134 = arith.constant 1.000000e+00 : f32
    %656 = vector.broadcast %cst_134 : f32 to vector<4x1xf32>
    %657 = arith.subf %656, %589 : vector<4x1xf32>
    %658 = vector.broadcast %657 : vector<4x1xf32> to vector<4x8xf32>
    %659 = arith.mulf %658, %578 : vector<4x8xf32>
    %660 = arith.addf %655, %659 : vector<4x8xf32>
    %661 = vector.broadcast %591 : vector<4x1xf32> to vector<4x8xf32>
    %662 = arith.mulf %661, %649 : vector<4x8xf32>
    %cst_135 = arith.constant 1.000000e+00 : f32
    %663 = vector.broadcast %cst_135 : f32 to vector<4x1xf32>
    %664 = arith.subf %663, %591 : vector<4x1xf32>
    %665 = vector.broadcast %664 : vector<4x1xf32> to vector<4x8xf32>
    %666 = arith.mulf %665, %585 : vector<4x8xf32>
    %667 = arith.addf %662, %666 : vector<4x8xf32>
    %668 = arith.addf %660, %667 : vector<4x8xf32>
    %669 = arith.addf %77, %653 : vector<4x8xf32>
    %670 = arith.addf %159, %571 : vector<4x8xf32>
    %671 = arith.maximumf %669, %670 : vector<4x8xf32>
    %672 = arith.addf %669, %670 : vector<4x8xf32>
    %673 = arith.addf %241, %489 : vector<4x8xf32>
    %674 = arith.maximumf %671, %673 : vector<4x8xf32>
    %675 = arith.addf %672, %673 : vector<4x8xf32>
    %676 = arith.addf %323, %407 : vector<4x8xf32>
    %677 = arith.maximumf %674, %676 : vector<4x8xf32>
    %678 = arith.addf %675, %676 : vector<4x8xf32>
    %679 = arith.addf %405, %325 : vector<4x8xf32>
    %680 = arith.maximumf %677, %679 : vector<4x8xf32>
    %681 = arith.addf %678, %679 : vector<4x8xf32>
    %682 = arith.addf %487, %243 : vector<4x8xf32>
    %683 = arith.maximumf %680, %682 : vector<4x8xf32>
    %684 = arith.addf %681, %682 : vector<4x8xf32>
    %685 = arith.addf %569, %161 : vector<4x8xf32>
    %686 = arith.maximumf %683, %685 : vector<4x8xf32>
    %687 = arith.addf %684, %685 : vector<4x8xf32>
    %688 = arith.addf %651, %79 : vector<4x8xf32>
    %689 = arith.maximumf %686, %688 : vector<4x8xf32>
    %690 = arith.addf %687, %688 : vector<4x8xf32>
    %c0_136 = arith.constant 0 : index
    %c0_137 = arith.constant 0 : index
    %691 = vector.load %arg3[%c0_136, %c0_137] : memref<4x1xf32, #tpu.memory_space<vmem>>, vector<4x1xf32>
    %692 = vector.broadcast %691 : vector<4x1xf32> to vector<4x8xf32>
    %693 = arith.mulf %690, %692 : vector<4x8xf32>
    %c0_138 = arith.constant 0 : index
    %c0_139 = arith.constant 0 : index
    %694 = vector.load %arg10[%c0_138, %c0_139] : memref<8x2xf32, #tpu.memory_space<vmem>>, vector<8x2xf32>
    %cst_140 = arith.constant dense<0.000000e+00> : vector<4x2xf32>
    %695 = tpu.matmul %668, %694, %cst_140 {dimension_numbers = #tpu.dot_dimension_numbers<[1], [0], [0], [1], [0, 0, 1, 1], [], []>} : vector<4x8xf32>, vector<8x2xf32>, vector<4x2xf32> -> vector<4x2xf32>
    %c0_141 = arith.constant 0 : index
    %c0_142 = arith.constant 0 : index
    %696 = vector.load %arg11[%c0_141, %c0_142] : memref<8x2xf32, #tpu.memory_space<vmem>>, vector<8x2xf32>
    %cst_143 = arith.constant dense<0.000000e+00> : vector<4x2xf32>
    %697 = tpu.matmul %689, %696, %cst_143 {dimension_numbers = #tpu.dot_dimension_numbers<[1], [0], [0], [1], [0, 0, 1, 1], [], []>} : vector<4x8xf32>, vector<8x2xf32>, vector<4x2xf32> -> vector<4x2xf32>
    %698 = arith.addf %695, %697 : vector<4x2xf32>
    %c0_144 = arith.constant 0 : index
    %c0_145 = arith.constant 0 : index
    %699 = vector.load %arg12[%c0_144, %c0_145] : memref<8x2xf32, #tpu.memory_space<vmem>>, vector<8x2xf32>
    %cst_146 = arith.constant dense<0.000000e+00> : vector<4x2xf32>
    %700 = tpu.matmul %693, %699, %cst_146 {dimension_numbers = #tpu.dot_dimension_numbers<[1], [0], [0], [1], [0, 0, 1, 1], [], []>} : vector<4x8xf32>, vector<8x2xf32>, vector<4x2xf32> -> vector<4x2xf32>
    %701 = arith.addf %698, %700 : vector<4x2xf32>
    %c0_147 = arith.constant 0 : index
    %c0_148 = arith.constant 0 : index
    %702 = vector.load %arg2[%c0_147, %c0_148] : memref<4x10xf32, #tpu.memory_space<vmem>>, vector<4x10xf32>
    %c0_149 = arith.constant 0 : index
    %c0_150 = arith.constant 0 : index
    %703 = vector.load %arg13[%c0_149, %c0_150] : memref<10x2xf32, #tpu.memory_space<vmem>>, vector<10x2xf32>
    %cst_151 = arith.constant dense<0.000000e+00> : vector<4x2xf32>
    %704 = tpu.matmul %702, %703, %cst_151 {dimension_numbers = #tpu.dot_dimension_numbers<[1], [0], [0], [1], [0, 0, 1, 1], [], []>} : vector<4x10xf32>, vector<10x2xf32>, vector<4x2xf32> -> vector<4x2xf32>
    %705 = arith.addf %701, %704 : vector<4x2xf32>
    %c0_152 = arith.constant 0 : index
    %c0_153 = arith.constant 0 : index
    %706 = vector.load %arg14[%c0_152, %c0_153] : memref<1x2xf32, #tpu.memory_space<vmem>>, vector<1x2xf32>
    %707 = vector.broadcast %706 : vector<1x2xf32> to vector<4x2xf32>
    %708 = arith.addf %705, %707 : vector<4x2xf32>
    %cst_154 = arith.constant dense<0xFF800000> : vector<4xf32>
    %709 = vector.multi_reduction <maximumf>, %708, %cst_154 [1] : vector<4x2xf32> to vector<4xf32>
    %710 = vector.shape_cast %709 : vector<4xf32> to vector<4x1xf32>
    %711 = vector.broadcast %710 : vector<4x1xf32> to vector<4x2xf32>
    %712 = arith.subf %708, %711 : vector<4x2xf32>
    %713 = math.exp %712 : vector<4x2xf32>
    %cst_155 = arith.constant dense<0.000000e+00> : vector<4xf32>
    %714 = vector.multi_reduction <add>, %713, %cst_155 [1] : vector<4x2xf32> to vector<4xf32>
    %715 = vector.shape_cast %714 : vector<4xf32> to vector<4x1xf32>
    %716 = math.log %715 : vector<4x1xf32>
    %717 = vector.broadcast %716 : vector<4x1xf32> to vector<4x2xf32>
    %718 = arith.subf %712, %717 : vector<4x2xf32>
    %c0_156 = arith.constant 0 : index
    %c0_157 = arith.constant 0 : index
    %719 = vector.load %arg15[%c0_156, %c0_157] : memref<4x2xf32, #tpu.memory_space<vmem>>, vector<4x2xf32>
    tpu.vector_store %arg15[%c0_156, %c0_157], %718 {strides = array<i32>} : memref<4x2xf32, #tpu.memory_space<vmem>>, vector<4x2xf32>,
    return
  }
}

</mosaic_0001>

<llo_original>
// kernel: tpu_custom_call.1
$region0: #{tpu_custom_call.1}
  #allocation0 [shape = 'u32[]', space=smem, size = 0x4, offset = 0x4, fixed_abs, tag = 'smem constant byte address 0x4 - core index']
  #allocation1 [shape = 'u32[144,128]{1,0:T(1,128)}', space=vmem, size = 0x12000, scoped, tag = 'internal scratch']
  %s0 = inlined_call_operand.vmem [shape: f32[32,128], index: 0, kind: input, shape index: {}]
  %s1 = inlined_call_operand.vmem [shape: f32[8,4,1], index: 1, kind: input, shape index: {}]
  %s2 = inlined_call_operand.vmem [shape: f32[4,10], index: 2, kind: input, shape index: {}]
  %s3 = inlined_call_operand.vmem [shape: f32[4,1], index: 3, kind: input, shape index: {}]
  %s4 = inlined_call_operand.vmem [shape: f32[128,48], index: 4, kind: input, shape index: {}]
  %s5 = inlined_call_operand.vmem [shape: f32[1,48], index: 5, kind: input, shape index: {}]
  %s6 = inlined_call_operand.vmem [shape: f32[8,24], index: 6, kind: input, shape index: {}]
  %s7 = inlined_call_operand.vmem [shape: f32[1,24], index: 7, kind: input, shape index: {}]
  %s8 = inlined_call_operand.vmem [shape: f32[8,24], index: 8, kind: input, shape index: {}]
  %s9 = inlined_call_operand.vmem [shape: f32[1,24], index: 9, kind: input, shape index: {}]
  %s10 = inlined_call_operand.vmem [shape: f32[8,2], index: 10, kind: input, shape index: {}]
  %s11 = inlined_call_operand.vmem [shape: f32[8,2], index: 11, kind: input, shape index: {}]
  %s12 = inlined_call_operand.vmem [shape: f32[8,2], index: 12, kind: input, shape index: {}]
  %s13 = inlined_call_operand.vmem [shape: f32[10,2], index: 13, kind: input, shape index: {}]
  %s14 = inlined_call_operand.vmem [shape: f32[1,2], index: 14, kind: input, shape index: {}]
  %s15 = inlined_call_operand.vmem [shape: f32[4,2], index: 15, kind: output, shape index: {}]
  %s16 = sld [smem:[#allocation0]]
  $region70: #{tpu_custom_call.1} parent=0
    _
  %s18 = ssub.s32 1, %s16
  %s19 = scalar_select 0, %s18, %s16
  // Predicated region
  $region2: #{tpu_custom_call.1} parent=0 // pred_check
    _
  $region3: #{tpu_custom_call.1} parent=0 // pred_check_branch
    %21 = sbr.rel (0) target = $region5
  $region4: #{tpu_custom_call.1} parent=0 // pred_region
    _
  $region5: #{tpu_custom_call.1} parent=0 // pred_fallthru
    _
  // Predicated region
  $region6: #{tpu_custom_call.1} parent=0 // pred_check
    _
  $region7: #{tpu_custom_call.1} parent=0 // pred_check_branch
    %23 = sbr.rel (0) target = $region9
  $region8: #{tpu_custom_call.1} parent=0 // pred_region
    _
  $region9: #{tpu_custom_call.1} parent=0 // pred_fallthru
    _
  // Predicated region
  $region10: #{tpu_custom_call.1} parent=0 // pred_check
    _
  $region11: #{tpu_custom_call.1} parent=0 // pred_check_branch
    %25 = sbr.rel (0) target = $region13
  $region12: #{tpu_custom_call.1} parent=0 // pred_region
    _
  $region13: #{tpu_custom_call.1} parent=0 // pred_fallthru
    _
  // Predicated region
  $region14: #{tpu_custom_call.1} parent=0 // pred_check
    _
  $region15: #{tpu_custom_call.1} parent=0 // pred_check_branch
    %27 = sbr.rel (0) target = $region17
  $region16: #{tpu_custom_call.1} parent=0 // pred_region
    _
  $region17: #{tpu_custom_call.1} parent=0 // pred_fallthru
    _
  // Predicated region
  $region18: #{tpu_custom_call.1} parent=0 // pred_check
    _
  $region19: #{tpu_custom_call.1} parent=0 // pred_check_branch
    %29 = sbr.rel (0) target = $region21
  $region20: #{tpu_custom_call.1} parent=0 // pred_region
    _
  $region21: #{tpu_custom_call.1} parent=0 // pred_fallthru
    _
  // Predicated region
  $region22: #{tpu_custom_call.1} parent=0 // pred_check
    _
  $region23: #{tpu_custom_call.1} parent=0 // pred_check_branch
    %31 = sbr.rel (0) target = $region25
  $region24: #{tpu_custom_call.1} parent=0 // pred_region
    _
  $region25: #{tpu_custom_call.1} parent=0 // pred_fallthru
    _
  // Predicated region
  $region26: #{tpu_custom_call.1} parent=0 // pred_check
    _
  $region27: #{tpu_custom_call.1} parent=0 // pred_check_branch
    %33 = sbr.rel (0) target = $region29
  $region28: #{tpu_custom_call.1} parent=0 // pred_region
    _
  $region29: #{tpu_custom_call.1} parent=0 // pred_fallthru
    _
  // Predicated region
  $region30: #{tpu_custom_call.1} parent=0 // pred_check
    _
  $region31: #{tpu_custom_call.1} parent=0 // pred_check_branch
    %35 = sbr.rel (0) target = $region33
  $region32: #{tpu_custom_call.1} parent=0 // pred_region
    _
  $region33: #{tpu_custom_call.1} parent=0 // pred_fallthru
    _
  // Predicated region
  $region34: #{tpu_custom_call.1} parent=0 // pred_check
    _
  $region35: #{tpu_custom_call.1} parent=0 // pred_check_branch
    %37 = sbr.rel (0) target = $region37
  $region36: #{tpu_custom_call.1} parent=0 // pred_region
    _
  $region37: #{tpu_custom_call.1} parent=0 // pred_fallthru
    _
  // Predicated region
  $region38: #{tpu_custom_call.1} parent=0 // pred_check
    _
  $region39: #{tpu_custom_call.1} parent=0 // pred_check_branch
    %39 = sbr.rel (0) target = $region41
  $region40: #{tpu_custom_call.1} parent=0 // pred_region
    _
  $region41: #{tpu_custom_call.1} parent=0 // pred_fallthru
    _
  // Predicated region
  $region42: #{tpu_custom_call.1} parent=0 // pred_check
    _
  $region43: #{tpu_custom_call.1} parent=0 // pred_check_branch
    %41 = sbr.rel (0) target = $region45
  $region44: #{tpu_custom_call.1} parent=0 // pred_region
    _
  $region45: #{tpu_custom_call.1} parent=0 // pred_fallthru
    _
  // Predicated region
  $region46: #{tpu_custom_call.1} parent=0 // pred_check
    _
  $region47: #{tpu_custom_call.1} parent=0 // pred_check_branch
    %43 = sbr.rel (0) target = $region49
  $region48: #{tpu_custom_call.1} parent=0 // pred_region
    _
  $region49: #{tpu_custom_call.1} parent=0 // pred_fallthru
    _
  // Predicated region
  $region50: #{tpu_custom_call.1} parent=0 // pred_check
    _
  $region51: #{tpu_custom_call.1} parent=0 // pred_check_branch
    %45 = sbr.rel (0) target = $region53
  $region52: #{tpu_custom_call.1} parent=0 // pred_region
    _
  $region53: #{tpu_custom_call.1} parent=0 // pred_fallthru
    _
  // Predicated region
  $region54: #{tpu_custom_call.1} parent=0 // pred_check
    _
  $region55: #{tpu_custom_call.1} parent=0 // pred_check_branch
    %47 = sbr.rel (0) target = $region57
  $region56: #{tpu_custom_call.1} parent=0 // pred_region
    _
  $region57: #{tpu_custom_call.1} parent=0 // pred_fallthru
    _
  // Predicated region
  $region58: #{tpu_custom_call.1} parent=0 // pred_check
    _
  $region59: #{tpu_custom_call.1} parent=0 // pred_check_branch
    %49 = sbr.rel (0) target = $region61
  $region60: #{tpu_custom_call.1} parent=0 // pred_region
    _
  $region61: #{tpu_custom_call.1} parent=0 // pred_fallthru
    _
  %v50 = vld [vmem:[%s0] sm:$0xff]
  %v51 = vld [vmem:[%s0 + $0x8] sm:$0xff]
  %v52 = vld [vmem:[%s0 + $0x10] sm:$0xff]
  %v53 = vld [vmem:[%s0 + $0x18] sm:$0xff]
  %v54 = vld [vmem:[%s4] sm:$0xff]
  %v55 = vld [vmem:[%s4 + $0x8] sm:$0xff]
  %v56 = vld [vmem:[%s4 + $0x10] sm:$0xff]
  %v57 = vld [vmem:[%s4 + $0x18] sm:$0xff]
  %v58 = vld [vmem:[%s4 + $0x20] sm:$0xff]
  %v59 = vld [vmem:[%s4 + $0x28] sm:$0xff]
  %v60 = vld [vmem:[%s4 + $0x30] sm:$0xff]
  %v61 = vld [vmem:[%s4 + $0x38] sm:$0xff]
  %v62 = vld [vmem:[%s4 + $0x40] sm:$0xff]
  %v63 = vld [vmem:[%s4 + $0x48] sm:$0xff]
  %v64 = vld [vmem:[%s4 + $0x50] sm:$0xff]
  %v65 = vld [vmem:[%s4 + $0x58] sm:$0xff]
  %v66 = vld [vmem:[%s4 + $0x60] sm:$0xff]
  %v67 = vld [vmem:[%s4 + $0x68] sm:$0xff]
  %v68 = vld [vmem:[%s4 + $0x70] sm:$0xff]
  %v69 = vld [vmem:[%s4 + $0x78] sm:$0xff]
  %v70 = vld [vmem:[%s5] sm:$0x1]
  %v72 = vlaneseq
  %v73 = vshrl.u32 %v72, 7
  %v74 = vsub.s32 0, %v73
  %v75 = vrot.slane %v70, %v74
  %77 = vmatprep.subr.mxu0 0.0
  %78 = vmatpush1.msra.mxu0 %v54
  %79 = vmatprep.subr.mxu0 0.0
  %80 = vmatpush1.msra.mxu0 %v55
  %81 = vmatprep.subr.mxu0 0.0
  %82 = vmatpush1.msra.mxu0 %v56
  %83 = vmatprep.subr.mxu0 0.0
  %84 = vmatpush1.msra.mxu0 %v57
  %85 = vmatprep.subr.mxu0 0.0
  %86 = vmatpush1.msra.mxu0 %v58
  %87 = vmatprep.subr.mxu0 0.0
  %88 = vmatpush1.msra.mxu0 %v59
  %89 = vmatprep.subr.mxu0 0.0
  %90 = vmatpush1.msra.mxu0 %v60
  %91 = vmatprep.subr.mxu0 0.0
  %92 = vmatpush1.msra.mxu0 %v61
  %93 = vmatprep.subr.mxu0 0.0
  %94 = vmatpush1.msra.mxu0 %v62
  %95 = vmatprep.subr.mxu0 0.0
  %96 = vmatpush1.msra.mxu0 %v63
  %97 = vmatprep.subr.mxu0 0.0
  %98 = vmatpush1.msra.mxu0 %v64
  %99 = vmatprep.subr.mxu0 0.0
  %100 = vmatpush1.msra.mxu0 %v65
  %101 = vmatprep.subr.mxu0 0.0
  %102 = vmatpush1.msra.mxu0 %v66
  %103 = vmatprep.subr.mxu0 0.0
  %104 = vmatpush1.msra.mxu0 %v67
  %105 = vmatprep.subr.mxu0 0.0
  %106 = vmatpush1.msra.mxu0 %v68
  %107 = vmatprep.subr.mxu0 0.0
  %108 = vmatpush1.msra.mxu0 %v69
  %109 = vmatprep.subr.mxu0 0.0
  %110 = vmatpush1.msra.mxu0 0.0
  %111 = vmatprep.subr.mxu0 0.0
  %112 = vmatpush1.msra.mxu0 0.0
  %113 = vmatprep.subr.mxu0 0.0
  %114 = vmatpush1.msra.mxu0 0.0
  %115 = vmatprep.subr.mxu0 0.0
  %116 = vmatpush1.msra.mxu0 0.0
  %117 = vmatprep.subr.mxu0 0.0
  %118 = vmatpush1.msra.mxu0 0.0
  %119 = vmatprep.subr.mxu0 0.0
  %120 = vmatpush1.msra.mxu0 0.0
  %121 = vmatprep.subr.mxu0 0.0
  %122 = vmatpush1.msra.mxu0 0.0
  %123 = vmatprep.subr.mxu0 0.0
  %124 = vmatpush1.msra.mxu0 0.0
  %125 = vmatprep.subr.mxu0 0.0
  %126 = vmatpush1.msra.mxu0 0.0
  %127 = vmatprep.subr.mxu0 0.0
  %128 = vmatpush1.msra.mxu0 0.0
  %129 = vmatprep.subr.mxu0 0.0
  %130 = vmatpush1.msra.mxu0 0.0
  %131 = vmatprep.subr.mxu0 0.0
  %132 = vmatpush1.msra.mxu0 0.0
  %133 = vmatprep.subr.mxu0 0.0
  %134 = vmatpush1.msra.mxu0 0.0
  %135 = vmatprep.subr.mxu0 0.0
  %136 = vmatpush1.msra.mxu0 0.0
  %137 = vmatprep.subr.mxu0 0.0
  %138 = vmatpush1.msra.mxu0 0.0
  %139 = vmatprep.subr.mxu0 0.0
  %140 = vmatpush1.msra.mxu0 0.0
  %141 = vmatprep.mubr.f32.mxu0 0.0
  %142 = vmatmul.mubr.f32.gmra.mrb[0].mxu0 %v50
  %v143 = vpop.f32.mrb[0].mxu0
  %v144 = vadd.f32 %v75, %v143
  %v145 = vpop.f32.mrb[0].mxu0
  %146 = vmatprep.mubr.f32.mxu0 0.0
  %147 = vmatmul.mubr.f32.gmra.mrb[0].mxu0 %v51
  %v148 = vpop.f32.mrb[0].mxu0
  %v149 = vadd.f32 %v75, %v148
  %v150 = vpop.f32.mrb[0].mxu0
  %151 = vmatprep.mubr.f32.mxu0 0.0
  %152 = vmatmul.mubr.f32.gmra.mrb[0].mxu0 %v52
  %v153 = vpop.f32.mrb[0].mxu0
  %v154 = vadd.f32 %v75, %v153
  %v155 = vpop.f32.mrb[0].mxu0
  %156 = vmatprep.mubr.f32.mxu0 0.0
  %157 = vmatmul.mubr.f32.gmra.mrb[0].mxu0 %v53
  %v158 = vpop.f32.mrb[0].mxu0
  %v159 = vadd.f32 %v75, %v158
  %v160 = vpop.f32.mrb[0].mxu0
  %161 = vdwg.mxu0
  %v162 = vld [vmem:[%s6] sm:$0xff]
  %v163 = vld [vmem:[%s8] sm:$0xff]
  %v164 = vld [vmem:[%s7] sm:$0x1]
  %v165 = vld [vmem:[%s9] sm:$0x1]
  %v166 = vld [vmem:[%s1] sm:$0xf]
  %s167 = scalar_lea.vmem %s1, 28
  %v168 = vld [vmem:[%s167] sm:$0xf]
  %v170 = vlaneseq
  %v171 = vshrl.u32 %v170, 7
  %v172 = vsub.s32 0, %v171
  %v173 = vrot.slane %v164, %v172
  %vm175 = vcmask 64512
  %v177 = vsel %vm175, 0.0, 0
  %179 = vmatprep.subr.mxu0 0.0
  %180 = vmatpush1.msra.mxu0 %v162
  %181 = vmatprep.subr.mxu0 0.0
  %182 = vmatpush1.msra.mxu0 0.0
  %183 = vmatprep.subr.mxu0 0.0
  %184 = vmatpush1.msra.mxu0 0.0
  %185 = vmatprep.subr.mxu0 0.0
  %186 = vmatpush1.msra.mxu0 0.0
  %187 = vmatprep.subr.mxu0 0.0
  %188 = vmatpush1.msra.mxu0 0.0
  %189 = vmatprep.subr.mxu0 0.0
  %190 = vmatpush1.msra.mxu0 0.0
  %191 = vmatprep.subr.mxu0 0.0
  %192 = vmatpush1.msra.mxu0 0.0
  %193 = vmatprep.subr.mxu0 0.0
  %194 = vmatpush1.msra.mxu0 0.0
  %195 = vmatprep.subr.mxu0 0.0
  %196 = vmatpush1.msra.mxu0 0.0
  %197 = vmatprep.subr.mxu0 0.0
  %198 = vmatpush1.msra.mxu0 0.0
  %199 = vmatprep.subr.mxu0 0.0
  %200 = vmatpush1.msra.mxu0 0.0
  %201 = vmatprep.subr.mxu0 0.0
  %202 = vmatpush1.msra.mxu0 0.0
  %203 = vmatprep.subr.mxu0 0.0
  %204 = vmatpush1.msra.mxu0 0.0
  %205 = vmatprep.subr.mxu0 0.0
  %206 = vmatpush1.msra.mxu0 0.0
  %207 = vmatprep.subr.mxu0 0.0
  %208 = vmatpush1.msra.mxu0 0.0
  %209 = vmatprep.subr.mxu0 0.0
  %210 = vmatpush1.msra.mxu0 0.0
  %211 = vmatprep.subr.mxu0 0.0
  %212 = vmatpush1.msra.mxu0 0.0
  %213 = vmatprep.subr.mxu0 0.0
  %214 = vmatpush1.msra.mxu0 0.0
  %215 = vmatprep.subr.mxu0 0.0
  %216 = vmatpush1.msra.mxu0 0.0
  %217 = vmatprep.subr.mxu0 0.0
  %218 = vmatpush1.msra.mxu0 0.0
  %219 = vmatprep.subr.mxu0 0.0
  %220 = vmatpush1.msra.mxu0 0.0
  %221 = vmatprep.subr.mxu0 0.0
  %222 = vmatpush1.msra.mxu0 0.0
  %223 = vmatprep.subr.mxu0 0.0
  %224 = vmatpush1.msra.mxu0 0.0
  %225 = vmatprep.subr.mxu0 0.0
  %226 = vmatpush1.msra.mxu0 0.0
  %227 = vmatprep.subr.mxu0 0.0
  %228 = vmatpush1.msra.mxu0 0.0
  %229 = vmatprep.subr.mxu0 0.0
  %230 = vmatpush1.msra.mxu0 0.0
  %231 = vmatprep.subr.mxu0 0.0
  %232 = vmatpush1.msra.mxu0 0.0
  %233 = vmatprep.subr.mxu0 0.0
  %234 = vmatpush1.msra.mxu0 0.0
  %235 = vmatprep.subr.mxu0 0.0
  %236 = vmatpush1.msra.mxu0 0.0
  %237 = vmatprep.subr.mxu0 0.0
  %238 = vmatpush1.msra.mxu0 0.0
  %239 = vmatprep.subr.mxu0 0.0
  %240 = vmatpush1.msra.mxu0 0.0
  %241 = vmatprep.subr.mxu0 0.0
  %242 = vmatpush1.msra.mxu0 0.0
  %243 = vmatprep.mubr.f32.mxu0 0.0
  %244 = vmatmul.mubr.f32.gmra.mrb[0].mxu0 %v177
  %v245 = vpop.f32.mrb[0].mxu0
  %v246 = vadd.f32 %v173, %v245
  %v247 = vpop.f32.mrb[0].mxu0
  %248 = vdwg.mxu0
  %v250 = vlaneseq
  %v251 = vshrl.u32 %v250, 7
  %v252 = vsub.s32 0, %v251
  %v253 = vrot.slane %v165, %v252
  %255 = vmatprep.subr.mxu0 0.0
  %256 = vmatpush1.msra.mxu0 %v163
  %257 = vmatprep.subr.mxu0 0.0
  %258 = vmatpush1.msra.mxu0 0.0
  %259 = vmatprep.subr.mxu0 0.0
  %260 = vmatpush1.msra.mxu0 0.0
  %261 = vmatprep.subr.mxu0 0.0
  %262 = vmatpush1.msra.mxu0 0.0
  %263 = vmatprep.subr.mxu0 0.0
  %264 = vmatpush1.msra.mxu0 0.0
  %265 = vmatprep.subr.mxu0 0.0
  %266 = vmatpush1.msra.mxu0 0.0
  %267 = vmatprep.subr.mxu0 0.0
  %268 = vmatpush1.msra.mxu0 0.0
  %269 = vmatprep.subr.mxu0 0.0
  %270 = vmatpush1.msra.mxu0 0.0
  %271 = vmatprep.subr.mxu0 0.0
  %272 = vmatpush1.msra.mxu0 0.0
  %273 = vmatprep.subr.mxu0 0.0
  %274 = vmatpush1.msra.mxu0 0.0
  %275 = vmatprep.subr.mxu0 0.0
  %276 = vmatpush1.msra.mxu0 0.0
  %277 = vmatprep.subr.mxu0 0.0
  %278 = vmatpush1.msra.mxu0 0.0
  %279 = vmatprep.subr.mxu0 0.0
  %280 = vmatpush1.msra.mxu0 0.0
  %281 = vmatprep.subr.mxu0 0.0
  %282 = vmatpush1.msra.mxu0 0.0
  %283 = vmatprep.subr.mxu0 0.0
  %284 = vmatpush1.msra.mxu0 0.0
  %285 = vmatprep.subr.mxu0 0.0
  %286 = vmatpush1.msra.mxu0 0.0
  %287 = vmatprep.subr.mxu0 0.0
  %288 = vmatpush1.msra.mxu0 0.0
  %289 = vmatprep.subr.mxu0 0.0
  %290 = vmatpush1.msra.mxu0 0.0
  %291 = vmatprep.subr.mxu0 0.0
  %292 = vmatpush1.msra.mxu0 0.0
  %293 = vmatprep.subr.mxu0 0.0
  %294 = vmatpush1.msra.mxu0 0.0
  %295 = vmatprep.subr.mxu0 0.0
  %296 = vmatpush1.msra.mxu0 0.0
  %297 = vmatprep.subr.mxu0 0.0
  %298 = vmatpush1.msra.mxu0 0.0
  %299 = vmatprep.subr.mxu0 0.0
  %300 = vmatpush1.msra.mxu0 0.0
  %301 = vmatprep.subr.mxu0 0.0
  %302 = vmatpush1.msra.mxu0 0.0
  %303 = vmatprep.subr.mxu0 0.0
  %304 = vmatpush1.msra.mxu0 0.0
  %305 = vmatprep.subr.mxu0 0.0
  %306 = vmatpush1.msra.mxu0 0.0
  %307 = vmatprep.subr.mxu0 0.0
  %308 = vmatpush1.msra.mxu0 0.0
  %309 = vmatprep.subr.mxu0 0.0
  %310 = vmatpush1.msra.mxu0 0.0
  %311 = vmatprep.subr.mxu0 0.0
  %312 = vmatpush1.msra.mxu0 0.0
  %313 = vmatprep.subr.mxu0 0.0
  %314 = vmatpush1.msra.mxu0 0.0
  %315 = vmatprep.subr.mxu0 0.0
  %316 = vmatpush1.msra.mxu0 0.0
  %317 = vmatprep.subr.mxu0 0.0
  %318 = vmatpush1.msra.mxu0 0.0
  %319 = vmatprep.mubr.f32.mxu0 0.0
  %320 = vmatmul.mubr.f32.gmra.mrb[0].mxu0 %v177
  %v321 = vpop.f32.mrb[0].mxu0
  %v322 = vadd.f32 %v253, %v321
  %v323 = vpop.f32.mrb[0].mxu0
  %324 = vdwg.mxu0
  %v325 = vadd.f32 %v144, %v246
  %v326 = vxor.u32 %v325, 2147483648
  %v327 = vmul.f32 %v326, 1.442695
  %v328 = vpow.pop %v327
  %v329 = vadd.f32 %v328, 1.0
  %v330 = vrcp.pop %v329
  %v331 = vmul.f32 1.0, %v330
  %333 = vrot.lane.b32.xlu0 %v246, 112
  %v334 = vpop.permute.xlu0 %333
  %v336 = vmul.f32 %v331, %v334
  %338 = vrot.lane.b32.xlu0 %v336, 16
  %v339 = vpop.permute.xlu0 %338
  %v341 = vadd.f32 %v144, %v339
  %v342 = vtanh.pop %v341
  %v343 = vsub.f32 1.0, %v331
  %345 = vrot.lane.b32.xlu0 %v342, 120
  %v346 = vpop.permute.xlu0 %345
  %v348 = vmul.f32 %v343, %v346
  %v349 = vmul.f32 %v331, 0.0
  %v350 = vadd.f32 %v348, %v349
  %v352 = vrot.slane %v322, 4
  %353 = vrot.lane.b32.xlu0 %v352, 24
  %v354 = vpop.permute.xlu0 %353
  %v356 = vadd.f32 %v159, %v354
  %v357 = vxor.u32 %v356, 2147483648
  %v358 = vmul.f32 %v357, 1.442695
  %v359 = vpow.pop %v358
  %v360 = vadd.f32 %v359, 1.0
  %v361 = vrcp.pop %v360
  %v362 = vmul.f32 1.0, %v361
  %363 = vrot.lane.b32.xlu0 %v352, 8
  %v364 = vpop.permute.xlu0 %363
  %v366 = vmul.f32 %v362, %v364
  %368 = vrot.lane.b32.xlu0 %v366, 16
  %v369 = vpop.permute.xlu0 %368
  %v371 = vadd.f32 %v159, %v369
  %v372 = vtanh.pop %v371
  %v373 = vsub.f32 1.0, %v362
  %375 = vrot.lane.b32.xlu0 %v372, 120
  %v376 = vpop.permute.xlu0 %375
  %v378 = vmul.f32 %v373, %v376
  %v379 = vmul.f32 %v362, 0.0
  %v380 = vadd.f32 %v378, %v379
  %382 = vset.pattern.permute.xlu0 0
  %383 = vperm.xlu0 %382, %v166
  %v384 = vpop.permute.xlu0 %383
  %v386 = vmul.f32 %v384, %v350
  %388 = vset.pattern.permute.xlu0 0
  %389 = vperm.xlu0 %388, %v168
  %v390 = vpop.permute.xlu0 %389
  %v393 = vrot.slane %v380, 4
  %394 = vrot.lane.b32.xlu0 %v393, 96
  %v395 = vpop.permute.xlu0 %394
  %v397 = vmul.f32 %v390, %v395
  %v398 = vsub.f32 1.0, %v166
  %400 = vset.pattern.permute.xlu0 0
  %401 = vperm.xlu0 %400, %v398
  %v402 = vpop.permute.xlu0 %401
  %v404 = vmul.f32 %v402, 0.0
  %v405 = vadd.f32 %v386, %v404
  %v406 = vsub.f32 1.0, %v168
  %408 = vset.pattern.permute.xlu0 0
  %409 = vperm.xlu0 %408, %v406
  %v410 = vpop.permute.xlu0 %409
  %v412 = vmul.f32 %v410, 0.0
  %v413 = vadd.f32 %v397, %v412
  %s414 = scalar_lea.vmem %s1, 4
  %v415 = vld [vmem:[%s414] sm:$0xf]
  %s416 = scalar_lea.vmem %s1, 24
  %v417 = vld [vmem:[%s416] sm:$0xf]
  %419 = vrot.lane.b32.xlu0 %v405, 120
  %v420 = vpop.permute.xlu0 %419
  %v421 = vsel %vm175, %v420, 0
  %423 = vmatprep.subr.mxu0 0.0
  %424 = vmatpush1.msra.mxu0 %v162
  %425 = vmatprep.subr.mxu0 0.0
  %426 = vmatpush1.msra.mxu0 0.0
  %427 = vmatprep.subr.mxu0 0.0
  %428 = vmatpush1.msra.mxu0 0.0
  %429 = vmatprep.subr.mxu0 0.0
  %430 = vmatpush1.msra.mxu0 0.0
  %431 = vmatprep.subr.mxu0 0.0
  %432 = vmatpush1.msra.mxu0 0.0
  %433 = vmatprep.subr.mxu0 0.0
  %434 = vmatpush1.msra.mxu0 0.0
  %435 = vmatprep.subr.mxu0 0.0
  %436 = vmatpush1.msra.mxu0 0.0
  %437 = vmatprep.subr.mxu0 0.0
  %438 = vmatpush1.msra.mxu0 0.0
  %439 = vmatprep.subr.mxu0 0.0
  %440 = vmatpush1.msra.mxu0 0.0
  %441 = vmatprep.subr.mxu0 0.0
  %442 = vmatpush1.msra.mxu0 0.0
  %443 = vmatprep.subr.mxu0 0.0
  %444 = vmatpush1.msra.mxu0 0.0
  %445 = vmatprep.subr.mxu0 0.0
  %446 = vmatpush1.msra.mxu0 0.0
  %447 = vmatprep.subr.mxu0 0.0
  %448 = vmatpush1.msra.mxu0 0.0
  %449 = vmatprep.subr.mxu0 0.0
  %450 = vmatpush1.msra.mxu0 0.0
  %451 = vmatprep.subr.mxu0 0.0
  %452 = vmatpush1.msra.mxu0 0.0
  %453 = vmatprep.subr.mxu0 0.0
  %454 = vmatpush1.msra.mxu0 0.0
  %455 = vmatprep.subr.mxu0 0.0
  %456 = vmatpush1.msra.mxu0 0.0
  %457 = vmatprep.subr.mxu0 0.0
  %458 = vmatpush1.msra.mxu0 0.0
  %459 = vmatprep.subr.mxu0 0.0
  %460 = vmatpush1.msra.mxu0 0.0
  %461 = vmatprep.subr.mxu0 0.0
  %462 = vmatpush1.msra.mxu0 0.0
  %463 = vmatprep.subr.mxu0 0.0
  %464 = vmatpush1.msra.mxu0 0.0
  %465 = vmatprep.subr.mxu0 0.0
  %466 = vmatpush1.msra.mxu0 0.0
  %467 = vmatprep.subr.mxu0 0.0
  %468 = vmatpush1.msra.mxu0 0.0
  %469 = vmatprep.subr.mxu0 0.0
  %470 = vmatpush1.msra.mxu0 0.0
  %471 = vmatprep.subr.mxu0 0.0
  %472 = vmatpush1.msra.mxu0 0.0
  %473 = vmatprep.subr.mxu0 0.0
  %474 = vmatpush1.msra.mxu0 0.0
  %475 = vmatprep.subr.mxu0 0.0
  %476 = vmatpush1.msra.mxu0 0.0
  %477 = vmatprep.subr.mxu0 0.0
  %478 = vmatpush1.msra.mxu0 0.0
  %479 = vmatprep.subr.mxu0 0.0
  %480 = vmatpush1.msra.mxu0 0.0
  %481 = vmatprep.subr.mxu0 0.0
  %482 = vmatpush1.msra.mxu0 0.0
  %483 = vmatprep.subr.mxu0 0.0
  %484 = vmatpush1.msra.mxu0 0.0
  %485 = vmatprep.subr.mxu0 0.0
  %486 = vmatpush1.msra.mxu0 0.0
  %487 = vmatprep.mubr.f32.mxu0 0.0
  %488 = vmatmul.mubr.f32.gmra.mrb[0].mxu0 %v421
  %v489 = vpop.f32.mrb[0].mxu0
  %v490 = vadd.f32 %v173, %v489
  %v491 = vpop.f32.mrb[0].mxu0
  %492 = vdwg.mxu0
  %v494 = vsel %vm175, %v413, 0
  %496 = vmatprep.subr.mxu0 0.0
  %497 = vmatpush1.msra.mxu0 %v163
  %498 = vmatprep.subr.mxu0 0.0
  %499 = vmatpush1.msra.mxu0 0.0
  %500 = vmatprep.subr.mxu0 0.0
  %501 = vmatpush1.msra.mxu0 0.0
  %502 = vmatprep.subr.mxu0 0.0
  %503 = vmatpush1.msra.mxu0 0.0
  %504 = vmatprep.subr.mxu0 0.0
  %505 = vmatpush1.msra.mxu0 0.0
  %506 = vmatprep.subr.mxu0 0.0
  %507 = vmatpush1.msra.mxu0 0.0
  %508 = vmatprep.subr.mxu0 0.0
  %509 = vmatpush1.msra.mxu0 0.0
  %510 = vmatprep.subr.mxu0 0.0
  %511 = vmatpush1.msra.mxu0 0.0
  %512 = vmatprep.subr.mxu0 0.0
  %513 = vmatpush1.msra.mxu0 0.0
  %514 = vmatprep.subr.mxu0 0.0
  %515 = vmatpush1.msra.mxu0 0.0
  %516 = vmatprep.subr.mxu0 0.0
  %517 = vmatpush1.msra.mxu0 0.0
  %518 = vmatprep.subr.mxu0 0.0
  %519 = vmatpush1.msra.mxu0 0.0
  %520 = vmatprep.subr.mxu0 0.0
  %521 = vmatpush1.msra.mxu0 0.0
  %522 = vmatprep.subr.mxu0 0.0
  %523 = vmatpush1.msra.mxu0 0.0
  %524 = vmatprep.subr.mxu0 0.0
  %525 = vmatpush1.msra.mxu0 0.0
  %526 = vmatprep.subr.mxu0 0.0
  %527 = vmatpush1.msra.mxu0 0.0
  %528 = vmatprep.subr.mxu0 0.0
  %529 = vmatpush1.msra.mxu0 0.0
  %530 = vmatprep.subr.mxu0 0.0
  %531 = vmatpush1.msra.mxu0 0.0
  %532 = vmatprep.subr.mxu0 0.0
  %533 = vmatpush1.msra.mxu0 0.0
  %534 = vmatprep.subr.mxu0 0.0
  %535 = vmatpush1.msra.mxu0 0.0
  %536 = vmatprep.subr.mxu0 0.0
  %537 = vmatpush1.msra.mxu0 0.0
  %538 = vmatprep.subr.mxu0 0.0
  %539 = vmatpush1.msra.mxu0 0.0
  %540 = vmatprep.subr.mxu0 0.0
  %541 = vmatpush1.msra.mxu0 0.0
  %542 = vmatprep.subr.mxu0 0.0
  %543 = vmatpush1.msra.mxu0 0.0
  %544 = vmatprep.subr.mxu0 0.0
  %545 = vmatpush1.msra.mxu0 0.0
  %546 = vmatprep.subr.mxu0 0.0
  %547 = vmatpush1.msra.mxu0 0.0
  %548 = vmatprep.subr.mxu0 0.0
  %549 = vmatpush1.msra.mxu0 0.0
  %550 = vmatprep.subr.mxu0 0.0
  %551 = vmatpush1.msra.mxu0 0.0
  %552 = vmatprep.subr.mxu0 0.0
  %553 = vmatpush1.msra.mxu0 0.0
  %554 = vmatprep.subr.mxu0 0.0
  %555 = vmatpush1.msra.mxu0 0.0
  %556 = vmatprep.subr.mxu0 0.0
  %557 = vmatpush1.msra.mxu0 0.0
  %558 = vmatprep.subr.mxu0 0.0
  %559 = vmatpush1.msra.mxu0 0.0
  %560 = vmatprep.mubr.f32.mxu0 0.0
  %561 = vmatmul.mubr.f32.gmra.mrb[0].mxu0 %v494
  %v562 = vpop.f32.mrb[0].mxu0
  %v563 = vadd.f32 %v253, %v562
  %v564 = vpop.f32.mrb[0].mxu0
  %565 = vdwg.mxu0
  %v567 = vrot.slane %v490, 4
  %v569 = vadd.f32 %v144, %v567
  %v570 = vxor.u32 %v569, 2147483648
  %v571 = vmul.f32 %v570, 1.442695
  %v572 = vpow.pop %v571
  %v573 = vadd.f32 %v572, 1.0
  %v574 = vrcp.pop %v573
  %v575 = vmul.f32 1.0, %v574
  %576 = vrot.lane.b32.xlu0 %v567, 112
  %v577 = vpop.permute.xlu0 %576
  %v579 = vmul.f32 %v575, %v577
  %581 = vrot.lane.b32.xlu0 %v579, 16
  %v582 = vpop.permute.xlu0 %581
  %v584 = vadd.f32 %v144, %v582
  %v585 = vtanh.pop %v584
  %v586 = vsub.f32 1.0, %v575
  %588 = vrot.lane.b32.xlu0 %v585, 120
  %v589 = vpop.permute.xlu0 %588
  %v591 = vmul.f32 %v586, %v589
  %v592 = vrot.slane %v405, 4
  %v594 = vmul.f32 %v575, %v592
  %v595 = vadd.f32 %v591, %v594
  %597 = vrot.lane.b32.xlu0 %v563, 24
  %v598 = vpop.permute.xlu0 %597
  %v600 = vadd.f32 %v159, %v598
  %v601 = vxor.u32 %v600, 2147483648
  %v602 = vmul.f32 %v601, 1.442695
  %v603 = vpow.pop %v602
  %v604 = vadd.f32 %v603, 1.0
  %v605 = vrcp.pop %v604
  %v606 = vmul.f32 1.0, %v605
  %607 = vrot.lane.b32.xlu0 %v563, 8
  %v608 = vpop.permute.xlu0 %607
  %v610 = vmul.f32 %v606, %v608
  %612 = vrot.lane.b32.xlu0 %v610, 16
  %v613 = vpop.permute.xlu0 %612
  %v615 = vadd.f32 %v159, %v613
  %v616 = vtanh.pop %v615
  %v617 = vsub.f32 1.0, %v606
  %619 = vrot.lane.b32.xlu0 %v616, 120
  %v620 = vpop.permute.xlu0 %619
  %v622 = vmul.f32 %v617, %v620
  %623 = vrot.lane.b32.xlu0 %v413, 32
  %v624 = vpop.permute.xlu0 %623
  %v626 = vmul.f32 %v606, %v624
  %v627 = vadd.f32 %v622, %v626
  %629 = vset.pattern.permute.xlu0 0
  %630 = vperm.xlu0 %629, %v415
  %v631 = vpop.permute.xlu0 %630
  %v634 = vrot.slane %v595, 4
  %635 = vrot.lane.b32.xlu0 %v634, 120
  %v636 = vpop.permute.xlu0 %635
  %v638 = vmul.f32 %v631, %v636
  %640 = vset.pattern.permute.xlu0 0
  %641 = vperm.xlu0 %640, %v417
  %v642 = vpop.permute.xlu0 %641
  %v644 = vmul.f32 %v642, %v627
  %v645 = vsub.f32 1.0, %v415
  %647 = vset.pattern.permute.xlu0 0
  %648 = vperm.xlu0 %647, %v645
  %v649 = vpop.permute.xlu0 %648
  %v651 = vmul.f32 %v649, %v405
  %653 = vrot.lane.b32.xlu0 %v651, 120
  %v654 = vpop.permute.xlu0 %653
  %v656 = vadd.f32 %v638, %v654
  %v657 = vsub.f32 1.0, %v417
  %659 = vset.pattern.permute.xlu0 0
  %660 = vperm.xlu0 %659, %v657
  %v661 = vpop.permute.xlu0 %660
  %v663 = vmul.f32 %v661, %v413
  %665 = vrot.lane.b32.xlu0 %v663, 32
  %v666 = vpop.permute.xlu0 %665
  %v668 = vadd.f32 %v644, %v666
  %s669 = scalar_lea.vmem %s1, 8
  %v670 = vld [vmem:[%s669] sm:$0xf]
  %s671 = scalar_lea.vmem %s1, 20
  %v672 = vld [vmem:[%s671] sm:$0xf]
  %v674 = vsel %vm175, %v656, 0
  %676 = vmatprep.subr.mxu0 0.0
  %677 = vmatpush1.msra.mxu0 %v162
  %678 = vmatprep.subr.mxu0 0.0
  %679 = vmatpush1.msra.mxu0 0.0
  %680 = vmatprep.subr.mxu0 0.0
  %681 = vmatpush1.msra.mxu0 0.0
  %682 = vmatprep.subr.mxu0 0.0
  %683 = vmatpush1.msra.mxu0 0.0
  %684 = vmatprep.subr.mxu0 0.0
  %685 = vmatpush1.msra.mxu0 0.0
  %686 = vmatprep.subr.mxu0 0.0
  %687 = vmatpush1.msra.mxu0 0.0
  %688 = vmatprep.subr.mxu0 0.0
  %689 = vmatpush1.msra.mxu0 0.0
  %690 = vmatprep.subr.mxu0 0.0
  %691 = vmatpush1.msra.mxu0 0.0
  %692 = vmatprep.subr.mxu0 0.0
  %693 = vmatpush1.msra.mxu0 0.0
  %694 = vmatprep.subr.mxu0 0.0
  %695 = vmatpush1.msra.mxu0 0.0
  %696 = vmatprep.subr.mxu0 0.0
  %697 = vmatpush1.msra.mxu0 0.0
  %698 = vmatprep.subr.mxu0 0.0
  %699 = vmatpush1.msra.mxu0 0.0
  %700 = vmatprep.subr.mxu0 0.0
  %701 = vmatpush1.msra.mxu0 0.0
  %702 = vmatprep.subr.mxu0 0.0
  %703 = vmatpush1.msra.mxu0 0.0
  %704 = vmatprep.subr.mxu0 0.0
  %705 = vmatpush1.msra.mxu0 0.0
  %706 = vmatprep.subr.mxu0 0.0
  %707 = vmatpush1.msra.mxu0 0.0
  %708 = vmatprep.subr.mxu0 0.0
  %709 = vmatpush1.msra.mxu0 0.0
  %710 = vmatprep.subr.mxu0 0.0
  %711 = vmatpush1.msra.mxu0 0.0
  %712 = vmatprep.subr.mxu0 0.0
  %713 = vmatpush1.msra.mxu0 0.0
  %714 = vmatprep.subr.mxu0 0.0
  %715 = vmatpush1.msra.mxu0 0.0
  %716 = vmatprep.subr.mxu0 0.0
  %717 = vmatpush1.msra.mxu0 0.0
  %718 = vmatprep.subr.mxu0 0.0
  %719 = vmatpush1.msra.mxu0 0.0
  %720 = vmatprep.subr.mxu0 0.0
  %721 = vmatpush1.msra.mxu0 0.0
  %722 = vmatprep.subr.mxu0 0.0
  %723 = vmatpush1.msra.mxu0 0.0
  %724 = vmatprep.subr.mxu0 0.0
  %725 = vmatpush1.msra.mxu0 0.0
  %726 = vmatprep.subr.mxu0 0.0
  %727 = vmatpush1.msra.mxu0 0.0
  %728 = vmatprep.subr.mxu0 0.0
  %729 = vmatpush1.msra.mxu0 0.0
  %730 = vmatprep.subr.mxu0 0.0
  %731 = vmatpush1.msra.mxu0 0.0
  %732 = vmatprep.subr.mxu0 0.0
  %733 = vmatpush1.msra.mxu0 0.0
  %734 = vmatprep.subr.mxu0 0.0
  %735 = vmatpush1.msra.mxu0 0.0
  %736 = vmatprep.subr.mxu0 0.0
  %737 = vmatpush1.msra.mxu0 0.0
  %738 = vmatprep.subr.mxu0 0.0
  %739 = vmatpush1.msra.mxu0 0.0
  %740 = vmatprep.mubr.f32.mxu0 0.0
  %741 = vmatmul.mubr.f32.gmra.mrb[0].mxu0 %v674
  %v742 = vpop.f32.mrb[0].mxu0
  %v743 = vadd.f32 %v173, %v742
  %v744 = vpop.f32.mrb[0].mxu0
  %745 = vdwg.mxu0
  %747 = vrot.lane.b32.xlu0 %v668, 96
  %v748 = vpop.permute.xlu0 %747
  %v749 = vsel %vm175, %v748, 0
  %751 = vmatprep.subr.mxu0 0.0
  %752 = vmatpush1.msra.mxu0 %v163
  %753 = vmatprep.subr.mxu0 0.0
  %754 = vmatpush1.msra.mxu0 0.0
  %755 = vmatprep.subr.mxu0 0.0
  %756 = vmatpush1.msra.mxu0 0.0
  %757 = vmatprep.subr.mxu0 0.0
  %758 = vmatpush1.msra.mxu0 0.0
  %759 = vmatprep.subr.mxu0 0.0
  %760 = vmatpush1.msra.mxu0 0.0
  %761 = vmatprep.subr.mxu0 0.0
  %762 = vmatpush1.msra.mxu0 0.0
  %763 = vmatprep.subr.mxu0 0.0
  %764 = vmatpush1.msra.mxu0 0.0
  %765 = vmatprep.subr.mxu0 0.0
  %766 = vmatpush1.msra.mxu0 0.0
  %767 = vmatprep.subr.mxu0 0.0
  %768 = vmatpush1.msra.mxu0 0.0
  %769 = vmatprep.subr.mxu0 0.0
  %770 = vmatpush1.msra.mxu0 0.0
  %771 = vmatprep.subr.mxu0 0.0
  %772 = vmatpush1.msra.mxu0 0.0
  %773 = vmatprep.subr.mxu0 0.0
  %774 = vmatpush1.msra.mxu0 0.0
  %775 = vmatprep.subr.mxu0 0.0
  %776 = vmatpush1.msra.mxu0 0.0
  %777 = vmatprep.subr.mxu0 0.0
  %778 = vmatpush1.msra.mxu0 0.0
  %779 = vmatprep.subr.mxu0 0.0
  %780 = vmatpush1.msra.mxu0 0.0
  %781 = vmatprep.subr.mxu0 0.0
  %782 = vmatpush1.msra.mxu0 0.0
  %783 = vmatprep.subr.mxu0 0.0
  %784 = vmatpush1.msra.mxu0 0.0
  %785 = vmatprep.subr.mxu0 0.0
  %786 = vmatpush1.msra.mxu0 0.0
  %787 = vmatprep.subr.mxu0 0.0
  %788 = vmatpush1.msra.mxu0 0.0
  %789 = vmatprep.subr.mxu0 0.0
  %790 = vmatpush1.msra.mxu0 0.0
  %791 = vmatprep.subr.mxu0 0.0
  %792 = vmatpush1.msra.mxu0 0.0
  %793 = vmatprep.subr.mxu0 0.0
  %794 = vmatpush1.msra.mxu0 0.0
  %795 = vmatprep.subr.mxu0 0.0
  %796 = vmatpush1.msra.mxu0 0.0
  %797 = vmatprep.subr.mxu0 0.0
  %798 = vmatpush1.msra.mxu0 0.0
  %799 = vmatprep.subr.mxu0 0.0
  %800 = vmatpush1.msra.mxu0 0.0
  %801 = vmatprep.subr.mxu0 0.0
  %802 = vmatpush1.msra.mxu0 0.0
  %803 = vmatprep.subr.mxu0 0.0
  %804 = vmatpush1.msra.mxu0 0.0
  %805 = vmatprep.subr.mxu0 0.0
  %806 = vmatpush1.msra.mxu0 0.0
  %807 = vmatprep.subr.mxu0 0.0
  %808 = vmatpush1.msra.mxu0 0.0
  %809 = vmatprep.subr.mxu0 0.0
  %810 = vmatpush1.msra.mxu0 0.0
  %811 = vmatprep.subr.mxu0 0.0
  %812 = vmatpush1.msra.mxu0 0.0
  %813 = vmatprep.subr.mxu0 0.0
  %814 = vmatpush1.msra.mxu0 0.0
  %815 = vmatprep.mubr.f32.mxu0 0.0
  %816 = vmatmul.mubr.f32.gmra.mrb[0].mxu0 %v749
  %v817 = vpop.f32.mrb[0].mxu0
  %v818 = vadd.f32 %v253, %v817
  %v819 = vpop.f32.mrb[0].mxu0
  %820 = vdwg.mxu0
  %v821 = vadd.f32 %v149, %v743
  %v822 = vxor.u32 %v821, 2147483648
  %v823 = vmul.f32 %v822, 1.442695
  %v824 = vpow.pop %v823
  %v825 = vadd.f32 %v824, 1.0
  %v826 = vrcp.pop %v825
  %v827 = vmul.f32 1.0, %v826
  %829 = vrot.lane.b32.xlu0 %v743, 112
  %v830 = vpop.permute.xlu0 %829
  %v832 = vmul.f32 %v827, %v830
  %834 = vrot.lane.b32.xlu0 %v832, 16
  %v835 = vpop.permute.xlu0 %834
  %v837 = vadd.f32 %v149, %v835
  %v838 = vtanh.pop %v837
  %v839 = vsub.f32 1.0, %v827
  %841 = vrot.lane.b32.xlu0 %v838, 120
  %v842 = vpop.permute.xlu0 %841
  %v844 = vmul.f32 %v839, %v842
  %845 = vrot.lane.b32.xlu0 %v656, 8
  %v846 = vpop.permute.xlu0 %845
  %v848 = vmul.f32 %v827, %v846
  %v849 = vadd.f32 %v844, %v848
  %v851 = vrot.slane %v818, 4
  %852 = vrot.lane.b32.xlu0 %v851, 24
  %v853 = vpop.permute.xlu0 %852
  %v855 = vadd.f32 %v154, %v853
  %v856 = vxor.u32 %v855, 2147483648
  %v857 = vmul.f32 %v856, 1.442695
  %v858 = vpow.pop %v857
  %v859 = vadd.f32 %v858, 1.0
  %v860 = vrcp.pop %v859
  %v861 = vmul.f32 1.0, %v860
  %862 = vrot.lane.b32.xlu0 %v851, 8
  %v863 = vpop.permute.xlu0 %862
  %v865 = vmul.f32 %v861, %v863
  %867 = vrot.lane.b32.xlu0 %v865, 16
  %v868 = vpop.permute.xlu0 %867
  %v870 = vadd.f32 %v154, %v868
  %v871 = vtanh.pop %v870
  %v872 = vsub.f32 1.0, %v861
  %874 = vrot.lane.b32.xlu0 %v871, 120
  %v875 = vpop.permute.xlu0 %874
  %v877 = vmul.f32 %v872, %v875
  %v878 = vrot.slane %v668, 4
  %v880 = vmul.f32 %v861, %v878
  %v881 = vadd.f32 %v877, %v880
  %883 = vset.pattern.permute.xlu0 0
  %884 = vperm.xlu0 %883, %v670
  %v885 = vpop.permute.xlu0 %884
  %v887 = vmul.f32 %v885, %v849
  %889 = vset.pattern.permute.xlu0 0
  %890 = vperm.xlu0 %889, %v672
  %v891 = vpop.permute.xlu0 %890
  %v894 = vrot.slane %v881, 4
  %895 = vrot.lane.b32.xlu0 %v894, 96
  %v896 = vpop.permute.xlu0 %895
  %v898 = vmul.f32 %v891, %v896
  %v899 = vsub.f32 1.0, %v670
  %901 = vset.pattern.permute.xlu0 0
  %902 = vperm.xlu0 %901, %v899
  %v903 = vpop.permute.xlu0 %902
  %v905 = vmul.f32 %v903, %v656
  %907 = vrot.lane.b32.xlu0 %v905, 8
  %v908 = vpop.permute.xlu0 %907
  %v910 = vadd.f32 %v887, %v908
  %v911 = vsub.f32 1.0, %v672
  %913 = vset.pattern.permute.xlu0 0
  %914 = vperm.xlu0 %913, %v911
  %v915 = vpop.permute.xlu0 %914
  %v917 = vmul.f32 %v915, %v668
  %919 = vrot.lane.b32.xlu0 %v917, 96
  %v920 = vpop.permute.xlu0 %919
  %v922 = vadd.f32 %v898, %v920
  %s923 = scalar_lea.vmem %s1, 12
  %v924 = vld [vmem:[%s923] sm:$0xf]
  %s925 = scalar_lea.vmem %s1, 16
  %v926 = vld [vmem:[%s925] sm:$0xf]
  %928 = vrot.lane.b32.xlu0 %v910, 120
  %v929 = vpop.permute.xlu0 %928
  %v930 = vsel %vm175, %v929, 0
  %932 = vmatprep.subr.mxu0 0.0
  %933 = vmatpush1.msra.mxu0 %v162
  %934 = vmatprep.subr.mxu0 0.0
  %935 = vmatpush1.msra.mxu0 0.0
  %936 = vmatprep.subr.mxu0 0.0
  %937 = vmatpush1.msra.mxu0 0.0
  %938 = vmatprep.subr.mxu0 0.0
  %939 = vmatpush1.msra.mxu0 0.0
  %940 = vmatprep.subr.mxu0 0.0
  %941 = vmatpush1.msra.mxu0 0.0
  %942 = vmatprep.subr.mxu0 0.0
  %943 = vmatpush1.msra.mxu0 0.0
  %944 = vmatprep.subr.mxu0 0.0
  %945 = vmatpush1.msra.mxu0 0.0
  %946 = vmatprep.subr.mxu0 0.0
  %947 = vmatpush1.msra.mxu0 0.0
  %948 = vmatprep.subr.mxu0 0.0
  %949 = vmatpush1.msra.mxu0 0.0
  %950 = vmatprep.subr.mxu0 0.0
  %951 = vmatpush1.msra.mxu0 0.0
  %952 = vmatprep.subr.mxu0 0.0
  %953 = vmatpush1.msra.mxu0 0.0
  %954 = vmatprep.subr.mxu0 0.0
  %955 = vmatpush1.msra.mxu0 0.0
  %956 = vmatprep.subr.mxu0 0.0
  %957 = vmatpush1.msra.mxu0 0.0
  %958 = vmatprep.subr.mxu0 0.0
  %959 = vmatpush1.msra.mxu0 0.0
  %960 = vmatprep.subr.mxu0 0.0
  %961 = vmatpush1.msra.mxu0 0.0
  %962 = vmatprep.subr.mxu0 0.0
  %963 = vmatpush1.msra.mxu0 0.0
  %964 = vmatprep.subr.mxu0 0.0
  %965 = vmatpush1.msra.mxu0 0.0
  %966 = vmatprep.subr.mxu0 0.0
  %967 = vmatpush1.msra.mxu0 0.0
  %968 = vmatprep.subr.mxu0 0.0
  %969 = vmatpush1.msra.mxu0 0.0
  %970 = vmatprep.subr.mxu0 0.0
  %971 = vmatpush1.msra.mxu0 0.0
  %972 = vmatprep.subr.mxu0 0.0
  %973 = vmatpush1.msra.mxu0 0.0
  %974 = vmatprep.subr.mxu0 0.0
  %975 = vmatpush1.msra.mxu0 0.0
  %976 = vmatprep.subr.mxu0 0.0
  %977 = vmatpush1.msra.mxu0 0.0
  %978 = vmatprep.subr.mxu0 0.0
  %979 = vmatpush1.msra.mxu0 0.0
  %980 = vmatprep.subr.mxu0 0.0
  %981 = vmatpush1.msra.mxu0 0.0
  %982 = vmatprep.subr.mxu0 0.0
  %983 = vmatpush1.msra.mxu0 0.0
  %984 = vmatprep.subr.mxu0 0.0
  %985 = vmatpush1.msra.mxu0 0.0
  %986 = vmatprep.subr.mxu0 0.0
  %987 = vmatpush1.msra.mxu0 0.0
  %988 = vmatprep.subr.mxu0 0.0
  %989 = vmatpush1.msra.mxu0 0.0
  %990 = vmatprep.subr.mxu0 0.0
  %991 = vmatpush1.msra.mxu0 0.0
  %992 = vmatprep.subr.mxu0 0.0
  %993 = vmatpush1.msra.mxu0 0.0
  %994 = vmatprep.subr.mxu0 0.0
  %995 = vmatpush1.msra.mxu0 0.0
  %996 = vmatprep.mubr.f32.mxu0 0.0
  %997 = vmatmul.mubr.f32.gmra.mrb[0].mxu0 %v930
  %v998 = vpop.f32.mrb[0].mxu0
  %v999 = vadd.f32 %v173, %v998
  %v1000 = vpop.f32.mrb[0].mxu0
  %1001 = vdwg.mxu0
  %v1003 = vsel %vm175, %v922, 0
  %1005 = vmatprep.subr.mxu0 0.0
  %1006 = vmatpush1.msra.mxu0 %v163
  %1007 = vmatprep.subr.mxu0 0.0
  %1008 = vmatpush1.msra.mxu0 0.0
  %1009 = vmatprep.subr.mxu0 0.0
  %1010 = vmatpush1.msra.mxu0 0.0
  %1011 = vmatprep.subr.mxu0 0.0
  %1012 = vmatpush1.msra.mxu0 0.0
  %1013 = vmatprep.subr.mxu0 0.0
  %1014 = vmatpush1.msra.mxu0 0.0
  %1015 = vmatprep.subr.mxu0 0.0
  %1016 = vmatpush1.msra.mxu0 0.0
  %1017 = vmatprep.subr.mxu0 0.0
  %1018 = vmatpush1.msra.mxu0 0.0
  %1019 = vmatprep.subr.mxu0 0.0
  %1020 = vmatpush1.msra.mxu0 0.0
  %1021 = vmatprep.subr.mxu0 0.0
  %1022 = vmatpush1.msra.mxu0 0.0
  %1023 = vmatprep.subr.mxu0 0.0
  %1024 = vmatpush1.msra.mxu0 0.0
  %1025 = vmatprep.subr.mxu0 0.0
  %1026 = vmatpush1.msra.mxu0 0.0
  %1027 = vmatprep.subr.mxu0 0.0
  %1028 = vmatpush1.msra.mxu0 0.0
  %1029 = vmatprep.subr.mxu0 0.0
  %1030 = vmatpush1.msra.mxu0 0.0
  %1031 = vmatprep.subr.mxu0 0.0
  %1032 = vmatpush1.msra.mxu0 0.0
  %1033 = vmatprep.subr.mxu0 0.0
  %1034 = vmatpush1.msra.mxu0 0.0
  %1035 = vmatprep.subr.mxu0 0.0
  %1036 = vmatpush1.msra.mxu0 0.0
  %1037 = vmatprep.subr.mxu0 0.0
  %1038 = vmatpush1.msra.mxu0 0.0
  %1039 = vmatprep.subr.mxu0 0.0
  %1040 = vmatpush1.msra.mxu0 0.0
  %1041 = vmatprep.subr.mxu0 0.0
  %1042 = vmatpush1.msra.mxu0 0.0
  %1043 = vmatprep.subr.mxu0 0.0
  %1044 = vmatpush1.msra.mxu0 0.0
  %1045 = vmatprep.subr.mxu0 0.0
  %1046 = vmatpush1.msra.mxu0 0.0
  %1047 = vmatprep.subr.mxu0 0.0
  %1048 = vmatpush1.msra.mxu0 0.0
  %1049 = vmatprep.subr.mxu0 0.0
  %1050 = vmatpush1.msra.mxu0 0.0
  %1051 = vmatprep.subr.mxu0 0.0
  %1052 = vmatpush1.msra.mxu0 0.0
  %1053 = vmatprep.subr.mxu0 0.0
  %1054 = vmatpush1.msra.mxu0 0.0
  %1055 = vmatprep.subr.mxu0 0.0
  %1056 = vmatpush1.msra.mxu0 0.0
  %1057 = vmatprep.subr.mxu0 0.0
  %1058 = vmatpush1.msra.mxu0 0.0
  %1059 = vmatprep.subr.mxu0 0.0
  %1060 = vmatpush1.msra.mxu0 0.0
  %1061 = vmatprep.subr.mxu0 0.0
  %1062 = vmatpush1.msra.mxu0 0.0
  %1063 = vmatprep.subr.mxu0 0.0
  %1064 = vmatpush1.msra.mxu0 0.0
  %1065 = vmatprep.subr.mxu0 0.0
  %1066 = vmatpush1.msra.mxu0 0.0
  %1067 = vmatprep.subr.mxu0 0.0
  %1068 = vmatpush1.msra.mxu0 0.0
  %1069 = vmatprep.mubr.f32.mxu0 0.0
  %1070 = vmatmul.mubr.f32.gmra.mrb[0].mxu0 %v1003
  %v1071 = vpop.f32.mrb[0].mxu0
  %v1072 = vadd.f32 %v253, %v1071
  %v1073 = vpop.f32.mrb[0].mxu0
  %1074 = vdwg.mxu0
  %v1076 = vrot.slane %v999, 4
  %v1078 = vadd.f32 %v149, %v1076
  %v1079 = vxor.u32 %v1078, 2147483648
  %v1080 = vmul.f32 %v1079, 1.442695
  %v1081 = vpow.pop %v1080
  %v1082 = vadd.f32 %v1081, 1.0
  %v1083 = vrcp.pop %v1082
  %v1084 = vmul.f32 1.0, %v1083
  %1085 = vrot.lane.b32.xlu0 %v1076, 112
  %v1086 = vpop.permute.xlu0 %1085
  %v1088 = vmul.f32 %v1084, %v1086
  %1090 = vrot.lane.b32.xlu0 %v1088, 16
  %v1091 = vpop.permute.xlu0 %1090
  %v1093 = vadd.f32 %v149, %v1091
  %v1094 = vtanh.pop %v1093
  %v1095 = vsub.f32 1.0, %v1084
  %1097 = vrot.lane.b32.xlu0 %v1094, 120
  %v1098 = vpop.permute.xlu0 %1097
  %v1100 = vmul.f32 %v1095, %v1098
  %v1101 = vrot.slane %v910, 4
  %v1103 = vmul.f32 %v1084, %v1101
  %v1104 = vadd.f32 %v1100, %v1103
  %1106 = vrot.lane.b32.xlu0 %v1072, 24
  %v1107 = vpop.permute.xlu0 %1106
  %v1109 = vadd.f32 %v154, %v1107
  %v1110 = vxor.u32 %v1109, 2147483648
  %v1111 = vmul.f32 %v1110, 1.442695
  %v1112 = vpow.pop %v1111
  %v1113 = vadd.f32 %v1112, 1.0
  %v1114 = vrcp.pop %v1113
  %v1115 = vmul.f32 1.0, %v1114
  %1116 = vrot.lane.b32.xlu0 %v1072, 8
  %v1117 = vpop.permute.xlu0 %1116
  %v1119 = vmul.f32 %v1115, %v1117
  %1121 = vrot.lane.b32.xlu0 %v1119, 16
  %v1122 = vpop.permute.xlu0 %1121
  %v1124 = vadd.f32 %v154, %v1122
  %v1125 = vtanh.pop %v1124
  %v1126 = vsub.f32 1.0, %v1115
  %1128 = vrot.lane.b32.xlu0 %v1125, 120
  %v1129 = vpop.permute.xlu0 %1128
  %v1131 = vmul.f32 %v1126, %v1129
  %1132 = vrot.lane.b32.xlu0 %v922, 32
  %v1133 = vpop.permute.xlu0 %1132
  %v1135 = vmul.f32 %v1115, %v1133
  %v1136 = vadd.f32 %v1131, %v1135
  %1138 = vset.pattern.permute.xlu0 0
  %1139 = vperm.xlu0 %1138, %v924
  %v1140 = vpop.permute.xlu0 %1139
  %v1143 = vrot.slane %v1104, 4
  %1144 = vrot.lane.b32.xlu0 %v1143, 120
  %v1145 = vpop.permute.xlu0 %1144
  %v1147 = vmul.f32 %v1140, %v1145
  %1149 = vset.pattern.permute.xlu0 0
  %1150 = vperm.xlu0 %1149, %v926
  %v1151 = vpop.permute.xlu0 %1150
  %v1153 = vmul.f32 %v1151, %v1136
  %v1154 = vsub.f32 1.0, %v924
  %1156 = vset.pattern.permute.xlu0 0
  %1157 = vperm.xlu0 %1156, %v1154
  %v1158 = vpop.permute.xlu0 %1157
  %v1160 = vmul.f32 %v1158, %v910
  %1162 = vrot.lane.b32.xlu0 %v1160, 120
  %v1163 = vpop.permute.xlu0 %1162
  %v1165 = vadd.f32 %v1147, %v1163
  %v1166 = vsub.f32 1.0, %v926
  %1168 = vset.pattern.permute.xlu0 0
  %1169 = vperm.xlu0 %1168, %v1166
  %v1170 = vpop.permute.xlu0 %1169
  %v1172 = vmul.f32 %v1170, %v922
  %1174 = vrot.lane.b32.xlu0 %v1172, 32
  %v1175 = vpop.permute.xlu0 %1174
  %v1177 = vadd.f32 %v1153, %v1175
  %v1179 = vsel %vm175, %v1165, 0
  %1181 = vmatprep.subr.mxu0 0.0
  %1182 = vmatpush1.msra.mxu0 %v162
  %1183 = vmatprep.subr.mxu0 0.0
  %1184 = vmatpush1.msra.mxu0 0.0
  %1185 = vmatprep.subr.mxu0 0.0
  %1186 = vmatpush1.msra.mxu0 0.0
  %1187 = vmatprep.subr.mxu0 0.0
  %1188 = vmatpush1.msra.mxu0 0.0
  %1189 = vmatprep.subr.mxu0 0.0
  %1190 = vmatpush1.msra.mxu0 0.0
  %1191 = vmatprep.subr.mxu0 0.0
  %1192 = vmatpush1.msra.mxu0 0.0
  %1193 = vmatprep.subr.mxu0 0.0
  %1194 = vmatpush1.msra.mxu0 0.0
  %1195 = vmatprep.subr.mxu0 0.0
  %1196 = vmatpush1.msra.mxu0 0.0
  %1197 = vmatprep.subr.mxu0 0.0
  %1198 = vmatpush1.msra.mxu0 0.0
  %1199 = vmatprep.subr.mxu0 0.0
  %1200 = vmatpush1.msra.mxu0 0.0
  %1201 = vmatprep.subr.mxu0 0.0
  %1202 = vmatpush1.msra.mxu0 0.0
  %1203 = vmatprep.subr.mxu0 0.0
  %1204 = vmatpush1.msra.mxu0 0.0
  %1205 = vmatprep.subr.mxu0 0.0
  %1206 = vmatpush1.msra.mxu0 0.0
  %1207 = vmatprep.subr.mxu0 0.0
  %1208 = vmatpush1.msra.mxu0 0.0
  %1209 = vmatprep.subr.mxu0 0.0
  %1210 = vmatpush1.msra.mxu0 0.0
  %1211 = vmatprep.subr.mxu0 0.0
  %1212 = vmatpush1.msra.mxu0 0.0
  %1213 = vmatprep.subr.mxu0 0.0
  %1214 = vmatpush1.msra.mxu0 0.0
  %1215 = vmatprep.subr.mxu0 0.0
  %1216 = vmatpush1.msra.mxu0 0.0
  %1217 = vmatprep.subr.mxu0 0.0
  %1218 = vmatpush1.msra.mxu0 0.0
  %1219 = vmatprep.subr.mxu0 0.0
  %1220 = vmatpush1.msra.mxu0 0.0
  %1221 = vmatprep.subr.mxu0 0.0
  %1222 = vmatpush1.msra.mxu0 0.0
  %1223 = vmatprep.subr.mxu0 0.0
  %1224 = vmatpush1.msra.mxu0 0.0
  %1225 = vmatprep.subr.mxu0 0.0
  %1226 = vmatpush1.msra.mxu0 0.0
  %1227 = vmatprep.subr.mxu0 0.0
  %1228 = vmatpush1.msra.mxu0 0.0
  %1229 = vmatprep.subr.mxu0 0.0
  %1230 = vmatpush1.msra.mxu0 0.0
  %1231 = vmatprep.subr.mxu0 0.0
  %1232 = vmatpush1.msra.mxu0 0.0
  %1233 = vmatprep.subr.mxu0 0.0
  %1234 = vmatpush1.msra.mxu0 0.0
  %1235 = vmatprep.subr.mxu0 0.0
  %1236 = vmatpush1.msra.mxu0 0.0
  %1237 = vmatprep.subr.mxu0 0.0
  %1238 = vmatpush1.msra.mxu0 0.0
  %1239 = vmatprep.subr.mxu0 0.0
  %1240 = vmatpush1.msra.mxu0 0.0
  %1241 = vmatprep.subr.mxu0 0.0
  %1242 = vmatpush1.msra.mxu0 0.0
  %1243 = vmatprep.subr.mxu0 0.0
  %1244 = vmatpush1.msra.mxu0 0.0
  %1245 = vmatprep.mubr.f32.mxu0 0.0
  %1246 = vmatmul.mubr.f32.gmra.mrb[0].mxu0 %v1179
  %v1247 = vpop.f32.mrb[0].mxu0
  %v1248 = vadd.f32 %v173, %v1247
  %v1249 = vpop.f32.mrb[0].mxu0
  %1250 = vdwg.mxu0
  %1252 = vrot.lane.b32.xlu0 %v1177, 96
  %v1253 = vpop.permute.xlu0 %1252
  %v1254 = vsel %vm175, %v1253, 0
  %1256 = vmatprep.subr.mxu0 0.0
  %1257 = vmatpush1.msra.mxu0 %v163
  %1258 = vmatprep.subr.mxu0 0.0
  %1259 = vmatpush1.msra.mxu0 0.0
  %1260 = vmatprep.subr.mxu0 0.0
  %1261 = vmatpush1.msra.mxu0 0.0
  %1262 = vmatprep.subr.mxu0 0.0
  %1263 = vmatpush1.msra.mxu0 0.0
  %1264 = vmatprep.subr.mxu0 0.0
  %1265 = vmatpush1.msra.mxu0 0.0
  %1266 = vmatprep.subr.mxu0 0.0
  %1267 = vmatpush1.msra.mxu0 0.0
  %1268 = vmatprep.subr.mxu0 0.0
  %1269 = vmatpush1.msra.mxu0 0.0
  %1270 = vmatprep.subr.mxu0 0.0
  %1271 = vmatpush1.msra.mxu0 0.0
  %1272 = vmatprep.subr.mxu0 0.0
  %1273 = vmatpush1.msra.mxu0 0.0
  %1274 = vmatprep.subr.mxu0 0.0
  %1275 = vmatpush1.msra.mxu0 0.0
  %1276 = vmatprep.subr.mxu0 0.0
  %1277 = vmatpush1.msra.mxu0 0.0
  %1278 = vmatprep.subr.mxu0 0.0
  %1279 = vmatpush1.msra.mxu0 0.0
  %1280 = vmatprep.subr.mxu0 0.0
  %1281 = vmatpush1.msra.mxu0 0.0
  %1282 = vmatprep.subr.mxu0 0.0
  %1283 = vmatpush1.msra.mxu0 0.0
  %1284 = vmatprep.subr.mxu0 0.0
  %1285 = vmatpush1.msra.mxu0 0.0
  %1286 = vmatprep.subr.mxu0 0.0
  %1287 = vmatpush1.msra.mxu0 0.0
  %1288 = vmatprep.subr.mxu0 0.0
  %1289 = vmatpush1.msra.mxu0 0.0
  %1290 = vmatprep.subr.mxu0 0.0
  %1291 = vmatpush1.msra.mxu0 0.0
  %1292 = vmatprep.subr.mxu0 0.0
  %1293 = vmatpush1.msra.mxu0 0.0
  %1294 = vmatprep.subr.mxu0 0.0
  %1295 = vmatpush1.msra.mxu0 0.0
  %1296 = vmatprep.subr.mxu0 0.0
  %1297 = vmatpush1.msra.mxu0 0.0
  %1298 = vmatprep.subr.mxu0 0.0
  %1299 = vmatpush1.msra.mxu0 0.0
  %1300 = vmatprep.subr.mxu0 0.0
  %1301 = vmatpush1.msra.mxu0 0.0
  %1302 = vmatprep.subr.mxu0 0.0
  %1303 = vmatpush1.msra.mxu0 0.0
  %1304 = vmatprep.subr.mxu0 0.0
  %1305 = vmatpush1.msra.mxu0 0.0
  %1306 = vmatprep.subr.mxu0 0.0
  %1307 = vmatpush1.msra.mxu0 0.0
  %1308 = vmatprep.subr.mxu0 0.0
  %1309 = vmatpush1.msra.mxu0 0.0
  %1310 = vmatprep.subr.mxu0 0.0
  %1311 = vmatpush1.msra.mxu0 0.0
  %1312 = vmatprep.subr.mxu0 0.0
  %1313 = vmatpush1.msra.mxu0 0.0
  %1314 = vmatprep.subr.mxu0 0.0
  %1315 = vmatpush1.msra.mxu0 0.0
  %1316 = vmatprep.subr.mxu0 0.0
  %1317 = vmatpush1.msra.mxu0 0.0
  %1318 = vmatprep.subr.mxu0 0.0
  %1319 = vmatpush1.msra.mxu0 0.0
  %1320 = vmatprep.mubr.f32.mxu0 0.0
  %1321 = vmatmul.mubr.f32.gmra.mrb[0].mxu0 %v1254
  %v1322 = vpop.f32.mrb[0].mxu0
  %v1323 = vadd.f32 %v253, %v1322
  %v1324 = vpop.f32.mrb[0].mxu0
  %1325 = vdwg.mxu0
  %v1326 = vadd.f32 %v154, %v1248
  %v1327 = vxor.u32 %v1326, 2147483648
  %v1328 = vmul.f32 %v1327, 1.442695
  %v1329 = vpow.pop %v1328
  %v1330 = vadd.f32 %v1329, 1.0
  %v1331 = vrcp.pop %v1330
  %v1332 = vmul.f32 1.0, %v1331
  %1334 = vrot.lane.b32.xlu0 %v1248, 112
  %v1335 = vpop.permute.xlu0 %1334
  %v1337 = vmul.f32 %v1332, %v1335
  %1339 = vrot.lane.b32.xlu0 %v1337, 16
  %v1340 = vpop.permute.xlu0 %1339
  %v1342 = vadd.f32 %v154, %v1340
  %v1343 = vtanh.pop %v1342
  %v1344 = vsub.f32 1.0, %v1332
  %1346 = vrot.lane.b32.xlu0 %v1343, 120
  %v1347 = vpop.permute.xlu0 %1346
  %v1349 = vmul.f32 %v1344, %v1347
  %1350 = vrot.lane.b32.xlu0 %v1165, 8
  %v1351 = vpop.permute.xlu0 %1350
  %v1353 = vmul.f32 %v1332, %v1351
  %v1354 = vadd.f32 %v1349, %v1353
  %v1356 = vrot.slane %v1323, 4
  %1357 = vrot.lane.b32.xlu0 %v1356, 24
  %v1358 = vpop.permute.xlu0 %1357
  %v1360 = vadd.f32 %v149, %v1358
  %v1361 = vxor.u32 %v1360, 2147483648
  %v1362 = vmul.f32 %v1361, 1.442695
  %v1363 = vpow.pop %v1362
  %v1364 = vadd.f32 %v1363, 1.0
  %v1365 = vrcp.pop %v1364
  %v1366 = vmul.f32 1.0, %v1365
  %1367 = vrot.lane.b32.xlu0 %v1356, 8
  %v1368 = vpop.permute.xlu0 %1367
  %v1370 = vmul.f32 %v1366, %v1368
  %1372 = vrot.lane.b32.xlu0 %v1370, 16
  %v1373 = vpop.permute.xlu0 %1372
  %v1375 = vadd.f32 %v149, %v1373
  %v1376 = vtanh.pop %v1375
  %v1377 = vsub.f32 1.0, %v1366
  %1379 = vrot.lane.b32.xlu0 %v1376, 120
  %v1380 = vpop.permute.xlu0 %1379
  %v1382 = vmul.f32 %v1377, %v1380
  %v1383 = vrot.slane %v1177, 4
  %v1385 = vmul.f32 %v1366, %v1383
  %v1386 = vadd.f32 %v1382, %v1385
  %v1387 = vmul.f32 %v1151, %v1354
  %v1389 = vrot.slane %v1386, 4
  %1390 = vrot.lane.b32.xlu0 %v1389, 96
  %v1391 = vpop.permute.xlu0 %1390
  %v1393 = vmul.f32 %v1140, %v1391
  %v1394 = vmul.f32 %v1170, %v1165
  %1396 = vrot.lane.b32.xlu0 %v1394, 8
  %v1397 = vpop.permute.xlu0 %1396
  %v1399 = vadd.f32 %v1387, %v1397
  %v1400 = vmul.f32 %v1158, %v1177
  %1402 = vrot.lane.b32.xlu0 %v1400, 96
  %v1403 = vpop.permute.xlu0 %1402
  %v1405 = vadd.f32 %v1393, %v1403
  %1407 = vrot.lane.b32.xlu0 %v1399, 120
  %v1408 = vpop.permute.xlu0 %1407
  %v1409 = vsel %vm175, %v1408, 0
  %1411 = vmatprep.subr.mxu0 0.0
  %1412 = vmatpush1.msra.mxu0 %v162
  %1413 = vmatprep.subr.mxu0 0.0
  %1414 = vmatpush1.msra.mxu0 0.0
  %1415 = vmatprep.subr.mxu0 0.0
  %1416 = vmatpush1.msra.mxu0 0.0
  %1417 = vmatprep.subr.mxu0 0.0
  %1418 = vmatpush1.msra.mxu0 0.0
  %1419 = vmatprep.subr.mxu0 0.0
  %1420 = vmatpush1.msra.mxu0 0.0
  %1421 = vmatprep.subr.mxu0 0.0
  %1422 = vmatpush1.msra.mxu0 0.0
  %1423 = vmatprep.subr.mxu0 0.0
  %1424 = vmatpush1.msra.mxu0 0.0
  %1425 = vmatprep.subr.mxu0 0.0
  %1426 = vmatpush1.msra.mxu0 0.0
  %1427 = vmatprep.subr.mxu0 0.0
  %1428 = vmatpush1.msra.mxu0 0.0
  %1429 = vmatprep.subr.mxu0 0.0
  %1430 = vmatpush1.msra.mxu0 0.0
  %1431 = vmatprep.subr.mxu0 0.0
  %1432 = vmatpush1.msra.mxu0 0.0
  %1433 = vmatprep.subr.mxu0 0.0
  %1434 = vmatpush1.msra.mxu0 0.0
  %1435 = vmatprep.subr.mxu0 0.0
  %1436 = vmatpush1.msra.mxu0 0.0
  %1437 = vmatprep.subr.mxu0 0.0
  %1438 = vmatpush1.msra.mxu0 0.0
  %1439 = vmatprep.subr.mxu0 0.0
  %1440 = vmatpush1.msra.mxu0 0.0
  %1441 = vmatprep.subr.mxu0 0.0
  %1442 = vmatpush1.msra.mxu0 0.0
  %1443 = vmatprep.subr.mxu0 0.0
  %1444 = vmatpush1.msra.mxu0 0.0
  %1445 = vmatprep.subr.mxu0 0.0
  %1446 = vmatpush1.msra.mxu0 0.0
  %1447 = vmatprep.subr.mxu0 0.0
  %1448 = vmatpush1.msra.mxu0 0.0
  %1449 = vmatprep.subr.mxu0 0.0
  %1450 = vmatpush1.msra.mxu0 0.0
  %1451 = vmatprep.subr.mxu0 0.0
  %1452 = vmatpush1.msra.mxu0 0.0
  %1453 = vmatprep.subr.mxu0 0.0
  %1454 = vmatpush1.msra.mxu0 0.0
  %1455 = vmatprep.subr.mxu0 0.0
  %1456 = vmatpush1.msra.mxu0 0.0
  %1457 = vmatprep.subr.mxu0 0.0
  %1458 = vmatpush1.msra.mxu0 0.0
  %1459 = vmatprep.subr.mxu0 0.0
  %1460 = vmatpush1.msra.mxu0 0.0
  %1461 = vmatprep.subr.mxu0 0.0
  %1462 = vmatpush1.msra.mxu0 0.0
  %1463 = vmatprep.subr.mxu0 0.0
  %1464 = vmatpush1.msra.mxu0 0.0
  %1465 = vmatprep.subr.mxu0 0.0
  %1466 = vmatpush1.msra.mxu0 0.0
  %1467 = vmatprep.subr.mxu0 0.0
  %1468 = vmatpush1.msra.mxu0 0.0
  %1469 = vmatprep.subr.mxu0 0.0
  %1470 = vmatpush1.msra.mxu0 0.0
  %1471 = vmatprep.subr.mxu0 0.0
  %1472 = vmatpush1.msra.mxu0 0.0
  %1473 = vmatprep.subr.mxu0 0.0
  %1474 = vmatpush1.msra.mxu0 0.0
  %1475 = vmatprep.mubr.f32.mxu0 0.0
  %1476 = vmatmul.mubr.f32.gmra.mrb[0].mxu0 %v1409
  %v1477 = vpop.f32.mrb[0].mxu0
  %v1478 = vadd.f32 %v173, %v1477
  %v1479 = vpop.f32.mrb[0].mxu0
  %1480 = vdwg.mxu0
  %v1482 = vsel %vm175, %v1405, 0
  %1484 = vmatprep.subr.mxu0 0.0
  %1485 = vmatpush1.msra.mxu0 %v163
  %1486 = vmatprep.subr.mxu0 0.0
  %1487 = vmatpush1.msra.mxu0 0.0
  %1488 = vmatprep.subr.mxu0 0.0
  %1489 = vmatpush1.msra.mxu0 0.0
  %1490 = vmatprep.subr.mxu0 0.0
  %1491 = vmatpush1.msra.mxu0 0.0
  %1492 = vmatprep.subr.mxu0 0.0
  %1493 = vmatpush1.msra.mxu0 0.0
  %1494 = vmatprep.subr.mxu0 0.0
  %1495 = vmatpush1.msra.mxu0 0.0
  %1496 = vmatprep.subr.mxu0 0.0
  %1497 = vmatpush1.msra.mxu0 0.0
  %1498 = vmatprep.subr.mxu0 0.0
  %1499 = vmatpush1.msra.mxu0 0.0
  %1500 = vmatprep.subr.mxu0 0.0
  %1501 = vmatpush1.msra.mxu0 0.0
  %1502 = vmatprep.subr.mxu0 0.0
  %1503 = vmatpush1.msra.mxu0 0.0
  %1504 = vmatprep.subr.mxu0 0.0
  %1505 = vmatpush1.msra.mxu0 0.0
  %1506 = vmatprep.subr.mxu0 0.0
  %1507 = vmatpush1.msra.mxu0 0.0
  %1508 = vmatprep.subr.mxu0 0.0
  %1509 = vmatpush1.msra.mxu0 0.0
  %1510 = vmatprep.subr.mxu0 0.0
  %1511 = vmatpush1.msra.mxu0 0.0
  %1512 = vmatprep.subr.mxu0 0.0
  %1513 = vmatpush1.msra.mxu0 0.0
  %1514 = vmatprep.subr.mxu0 0.0
  %1515 = vmatpush1.msra.mxu0 0.0
  %1516 = vmatprep.subr.mxu0 0.0
  %1517 = vmatpush1.msra.mxu0 0.0
  %1518 = vmatprep.subr.mxu0 0.0
  %1519 = vmatpush1.msra.mxu0 0.0
  %1520 = vmatprep.subr.mxu0 0.0
  %1521 = vmatpush1.msra.mxu0 0.0
  %1522 = vmatprep.subr.mxu0 0.0
  %1523 = vmatpush1.msra.mxu0 0.0
  %1524 = vmatprep.subr.mxu0 0.0
  %1525 = vmatpush1.msra.mxu0 0.0
  %1526 = vmatprep.subr.mxu0 0.0
  %1527 = vmatpush1.msra.mxu0 0.0
  %1528 = vmatprep.subr.mxu0 0.0
  %1529 = vmatpush1.msra.mxu0 0.0
  %1530 = vmatprep.subr.mxu0 0.0
  %1531 = vmatpush1.msra.mxu0 0.0
  %1532 = vmatprep.subr.mxu0 0.0
  %1533 = vmatpush1.msra.mxu0 0.0
  %1534 = vmatprep.subr.mxu0 0.0
  %1535 = vmatpush1.msra.mxu0 0.0
  %1536 = vmatprep.subr.mxu0 0.0
  %1537 = vmatpush1.msra.mxu0 0.0
  %1538 = vmatprep.subr.mxu0 0.0
  %1539 = vmatpush1.msra.mxu0 0.0
  %1540 = vmatprep.subr.mxu0 0.0
  %1541 = vmatpush1.msra.mxu0 0.0
  %1542 = vmatprep.subr.mxu0 0.0
  %1543 = vmatpush1.msra.mxu0 0.0
  %1544 = vmatprep.subr.mxu0 0.0
  %1545 = vmatpush1.msra.mxu0 0.0
  %1546 = vmatprep.subr.mxu0 0.0
  %1547 = vmatpush1.msra.mxu0 0.0
  %1548 = vmatprep.mubr.f32.mxu0 0.0
  %1549 = vmatmul.mubr.f32.gmra.mrb[0].mxu0 %v1482
  %v1550 = vpop.f32.mrb[0].mxu0
  %v1551 = vadd.f32 %v253, %v1550
  %v1552 = vpop.f32.mrb[0].mxu0
  %1553 = vdwg.mxu0
  %v1555 = vrot.slane %v1478, 4
  %v1557 = vadd.f32 %v154, %v1555
  %v1558 = vxor.u32 %v1557, 2147483648
  %v1559 = vmul.f32 %v1558, 1.442695
  %v1560 = vpow.pop %v1559
  %v1561 = vadd.f32 %v1560, 1.0
  %v1562 = vrcp.pop %v1561
  %v1563 = vmul.f32 1.0, %v1562
  %1564 = vrot.lane.b32.xlu0 %v1555, 112
  %v1565 = vpop.permute.xlu0 %1564
  %v1567 = vmul.f32 %v1563, %v1565
  %1569 = vrot.lane.b32.xlu0 %v1567, 16
  %v1570 = vpop.permute.xlu0 %1569
  %v1572 = vadd.f32 %v154, %v1570
  %v1573 = vtanh.pop %v1572
  %v1574 = vsub.f32 1.0, %v1563
  %1576 = vrot.lane.b32.xlu0 %v1573, 120
  %v1577 = vpop.permute.xlu0 %1576
  %v1579 = vmul.f32 %v1574, %v1577
  %v1580 = vrot.slane %v1399, 4
  %v1582 = vmul.f32 %v1563, %v1580
  %v1583 = vadd.f32 %v1579, %v1582
  %1585 = vrot.lane.b32.xlu0 %v1551, 24
  %v1586 = vpop.permute.xlu0 %1585
  %v1588 = vadd.f32 %v149, %v1586
  %v1589 = vxor.u32 %v1588, 2147483648
  %v1590 = vmul.f32 %v1589, 1.442695
  %v1591 = vpow.pop %v1590
  %v1592 = vadd.f32 %v1591, 1.0
  %v1593 = vrcp.pop %v1592
  %v1594 = vmul.f32 1.0, %v1593
  %1595 = vrot.lane.b32.xlu0 %v1551, 8
  %v1596 = vpop.permute.xlu0 %1595
  %v1598 = vmul.f32 %v1594, %v1596
  %1600 = vrot.lane.b32.xlu0 %v1598, 16
  %v1601 = vpop.permute.xlu0 %1600
  %v1603 = vadd.f32 %v149, %v1601
  %v1604 = vtanh.pop %v1603
  %v1605 = vsub.f32 1.0, %v1594
  %1607 = vrot.lane.b32.xlu0 %v1604, 120
  %v1608 = vpop.permute.xlu0 %1607
  %v1610 = vmul.f32 %v1605, %v1608
  %1611 = vrot.lane.b32.xlu0 %v1405, 32
  %v1612 = vpop.permute.xlu0 %1611
  %v1614 = vmul.f32 %v1594, %v1612
  %v1615 = vadd.f32 %v1610, %v1614
  %v1617 = vrot.slane %v1583, 4
  %1618 = vrot.lane.b32.xlu0 %v1617, 120
  %v1619 = vpop.permute.xlu0 %1618
  %v1621 = vmul.f32 %v891, %v1619
  %v1622 = vmul.f32 %v885, %v1615
  %v1623 = vmul.f32 %v915, %v1399
  %1625 = vrot.lane.b32.xlu0 %v1623, 120
  %v1626 = vpop.permute.xlu0 %1625
  %v1628 = vadd.f32 %v1621, %v1626
  %v1629 = vmul.f32 %v903, %v1405
  %1631 = vrot.lane.b32.xlu0 %v1629, 32
  %v1632 = vpop.permute.xlu0 %1631
  %v1634 = vadd.f32 %v1622, %v1632
  %v1636 = vsel %vm175, %v1628, 0
  %1638 = vmatprep.subr.mxu0 0.0
  %1639 = vmatpush1.msra.mxu0 %v162
  %1640 = vmatprep.subr.mxu0 0.0
  %1641 = vmatpush1.msra.mxu0 0.0
  %1642 = vmatprep.subr.mxu0 0.0
  %1643 = vmatpush1.msra.mxu0 0.0
  %1644 = vmatprep.subr.mxu0 0.0
  %1645 = vmatpush1.msra.mxu0 0.0
  %1646 = vmatprep.subr.mxu0 0.0
  %1647 = vmatpush1.msra.mxu0 0.0
  %1648 = vmatprep.subr.mxu0 0.0
  %1649 = vmatpush1.msra.mxu0 0.0
  %1650 = vmatprep.subr.mxu0 0.0
  %1651 = vmatpush1.msra.mxu0 0.0
  %1652 = vmatprep.subr.mxu0 0.0
  %1653 = vmatpush1.msra.mxu0 0.0
  %1654 = vmatprep.subr.mxu0 0.0
  %1655 = vmatpush1.msra.mxu0 0.0
  %1656 = vmatprep.subr.mxu0 0.0
  %1657 = vmatpush1.msra.mxu0 0.0
  %1658 = vmatprep.subr.mxu0 0.0
  %1659 = vmatpush1.msra.mxu0 0.0
  %1660 = vmatprep.subr.mxu0 0.0
  %1661 = vmatpush1.msra.mxu0 0.0
  %1662 = vmatprep.subr.mxu0 0.0
  %1663 = vmatpush1.msra.mxu0 0.0
  %1664 = vmatprep.subr.mxu0 0.0
  %1665 = vmatpush1.msra.mxu0 0.0
  %1666 = vmatprep.subr.mxu0 0.0
  %1667 = vmatpush1.msra.mxu0 0.0
  %1668 = vmatprep.subr.mxu0 0.0
  %1669 = vmatpush1.msra.mxu0 0.0
  %1670 = vmatprep.subr.mxu0 0.0
  %1671 = vmatpush1.msra.mxu0 0.0
  %1672 = vmatprep.subr.mxu0 0.0
  %1673 = vmatpush1.msra.mxu0 0.0
  %1674 = vmatprep.subr.mxu0 0.0
  %1675 = vmatpush1.msra.mxu0 0.0
  %1676 = vmatprep.subr.mxu0 0.0
  %1677 = vmatpush1.msra.mxu0 0.0
  %1678 = vmatprep.subr.mxu0 0.0
  %1679 = vmatpush1.msra.mxu0 0.0
  %1680 = vmatprep.subr.mxu0 0.0
  %1681 = vmatpush1.msra.mxu0 0.0
  %1682 = vmatprep.subr.mxu0 0.0
  %1683 = vmatpush1.msra.mxu0 0.0
  %1684 = vmatprep.subr.mxu0 0.0
  %1685 = vmatpush1.msra.mxu0 0.0
  %1686 = vmatprep.subr.mxu0 0.0
  %1687 = vmatpush1.msra.mxu0 0.0
  %1688 = vmatprep.subr.mxu0 0.0
  %1689 = vmatpush1.msra.mxu0 0.0
  %1690 = vmatprep.subr.mxu0 0.0
  %1691 = vmatpush1.msra.mxu0 0.0
  %1692 = vmatprep.subr.mxu0 0.0
  %1693 = vmatpush1.msra.mxu0 0.0
  %1694 = vmatprep.subr.mxu0 0.0
  %1695 = vmatpush1.msra.mxu0 0.0
  %1696 = vmatprep.subr.mxu0 0.0
  %1697 = vmatpush1.msra.mxu0 0.0
  %1698 = vmatprep.subr.mxu0 0.0
  %1699 = vmatpush1.msra.mxu0 0.0
  %1700 = vmatprep.subr.mxu0 0.0
  %1701 = vmatpush1.msra.mxu0 0.0
  %1702 = vmatprep.mubr.f32.mxu0 0.0
  %1703 = vmatmul.mubr.f32.gmra.mrb[0].mxu0 %v1636
  %v1704 = vpop.f32.mrb[0].mxu0
  %v1705 = vadd.f32 %v173, %v1704
  %v1706 = vpop.f32.mrb[0].mxu0
  %1707 = vdwg.mxu0
  %1709 = vrot.lane.b32.xlu0 %v1634, 96
  %v1710 = vpop.permute.xlu0 %1709
  %v1711 = vsel %vm175, %v1710, 0
  %1713 = vmatprep.subr.mxu0 0.0
  %1714 = vmatpush1.msra.mxu0 %v163
  %1715 = vmatprep.subr.mxu0 0.0
  %1716 = vmatpush1.msra.mxu0 0.0
  %1717 = vmatprep.subr.mxu0 0.0
  %1718 = vmatpush1.msra.mxu0 0.0
  %1719 = vmatprep.subr.mxu0 0.0
  %1720 = vmatpush1.msra.mxu0 0.0
  %1721 = vmatprep.subr.mxu0 0.0
  %1722 = vmatpush1.msra.mxu0 0.0
  %1723 = vmatprep.subr.mxu0 0.0
  %1724 = vmatpush1.msra.mxu0 0.0
  %1725 = vmatprep.subr.mxu0 0.0
  %1726 = vmatpush1.msra.mxu0 0.0
  %1727 = vmatprep.subr.mxu0 0.0
  %1728 = vmatpush1.msra.mxu0 0.0
  %1729 = vmatprep.subr.mxu0 0.0
  %1730 = vmatpush1.msra.mxu0 0.0
  %1731 = vmatprep.subr.mxu0 0.0
  %1732 = vmatpush1.msra.mxu0 0.0
  %1733 = vmatprep.subr.mxu0 0.0
  %1734 = vmatpush1.msra.mxu0 0.0
  %1735 = vmatprep.subr.mxu0 0.0
  %1736 = vmatpush1.msra.mxu0 0.0
  %1737 = vmatprep.subr.mxu0 0.0
  %1738 = vmatpush1.msra.mxu0 0.0
  %1739 = vmatprep.subr.mxu0 0.0
  %1740 = vmatpush1.msra.mxu0 0.0
  %1741 = vmatprep.subr.mxu0 0.0
  %1742 = vmatpush1.msra.mxu0 0.0
  %1743 = vmatprep.subr.mxu0 0.0
  %1744 = vmatpush1.msra.mxu0 0.0
  %1745 = vmatprep.subr.mxu0 0.0
  %1746 = vmatpush1.msra.mxu0 0.0
  %1747 = vmatprep.subr.mxu0 0.0
  %1748 = vmatpush1.msra.mxu0 0.0
  %1749 = vmatprep.subr.mxu0 0.0
  %1750 = vmatpush1.msra.mxu0 0.0
  %1751 = vmatprep.subr.mxu0 0.0
  %1752 = vmatpush1.msra.mxu0 0.0
  %1753 = vmatprep.subr.mxu0 0.0
  %1754 = vmatpush1.msra.mxu0 0.0
  %1755 = vmatprep.subr.mxu0 0.0
  %1756 = vmatpush1.msra.mxu0 0.0
  %1757 = vmatprep.subr.mxu0 0.0
  %1758 = vmatpush1.msra.mxu0 0.0
  %1759 = vmatprep.subr.mxu0 0.0
  %1760 = vmatpush1.msra.mxu0 0.0
  %1761 = vmatprep.subr.mxu0 0.0
  %1762 = vmatpush1.msra.mxu0 0.0
  %1763 = vmatprep.subr.mxu0 0.0
  %1764 = vmatpush1.msra.mxu0 0.0
  %1765 = vmatprep.subr.mxu0 0.0
  %1766 = vmatpush1.msra.mxu0 0.0
  %1767 = vmatprep.subr.mxu0 0.0
  %1768 = vmatpush1.msra.mxu0 0.0
  %1769 = vmatprep.subr.mxu0 0.0
  %1770 = vmatpush1.msra.mxu0 0.0
  %1771 = vmatprep.subr.mxu0 0.0
  %1772 = vmatpush1.msra.mxu0 0.0
  %1773 = vmatprep.subr.mxu0 0.0
  %1774 = vmatpush1.msra.mxu0 0.0
  %1775 = vmatprep.subr.mxu0 0.0
  %1776 = vmatpush1.msra.mxu0 0.0
  %1777 = vmatprep.mubr.f32.mxu0 0.0
  %1778 = vmatmul.mubr.f32.gmra.mrb[0].mxu0 %v1711
  %v1779 = vpop.f32.mrb[0].mxu0
  %v1780 = vadd.f32 %v253, %v1779
  %v1781 = vpop.f32.mrb[0].mxu0
  %1782 = vdwg.mxu0
  %v1783 = vadd.f32 %v159, %v1705
  %v1784 = vxor.u32 %v1783, 2147483648
  %v1785 = vmul.f32 %v1784, 1.442695
  %v1786 = vpow.pop %v1785
  %v1787 = vadd.f32 %v1786, 1.0
  %v1788 = vrcp.pop %v1787
  %v1789 = vmul.f32 1.0, %v1788
  %1791 = vrot.lane.b32.xlu0 %v1705, 112
  %v1792 = vpop.permute.xlu0 %1791
  %v1794 = vmul.f32 %v1789, %v1792
  %1796 = vrot.lane.b32.xlu0 %v1794, 16
  %v1797 = vpop.permute.xlu0 %1796
  %v1799 = vadd.f32 %v159, %v1797
  %v1800 = vtanh.pop %v1799
  %v1801 = vsub.f32 1.0, %v1789
  %1803 = vrot.lane.b32.xlu0 %v1800, 120
  %v1804 = vpop.permute.xlu0 %1803
  %v1806 = vmul.f32 %v1801, %v1804
  %1807 = vrot.lane.b32.xlu0 %v1628, 8
  %v1808 = vpop.permute.xlu0 %1807
  %v1810 = vmul.f32 %v1789, %v1808
  %v1811 = vadd.f32 %v1806, %v1810
  %v1813 = vrot.slane %v1780, 4
  %1814 = vrot.lane.b32.xlu0 %v1813, 24
  %v1815 = vpop.permute.xlu0 %1814
  %v1817 = vadd.f32 %v144, %v1815
  %v1818 = vxor.u32 %v1817, 2147483648
  %v1819 = vmul.f32 %v1818, 1.442695
  %v1820 = vpow.pop %v1819
  %v1821 = vadd.f32 %v1820, 1.0
  %v1822 = vrcp.pop %v1821
  %v1823 = vmul.f32 1.0, %v1822
  %1824 = vrot.lane.b32.xlu0 %v1813, 8
  %v1825 = vpop.permute.xlu0 %1824
  %v1827 = vmul.f32 %v1823, %v1825
  %1829 = vrot.lane.b32.xlu0 %v1827, 16
  %v1830 = vpop.permute.xlu0 %1829
  %v1832 = vadd.f32 %v144, %v1830
  %v1833 = vtanh.pop %v1832
  %v1834 = vsub.f32 1.0, %v1823
  %1836 = vrot.lane.b32.xlu0 %v1833, 120
  %v1837 = vpop.permute.xlu0 %1836
  %v1839 = vmul.f32 %v1834, %v1837
  %v1840 = vrot.slane %v1634, 4
  %v1842 = vmul.f32 %v1823, %v1840
  %v1843 = vadd.f32 %v1839, %v1842
  %v1844 = vmul.f32 %v642, %v1811
  %v1846 = vrot.slane %v1843, 4
  %1847 = vrot.lane.b32.xlu0 %v1846, 96
  %v1848 = vpop.permute.xlu0 %1847
  %v1850 = vmul.f32 %v631, %v1848
  %v1851 = vmul.f32 %v661, %v1628
  %1853 = vrot.lane.b32.xlu0 %v1851, 8
  %v1854 = vpop.permute.xlu0 %1853
  %v1856 = vadd.f32 %v1844, %v1854
  %v1857 = vmul.f32 %v649, %v1634
  %1859 = vrot.lane.b32.xlu0 %v1857, 96
  %v1860 = vpop.permute.xlu0 %1859
  %v1862 = vadd.f32 %v1850, %v1860
  %1864 = vrot.lane.b32.xlu0 %v1856, 120
  %v1865 = vpop.permute.xlu0 %1864
  %v1866 = vsel %vm175, %v1865, 0
  %1868 = vmatprep.subr.mxu0 0.0
  %1869 = vmatpush1.msra.mxu0 %v162
  %1870 = vmatprep.subr.mxu0 0.0
  %1871 = vmatpush1.msra.mxu0 0.0
  %1872 = vmatprep.subr.mxu0 0.0
  %1873 = vmatpush1.msra.mxu0 0.0
  %1874 = vmatprep.subr.mxu0 0.0
  %1875 = vmatpush1.msra.mxu0 0.0
  %1876 = vmatprep.subr.mxu0 0.0
  %1877 = vmatpush1.msra.mxu0 0.0
  %1878 = vmatprep.subr.mxu0 0.0
  %1879 = vmatpush1.msra.mxu0 0.0
  %1880 = vmatprep.subr.mxu0 0.0
  %1881 = vmatpush1.msra.mxu0 0.0
  %1882 = vmatprep.subr.mxu0 0.0
  %1883 = vmatpush1.msra.mxu0 0.0
  %1884 = vmatprep.subr.mxu0 0.0
  %1885 = vmatpush1.msra.mxu0 0.0
  %1886 = vmatprep.subr.mxu0 0.0
  %1887 = vmatpush1.msra.mxu0 0.0
  %1888 = vmatprep.subr.mxu0 0.0
  %1889 = vmatpush1.msra.mxu0 0.0
  %1890 = vmatprep.subr.mxu0 0.0
  %1891 = vmatpush1.msra.mxu0 0.0
  %1892 = vmatprep.subr.mxu0 0.0
  %1893 = vmatpush1.msra.mxu0 0.0
  %1894 = vmatprep.subr.mxu0 0.0
  %1895 = vmatpush1.msra.mxu0 0.0
  %1896 = vmatprep.subr.mxu0 0.0
  %1897 = vmatpush1.msra.mxu0 0.0
  %1898 = vmatprep.subr.mxu0 0.0
  %1899 = vmatpush1.msra.mxu0 0.0
  %1900 = vmatprep.subr.mxu0 0.0
  %1901 = vmatpush1.msra.mxu0 0.0
  %1902 = vmatprep.subr.mxu0 0.0
  %1903 = vmatpush1.msra.mxu0 0.0
  %1904 = vmatprep.subr.mxu0 0.0
  %1905 = vmatpush1.msra.mxu0 0.0
  %1906 = vmatprep.subr.mxu0 0.0
  %1907 = vmatpush1.msra.mxu0 0.0
  %1908 = vmatprep.subr.mxu0 0.0
  %1909 = vmatpush1.msra.mxu0 0.0
  %1910 = vmatprep.subr.mxu0 0.0
  %1911 = vmatpush1.msra.mxu0 0.0
  %1912 = vmatprep.subr.mxu0 0.0
  %1913 = vmatpush1.msra.mxu0 0.0
  %1914 = vmatprep.subr.mxu0 0.0
  %1915 = vmatpush1.msra.mxu0 0.0
  %1916 = vmatprep.subr.mxu0 0.0
  %1917 = vmatpush1.msra.mxu0 0.0
  %1918 = vmatprep.subr.mxu0 0.0
  %1919 = vmatpush1.msra.mxu0 0.0
  %1920 = vmatprep.subr.mxu0 0.0
  %1921 = vmatpush1.msra.mxu0 0.0
  %1922 = vmatprep.subr.mxu0 0.0
  %1923 = vmatpush1.msra.mxu0 0.0
  %1924 = vmatprep.subr.mxu0 0.0
  %1925 = vmatpush1.msra.mxu0 0.0
  %1926 = vmatprep.subr.mxu0 0.0
  %1927 = vmatpush1.msra.mxu0 0.0
  %1928 = vmatprep.subr.mxu0 0.0
  %1929 = vmatpush1.msra.mxu0 0.0
  %1930 = vmatprep.subr.mxu0 0.0
  %1931 = vmatpush1.msra.mxu0 0.0
  %1932 = vmatprep.mubr.f32.mxu0 0.0
  %1933 = vmatmul.mubr.f32.gmra.mrb[0].mxu0 %v1866
  %v1934 = vpop.f32.mrb[0].mxu0
  %v1935 = vadd.f32 %v173, %v1934
  %v1936 = vpop.f32.mrb[0].mxu0
  %1937 = vdwg.mxu0
  %v1939 = vsel %vm175, %v1862, 0
  %1941 = vmatprep.subr.mxu0 0.0
  %1942 = vmatpush1.msra.mxu0 %v163
  %1943 = vmatprep.subr.mxu0 0.0
  %1944 = vmatpush1.msra.mxu0 0.0
  %1945 = vmatprep.subr.mxu0 0.0
  %1946 = vmatpush1.msra.mxu0 0.0
  %1947 = vmatprep.subr.mxu0 0.0
  %1948 = vmatpush1.msra.mxu0 0.0
  %1949 = vmatprep.subr.mxu0 0.0
  %1950 = vmatpush1.msra.mxu0 0.0
  %1951 = vmatprep.subr.mxu0 0.0
  %1952 = vmatpush1.msra.mxu0 0.0
  %1953 = vmatprep.subr.mxu0 0.0
  %1954 = vmatpush1.msra.mxu0 0.0
  %1955 = vmatprep.subr.mxu0 0.0
  %1956 = vmatpush1.msra.mxu0 0.0
  %1957 = vmatprep.subr.mxu0 0.0
  %1958 = vmatpush1.msra.mxu0 0.0
  %1959 = vmatprep.subr.mxu0 0.0
  %1960 = vmatpush1.msra.mxu0 0.0
  %1961 = vmatprep.subr.mxu0 0.0
  %1962 = vmatpush1.msra.mxu0 0.0
  %1963 = vmatprep.subr.mxu0 0.0
  %1964 = vmatpush1.msra.mxu0 0.0
  %1965 = vmatprep.subr.mxu0 0.0
  %1966 = vmatpush1.msra.mxu0 0.0
  %1967 = vmatprep.subr.mxu0 0.0
  %1968 = vmatpush1.msra.mxu0 0.0
  %1969 = vmatprep.subr.mxu0 0.0
  %1970 = vmatpush1.msra.mxu0 0.0
  %1971 = vmatprep.subr.mxu0 0.0
  %1972 = vmatpush1.msra.mxu0 0.0
  %1973 = vmatprep.subr.mxu0 0.0
  %1974 = vmatpush1.msra.mxu0 0.0
  %1975 = vmatprep.subr.mxu0 0.0
  %1976 = vmatpush1.msra.mxu0 0.0
  %1977 = vmatprep.subr.mxu0 0.0
  %1978 = vmatpush1.msra.mxu0 0.0
  %1979 = vmatprep.subr.mxu0 0.0
  %1980 = vmatpush1.msra.mxu0 0.0
  %1981 = vmatprep.subr.mxu0 0.0
  %1982 = vmatpush1.msra.mxu0 0.0
  %1983 = vmatprep.subr.mxu0 0.0
  %1984 = vmatpush1.msra.mxu0 0.0
  %1985 = vmatprep.subr.mxu0 0.0
  %1986 = vmatpush1.msra.mxu0 0.0
  %1987 = vmatprep.subr.mxu0 0.0
  %1988 = vmatpush1.msra.mxu0 0.0
  %1989 = vmatprep.subr.mxu0 0.0
  %1990 = vmatpush1.msra.mxu0 0.0
  %1991 = vmatprep.subr.mxu0 0.0
  %1992 = vmatpush1.msra.mxu0 0.0
  %1993 = vmatprep.subr.mxu0 0.0
  %1994 = vmatpush1.msra.mxu0 0.0
  %1995 = vmatprep.subr.mxu0 0.0
  %1996 = vmatpush1.msra.mxu0 0.0
  %1997 = vmatprep.subr.mxu0 0.0
  %1998 = vmatpush1.msra.mxu0 0.0
  %1999 = vmatprep.subr.mxu0 0.0
  %2000 = vmatpush1.msra.mxu0 0.0
  %2001 = vmatprep.subr.mxu0 0.0
  %2002 = vmatpush1.msra.mxu0 0.0
  %2003 = vmatprep.subr.mxu0 0.0
  %2004 = vmatpush1.msra.mxu0 0.0
  %2005 = vmatprep.mubr.f32.mxu0 0.0
  %2006 = vmatmul.mubr.f32.gmra.mrb[0].mxu0 %v1939
  %v2007 = vpop.f32.mrb[0].mxu0
  %v2008 = vadd.f32 %v253, %v2007
  %v2009 = vpop.f32.mrb[0].mxu0
  %2010 = vdwg.mxu0
  %v2012 = vrot.slane %v1935, 4
  %v2014 = vadd.f32 %v159, %v2012
  %v2015 = vxor.u32 %v2014, 2147483648
  %v2016 = vmul.f32 %v2015, 1.442695
  %v2017 = vpow.pop %v2016
  %v2018 = vadd.f32 %v2017, 1.0
  %v2019 = vrcp.pop %v2018
  %v2020 = vmul.f32 1.0, %v2019
  %2021 = vrot.lane.b32.xlu0 %v2012, 112
  %v2022 = vpop.permute.xlu0 %2021
  %v2024 = vmul.f32 %v2020, %v2022
  %2026 = vrot.lane.b32.xlu0 %v2024, 16
  %v2027 = vpop.permute.xlu0 %2026
  %v2029 = vadd.f32 %v159, %v2027
  %v2030 = vtanh.pop %v2029
  %v2031 = vsub.f32 1.0, %v2020
  %2033 = vrot.lane.b32.xlu0 %v2030, 120
  %v2034 = vpop.permute.xlu0 %2033
  %v2036 = vmul.f32 %v2031, %v2034
  %v2037 = vrot.slane %v1856, 4
  %v2039 = vmul.f32 %v2020, %v2037
  %v2040 = vadd.f32 %v2036, %v2039
  %2042 = vrot.lane.b32.xlu0 %v2008, 24
  %v2043 = vpop.permute.xlu0 %2042
  %v2045 = vadd.f32 %v144, %v2043
  %v2046 = vxor.u32 %v2045, 2147483648
  %v2047 = vmul.f32 %v2046, 1.442695
  %v2048 = vpow.pop %v2047
  %v2049 = vadd.f32 %v2048, 1.0
  %v2050 = vrcp.pop %v2049
  %v2051 = vmul.f32 1.0, %v2050
  %2052 = vrot.lane.b32.xlu0 %v2008, 8
  %v2053 = vpop.permute.xlu0 %2052
  %v2055 = vmul.f32 %v2051, %v2053
  %2057 = vrot.lane.b32.xlu0 %v2055, 16
  %v2058 = vpop.permute.xlu0 %2057
  %v2060 = vadd.f32 %v144, %v2058
  %v2061 = vtanh.pop %v2060
  %v2062 = vsub.f32 1.0, %v2051
  %2064 = vrot.lane.b32.xlu0 %v2061, 120
  %v2065 = vpop.permute.xlu0 %2064
  %v2067 = vmul.f32 %v2062, %v2065
  %2068 = vrot.lane.b32.xlu0 %v1862, 32
  %v2069 = vpop.permute.xlu0 %2068
  %v2071 = vmul.f32 %v2051, %v2069
  %v2072 = vadd.f32 %v2067, %v2071
  %v2074 = vrot.slane %v2040, 4
  %2075 = vrot.lane.b32.xlu0 %v2074, 120
  %v2076 = vpop.permute.xlu0 %2075
  %v2078 = vmul.f32 %v390, %v2076
  %v2079 = vmul.f32 %v384, %v2072
  %v2080 = vmul.f32 %v410, %v1856
  %2082 = vrot.lane.b32.xlu0 %v2080, 120
  %v2083 = vpop.permute.xlu0 %2082
  %v2085 = vadd.f32 %v2078, %v2083
  %v2086 = vmul.f32 %v402, %v1862
  %2088 = vrot.lane.b32.xlu0 %v2086, 32
  %v2089 = vpop.permute.xlu0 %2088
  %v2091 = vadd.f32 %v2079, %v2089
  %2093 = vrot.lane.b32.xlu0 %v2091, 96
  %v2094 = vpop.permute.xlu0 %2093
  %v2096 = vadd.f32 %v2085, %v2094
  %2098 = vrot.lane.b32.xlu0 %v2079, 104
  %v2099 = vpop.permute.xlu0 %2098
  %v2101 = vadd.f32 %v386, %v2099
  %v2102 = vadd.f32 %v638, %v1850
  %2104 = vrot.lane.b32.xlu0 %v2102, 8
  %v2105 = vpop.permute.xlu0 %2104
  %v2107 = vmax.f32 %v2101, %v2105
  %v2108 = vadd.f32 %v2101, %v2105
  %2110 = vrot.lane.b32.xlu0 %v1622, 104
  %v2111 = vpop.permute.xlu0 %2110
  %v2113 = vadd.f32 %v887, %v2111
  %v2114 = vmax.f32 %v2107, %v2113
  %v2115 = vadd.f32 %v2108, %v2113
  %v2116 = vadd.f32 %v1147, %v1393
  %2118 = vrot.lane.b32.xlu0 %v2116, 8
  %v2119 = vpop.permute.xlu0 %2118
  %v2121 = vmax.f32 %v2114, %v2119
  %v2122 = vadd.f32 %v2115, %v2119
  %2124 = vrot.lane.b32.xlu0 %v1153, 104
  %v2125 = vpop.permute.xlu0 %2124
  %v2127 = vadd.f32 %v1387, %v2125
  %v2128 = vmax.f32 %v2121, %v2127
  %v2129 = vadd.f32 %v2122, %v2127
  %v2130 = vadd.f32 %v1621, %v898
  %2132 = vrot.lane.b32.xlu0 %v2130, 8
  %v2133 = vpop.permute.xlu0 %2132
  %v2135 = vmax.f32 %v2128, %v2133
  %v2136 = vadd.f32 %v2129, %v2133
  %2138 = vrot.lane.b32.xlu0 %v644, 104
  %v2139 = vpop.permute.xlu0 %2138
  %v2141 = vadd.f32 %v1844, %v2139
  %v2142 = vmax.f32 %v2135, %v2141
  %v2143 = vadd.f32 %v2136, %v2141
  %v2144 = vadd.f32 %v2078, %v397
  %2146 = vrot.lane.b32.xlu0 %v2144, 8
  %v2147 = vpop.permute.xlu0 %2146
  %v2149 = vmax.f32 %v2142, %v2147
  %v2150 = vadd.f32 %v2143, %v2147
  %v2151 = vld [vmem:[%s3] sm:$0xf]
  %2153 = vset.pattern.permute.xlu0 0
  %2154 = vperm.xlu0 %2153, %v2151
  %v2155 = vpop.permute.xlu0 %2154
  %v2157 = vmul.f32 %v2150, %v2155
  %v2158 = vld [vmem:[%s10] sm:$0xff]
  %v2159 = vld [vmem:[%s11] sm:$0xff]
  %2161 = vrot.lane.b32.xlu0 %v2149, 120
  %v2162 = vpop.permute.xlu0 %2161
  %v2163 = vsel %vm175, %v2162, 0
  %2165 = vmatprep.subr.mxu0 0.0
  %2166 = vmatpush1.msra.mxu0 %v2159
  %2167 = vmatprep.subr.mxu0 0.0
  %2168 = vmatpush1.msra.mxu0 0.0
  %2169 = vmatprep.subr.mxu0 0.0
  %2170 = vmatpush1.msra.mxu0 0.0
  %2171 = vmatprep.subr.mxu0 0.0
  %2172 = vmatpush1.msra.mxu0 0.0
  %2173 = vmatprep.subr.mxu0 0.0
  %2174 = vmatpush1.msra.mxu0 0.0
  %2175 = vmatprep.subr.mxu0 0.0
  %2176 = vmatpush1.msra.mxu0 0.0
  %2177 = vmatprep.subr.mxu0 0.0
  %2178 = vmatpush1.msra.mxu0 0.0
  %2179 = vmatprep.subr.mxu0 0.0
  %2180 = vmatpush1.msra.mxu0 0.0
  %2181 = vmatprep.subr.mxu0 0.0
  %2182 = vmatpush1.msra.mxu0 0.0
  %2183 = vmatprep.subr.mxu0 0.0
  %2184 = vmatpush1.msra.mxu0 0.0
  %2185 = vmatprep.subr.mxu0 0.0
  %2186 = vmatpush1.msra.mxu0 0.0
  %2187 = vmatprep.subr.mxu0 0.0
  %2188 = vmatpush1.msra.mxu0 0.0
  %2189 = vmatprep.subr.mxu0 0.0
  %2190 = vmatpush1.msra.mxu0 0.0
  %2191 = vmatprep.subr.mxu0 0.0
  %2192 = vmatpush1.msra.mxu0 0.0
  %2193 = vmatprep.subr.mxu0 0.0
  %2194 = vmatpush1.msra.mxu0 0.0
  %2195 = vmatprep.subr.mxu0 0.0
  %2196 = vmatpush1.msra.mxu0 0.0
  %2197 = vmatprep.subr.mxu0 0.0
  %2198 = vmatpush1.msra.mxu0 0.0
  %2199 = vmatprep.subr.mxu0 0.0
  %2200 = vmatpush1.msra.mxu0 0.0
  %2201 = vmatprep.subr.mxu0 0.0
  %2202 = vmatpush1.msra.mxu0 0.0
  %2203 = vmatprep.subr.mxu0 0.0
  %2204 = vmatpush1.msra.mxu0 0.0
  %2205 = vmatprep.subr.mxu0 0.0
  %2206 = vmatpush1.msra.mxu0 0.0
  %2207 = vmatprep.subr.mxu0 0.0
  %2208 = vmatpush1.msra.mxu0 0.0
  %2209 = vmatprep.subr.mxu0 0.0
  %2210 = vmatpush1.msra.mxu0 0.0
  %2211 = vmatprep.subr.mxu0 0.0
  %2212 = vmatpush1.msra.mxu0 0.0
  %2213 = vmatprep.subr.mxu0 0.0
  %2214 = vmatpush1.msra.mxu0 0.0
  %2215 = vmatprep.subr.mxu0 0.0
  %2216 = vmatpush1.msra.mxu0 0.0
  %2217 = vmatprep.subr.mxu0 0.0
  %2218 = vmatpush1.msra.mxu0 0.0
  %2219 = vmatprep.subr.mxu0 0.0
  %2220 = vmatpush1.msra.mxu0 0.0
  %2221 = vmatprep.subr.mxu0 0.0
  %2222 = vmatpush1.msra.mxu0 0.0
  %2223 = vmatprep.subr.mxu0 0.0
  %2224 = vmatpush1.msra.mxu0 0.0
  %2225 = vmatprep.subr.mxu0 0.0
  %2226 = vmatpush1.msra.mxu0 0.0
  %2227 = vmatprep.subr.mxu0 0.0
  %2228 = vmatpush1.msra.mxu0 0.0
  %2229 = vmatprep.mubr.f32.mxu0 0.0
  %2230 = vmatmul.mubr.f32.gmra.mrb[0].mxu0 %v2163
  %v2231 = vpop.f32.mrb[0].mxu0
  %v2232 = vadd.f32 0.0, %v2231
  %v2233 = vpop.f32.mrb[0].mxu0
  %2234 = vdwg.mxu0
  %v2236 = vsel %vm175, %v2096, 0
  %2238 = vmatprep.subr.mxu0 0.0
  %2239 = vmatpush1.msra.mxu0 %v2158
  %2240 = vmatprep.subr.mxu0 0.0
  %2241 = vmatpush1.msra.mxu0 0.0
  %2242 = vmatprep.subr.mxu0 0.0
  %2243 = vmatpush1.msra.mxu0 0.0
  %2244 = vmatprep.subr.mxu0 0.0
  %2245 = vmatpush1.msra.mxu0 0.0
  %2246 = vmatprep.subr.mxu0 0.0
  %2247 = vmatpush1.msra.mxu0 0.0
  %2248 = vmatprep.subr.mxu0 0.0
  %2249 = vmatpush1.msra.mxu0 0.0
  %2250 = vmatprep.subr.mxu0 0.0
  %2251 = vmatpush1.msra.mxu0 0.0
  %2252 = vmatprep.subr.mxu0 0.0
  %2253 = vmatpush1.msra.mxu0 0.0
  %2254 = vmatprep.subr.mxu0 0.0
  %2255 = vmatpush1.msra.mxu0 0.0
  %2256 = vmatprep.subr.mxu0 0.0
  %2257 = vmatpush1.msra.mxu0 0.0
  %2258 = vmatprep.subr.mxu0 0.0
  %2259 = vmatpush1.msra.mxu0 0.0
  %2260 = vmatprep.subr.mxu0 0.0
  %2261 = vmatpush1.msra.mxu0 0.0
  %2262 = vmatprep.subr.mxu0 0.0
  %2263 = vmatpush1.msra.mxu0 0.0
  %2264 = vmatprep.subr.mxu0 0.0
  %2265 = vmatpush1.msra.mxu0 0.0
  %2266 = vmatprep.subr.mxu0 0.0
  %2267 = vmatpush1.msra.mxu0 0.0
  %2268 = vmatprep.subr.mxu0 0.0
  %2269 = vmatpush1.msra.mxu0 0.0
  %2270 = vmatprep.subr.mxu0 0.0
  %2271 = vmatpush1.msra.mxu0 0.0
  %2272 = vmatprep.subr.mxu0 0.0
  %2273 = vmatpush1.msra.mxu0 0.0
  %2274 = vmatprep.subr.mxu0 0.0
  %2275 = vmatpush1.msra.mxu0 0.0
  %2276 = vmatprep.subr.mxu0 0.0
  %2277 = vmatpush1.msra.mxu0 0.0
  %2278 = vmatprep.subr.mxu0 0.0
  %2279 = vmatpush1.msra.mxu0 0.0
  %2280 = vmatprep.subr.mxu0 0.0
  %2281 = vmatpush1.msra.mxu0 0.0
  %2282 = vmatprep.subr.mxu0 0.0
  %2283 = vmatpush1.msra.mxu0 0.0
  %2284 = vmatprep.subr.mxu0 0.0
  %2285 = vmatpush1.msra.mxu0 0.0
  %2286 = vmatprep.subr.mxu0 0.0
  %2287 = vmatpush1.msra.mxu0 0.0
  %2288 = vmatprep.subr.mxu0 0.0
  %2289 = vmatpush1.msra.mxu0 0.0
  %2290 = vmatprep.subr.mxu0 0.0
  %2291 = vmatpush1.msra.mxu0 0.0
  %2292 = vmatprep.subr.mxu0 0.0
  %2293 = vmatpush1.msra.mxu0 0.0
  %2294 = vmatprep.subr.mxu0 0.0
  %2295 = vmatpush1.msra.mxu0 0.0
  %2296 = vmatprep.subr.mxu0 0.0
  %2297 = vmatpush1.msra.mxu0 0.0
  %2298 = vmatprep.subr.mxu0 0.0
  %2299 = vmatpush1.msra.mxu0 0.0
  %2300 = vmatprep.subr.mxu0 0.0
  %2301 = vmatpush1.msra.mxu0 0.0
  %2302 = vmatprep.mubr.f32.mxu0 0.0
  %2303 = vmatmul.mubr.f32.gmra.mrb[0].mxu0 %v2236
  %v2304 = vpop.f32.mrb[0].mxu0
  %v2305 = vadd.f32 %v2232, %v2304
  %v2306 = vpop.f32.mrb[0].mxu0
  %2307 = vdwg.mxu0
  %v2308 = vld [vmem:[%s12] sm:$0xff]
  %2310 = vrot.lane.b32.xlu0 %v2157, 120
  %v2311 = vpop.permute.xlu0 %2310
  %v2312 = vsel %vm175, %v2311, 0
  %2314 = vmatprep.subr.mxu0 0.0
  %2315 = vmatpush1.msra.mxu0 %v2308
  %2316 = vmatprep.subr.mxu0 0.0
  %2317 = vmatpush1.msra.mxu0 0.0
  %2318 = vmatprep.subr.mxu0 0.0
  %2319 = vmatpush1.msra.mxu0 0.0
  %2320 = vmatprep.subr.mxu0 0.0
  %2321 = vmatpush1.msra.mxu0 0.0
  %2322 = vmatprep.subr.mxu0 0.0
  %2323 = vmatpush1.msra.mxu0 0.0
  %2324 = vmatprep.subr.mxu0 0.0
  %2325 = vmatpush1.msra.mxu0 0.0
  %2326 = vmatprep.subr.mxu0 0.0
  %2327 = vmatpush1.msra.mxu0 0.0
  %2328 = vmatprep.subr.mxu0 0.0
  %2329 = vmatpush1.msra.mxu0 0.0
  %2330 = vmatprep.subr.mxu0 0.0
  %2331 = vmatpush1.msra.mxu0 0.0
  %2332 = vmatprep.subr.mxu0 0.0
  %2333 = vmatpush1.msra.mxu0 0.0
  %2334 = vmatprep.subr.mxu0 0.0
  %2335 = vmatpush1.msra.mxu0 0.0
  %2336 = vmatprep.subr.mxu0 0.0
  %2337 = vmatpush1.msra.mxu0 0.0
  %2338 = vmatprep.subr.mxu0 0.0
  %2339 = vmatpush1.msra.mxu0 0.0
  %2340 = vmatprep.subr.mxu0 0.0
  %2341 = vmatpush1.msra.mxu0 0.0
  %2342 = vmatprep.subr.mxu0 0.0
  %2343 = vmatpush1.msra.mxu0 0.0
  %2344 = vmatprep.subr.mxu0 0.0
  %2345 = vmatpush1.msra.mxu0 0.0
  %2346 = vmatprep.subr.mxu0 0.0
  %2347 = vmatpush1.msra.mxu0 0.0
  %2348 = vmatprep.subr.mxu0 0.0
  %2349 = vmatpush1.msra.mxu0 0.0
  %2350 = vmatprep.subr.mxu0 0.0
  %2351 = vmatpush1.msra.mxu0 0.0
  %2352 = vmatprep.subr.mxu0 0.0
  %2353 = vmatpush1.msra.mxu0 0.0
  %2354 = vmatprep.subr.mxu0 0.0
  %2355 = vmatpush1.msra.mxu0 0.0
  %2356 = vmatprep.subr.mxu0 0.0
  %2357 = vmatpush1.msra.mxu0 0.0
  %2358 = vmatprep.subr.mxu0 0.0
  %2359 = vmatpush1.msra.mxu0 0.0
  %2360 = vmatprep.subr.mxu0 0.0
  %2361 = vmatpush1.msra.mxu0 0.0
  %2362 = vmatprep.subr.mxu0 0.0
  %2363 = vmatpush1.msra.mxu0 0.0
  %2364 = vmatprep.subr.mxu0 0.0
  %2365 = vmatpush1.msra.mxu0 0.0
  %2366 = vmatprep.subr.mxu0 0.0
  %2367 = vmatpush1.msra.mxu0 0.0
  %2368 = vmatprep.subr.mxu0 0.0
  %2369 = vmatpush1.msra.mxu0 0.0
  %2370 = vmatprep.subr.mxu0 0.0
  %2371 = vmatpush1.msra.mxu0 0.0
  %2372 = vmatprep.subr.mxu0 0.0
  %2373 = vmatpush1.msra.mxu0 0.0
  %2374 = vmatprep.subr.mxu0 0.0
  %2375 = vmatpush1.msra.mxu0 0.0
  %2376 = vmatprep.subr.mxu0 0.0
  %2377 = vmatpush1.msra.mxu0 0.0
  %2378 = vmatprep.mubr.f32.mxu0 0.0
  %2379 = vmatmul.mubr.f32.gmra.mrb[0].mxu0 %v2312
  %v2380 = vpop.f32.mrb[0].mxu0
  %v2381 = vadd.f32 0.0, %v2380
  %v2382 = vpop.f32.mrb[0].mxu0
  %2383 = vdwg.mxu0
  %v2384 = vadd.f32 %v2305, %v2381
  %v2385 = vld [vmem:[%s2] sm:$0xf]
  %v2386 = vld [vmem:[%s13] sm:$0xff]
  %v2387 = vld [vmem:[%s13 + $0x8] sm:$0x3]
  %vm2388 = vcmask 80896
  %v2390 = vsel %vm2388, %v2385, 0
  %vm2392 = vcmask 1041408
  %v2394 = vsel %vm2392, %v2387, 0
  %2396 = vmatprep.subr.mxu0 0.0
  %2397 = vmatpush1.msra.mxu0 %v2386
  %2398 = vmatprep.subr.mxu0 0.0
  %2399 = vmatpush1.msra.mxu0 %v2394
  %2400 = vmatprep.subr.mxu0 0.0
  %2401 = vmatpush1.msra.mxu0 0.0
  %2402 = vmatprep.subr.mxu0 0.0
  %2403 = vmatpush1.msra.mxu0 0.0
  %2404 = vmatprep.subr.mxu0 0.0
  %2405 = vmatpush1.msra.mxu0 0.0
  %2406 = vmatprep.subr.mxu0 0.0
  %2407 = vmatpush1.msra.mxu0 0.0
  %2408 = vmatprep.subr.mxu0 0.0
  %2409 = vmatpush1.msra.mxu0 0.0
  %2410 = vmatprep.subr.mxu0 0.0
  %2411 = vmatpush1.msra.mxu0 0.0
  %2412 = vmatprep.subr.mxu0 0.0
  %2413 = vmatpush1.msra.mxu0 0.0
  %2414 = vmatprep.subr.mxu0 0.0
  %2415 = vmatpush1.msra.mxu0 0.0
  %2416 = vmatprep.subr.mxu0 0.0
  %2417 = vmatpush1.msra.mxu0 0.0
  %2418 = vmatprep.subr.mxu0 0.0
  %2419 = vmatpush1.msra.mxu0 0.0
  %2420 = vmatprep.subr.mxu0 0.0
  %2421 = vmatpush1.msra.mxu0 0.0
  %2422 = vmatprep.subr.mxu0 0.0
  %2423 = vmatpush1.msra.mxu0 0.0
  %2424 = vmatprep.subr.mxu0 0.0
  %2425 = vmatpush1.msra.mxu0 0.0
  %2426 = vmatprep.subr.mxu0 0.0
  %2427 = vmatpush1.msra.mxu0 0.0
  %2428 = vmatprep.subr.mxu0 0.0
  %2429 = vmatpush1.msra.mxu0 0.0
  %2430 = vmatprep.subr.mxu0 0.0
  %2431 = vmatpush1.msra.mxu0 0.0
  %2432 = vmatprep.subr.mxu0 0.0
  %2433 = vmatpush1.msra.mxu0 0.0
  %2434 = vmatprep.subr.mxu0 0.0
  %2435 = vmatpush1.msra.mxu0 0.0
  %2436 = vmatprep.subr.mxu0 0.0
  %2437 = vmatpush1.msra.mxu0 0.0
  %2438 = vmatprep.subr.mxu0 0.0
  %2439 = vmatpush1.msra.mxu0 0.0
  %2440 = vmatprep.subr.mxu0 0.0
  %2441 = vmatpush1.msra.mxu0 0.0
  %2442 = vmatprep.subr.mxu0 0.0
  %2443 = vmatpush1.msra.mxu0 0.0
  %2444 = vmatprep.subr.mxu0 0.0
  %2445 = vmatpush1.msra.mxu0 0.0
  %2446 = vmatprep.subr.mxu0 0.0
  %2447 = vmatpush1.msra.mxu0 0.0
  %2448 = vmatprep.subr.mxu0 0.0
  %2449 = vmatpush1.msra.mxu0 0.0
  %2450 = vmatprep.subr.mxu0 0.0
  %2451 = vmatpush1.msra.mxu0 0.0
  %2452 = vmatprep.subr.mxu0 0.0
  %2453 = vmatpush1.msra.mxu0 0.0
  %2454 = vmatprep.subr.mxu0 0.0
  %2455 = vmatpush1.msra.mxu0 0.0
  %2456 = vmatprep.subr.mxu0 0.0
  %2457 = vmatpush1.msra.mxu0 0.0
  %2458 = vmatprep.subr.mxu0 0.0
  %2459 = vmatpush1.msra.mxu0 0.0
  %2460 = vmatprep.mubr.f32.mxu0 0.0
  %2461 = vmatmul.mubr.f32.gmra.mrb[0].mxu0 %v2390
  %v2462 = vpop.f32.mrb[0].mxu0
  %v2463 = vadd.f32 0.0, %v2462
  %v2464 = vpop.f32.mrb[0].mxu0
  %2465 = vdwg.mxu0
  %v2466 = vadd.f32 %v2384, %v2463
  %v2467 = vld [vmem:[%s14] sm:$0x1]
  %v2469 = vlaneseq
  %v2470 = vshrl.u32 %v2469, 7
  %v2471 = vsub.s32 0, %v2470
  %v2472 = vrot.slane %v2467, %v2471
  %v2474 = vadd.f32 %v2466, %v2472
  %vm2475 = vcmask 11264
  %v2476 = vsel %vm2475, %v2474, -inf
  %2477 = vmax.xlane.f32.xlu0 %v2476
  %v2478 = vpop.xlane.xlu0 %2477
  %v2479 = vsub.f32 %v2474, %v2478
  %v2480 = vmul.f32 %v2479, 1.442695
  %v2481 = vpow.pop %v2480
  %v2482 = vsel %vm2475, %v2481, 0.0
  %2483 = vadd.xlane.f32.xlu0 %v2482
  %v2484 = vpop.xlane.xlu0 %2483
  %v2485 = vlog2.pop %v2484
  %v2486 = vmul.f32 %v2485, 0.6931472
  %v2487 = vsub.f32 %v2479, %v2486
  %2488 = vst.msk [vmem:[%s15] sm:$0xf] %vm2475, %v2487
  // Predicated region
  $region62: #{tpu_custom_call.1} parent=0 // pred_check
    _
  $region63: #{tpu_custom_call.1} parent=0 // pred_check_branch
    %2490 = sbr.rel (0) target = $region65
  $region64: #{tpu_custom_call.1} parent=0 // pred_region
    _
  $region65: #{tpu_custom_call.1} parent=0 // pred_fallthru
    _
  // Predicated region
  $region66: #{tpu_custom_call.1} parent=0 // pred_check
    _
  $region67: #{tpu_custom_call.1} parent=0 // pred_check_branch
    %2492 = sbr.rel (0) target = $region69
  $region68: #{tpu_custom_call.1} parent=0 // pred_region
    _
  $region69: #{tpu_custom_call.1} parent=0 // pred_fallthru
    _

</llo_original>
